<compile_context>
chip_gen: v6e
topology: v6e:2x2x1
jax: 0.10.0
libtpu: 0.0.40
codegen_flags: <defaults>
</compile_context>

<pallas_src>
import math

import jax
import jax.numpy as jnp
from jax.experimental import pallas as pl
from jax.experimental.pallas import tpu as pltpu

B = 2                 # batch
CIN = 1               # input_channels (TrafficCNN default)
L = 12                # sequence_length (TrafficCNN default)
C1, C2, C3 = 64, 128, 256
H_ATT = 64
H1, H2 = 512, 128
BN_EPS = 1e-5

N_CHUNKS = 4          # fc1 weight streamed in 4 DMA chunks of CHUNK_L rows
CHUNK_L = L // N_CHUNKS

_WFC1_ARG_IDX = 11    # position of wfc1_q in the pallas_call operand list (x is 0)


# ----------------------------- shared math helpers ---------------------------

def _shift_prev(x):
    # element l becomes x[l-1]; zero at l == 0 (left zero pad of the conv)
    z = jnp.zeros_like(x[:, :1, :])
    return jnp.concatenate([z, x[:, :-1, :]], axis=1)


def _shift_next(x):
    # element l becomes x[l+1]; zero at l == L-1 (right zero pad of the conv)
    z = jnp.zeros_like(x[:, :1, :])
    return jnp.concatenate([x[:, 1:, :], z], axis=1)


def _conv1_bn_relu(x, w_taps, shift):
    # Cin == 1 degenerate conv: pure VPU broadcast multiplies, no MXU.
    # w_taps (3, 1, C1) already has the BN scale folded in; shift folds
    # conv bias + BN (eval).  Dropout(0.2) = identity.
    y = (_shift_prev(x) * w_taps[0, 0] + x * w_taps[1, 0]
         + _shift_next(x) * w_taps[2, 0])
    return jnp.maximum(y + shift, 0.0)


def _conv_bn_relu(x, w_cat_bf16, shift):
    # Conv1d(k=3, pad=1): ONE bf16 MXU matmul against the tap-concatenated,
    # BN-scale-folded weight (Cin, 3*Cout) = [w_tap0 | w_tap1 | w_tap2],
    # then shifted adds of the lane-aligned Cout blocks:
    #   y[l] = w0.x[l-1] + w1.x[l] + w2.x[l+1]
    cout = w_cat_bf16.shape[-1] // 3
    z = jnp.einsum('blc,cd->bld', x.astype(jnp.bfloat16), w_cat_bf16,
                   preferred_element_type=jnp.float32)
    y = (_shift_prev(z[..., :cout]) + z[..., cout:2 * cout]
         + _shift_next(z[..., 2 * cout:]))
    return jnp.maximum(y + shift, 0.0)


# --------------------------------- kernel -----------------------------------

def traffic_cnn_kernel(x_ref,
                       w1_ref, t1_ref,
                       w2_ref, t2_ref,
                       w3_ref, t3_ref,
                       wa1_ref, ba1_ref, wa2_ref, ba2_ref,
                       wfc1_hbm_ref, sfc1_ref, bfc1_ref,
                       wfc2_ref, bfc2_ref,
                       wfc3_ref, bfc3_ref,
                       out_ref,
                       wfc1_vmem, wfc1_sems):
    # Kick off ALL chunked DMAs of the int8 fc1 weight (HBM -> VMEM) right
    # away so the transfer overlaps the conv stack + attention compute below.
    # TODO(synk): for repeated serving calls, hoist this DMA across the
    # pallas_call boundary (P10 cross-call future) or keep wfc1 resident in
    # VMEM instead of re-streaming ~1.5 MB per call.
    copies = []
    for k in range(N_CHUNKS):
        sl = pl.ds(k * CHUNK_L, CHUNK_L)
        cp = pltpu.make_async_copy(wfc1_hbm_ref.at[sl], wfc1_vmem.at[sl],
                                   wfc1_sems.at[k])
        cp.start()
        copies.append(cp)

    x = x_ref[...]                                          # (B, L, 1) f32
    bsz = x.shape[0]
    h = _conv1_bn_relu(x, w1_ref[...], t1_ref[...])         # (B, L, 64)
    h = _conv_bn_relu(h, w2_ref[...], t2_ref[...])          # (B, L, 128)
    h = _conv_bn_relu(h, w3_ref[...], t3_ref[...])          # (B, L, 256)

    # attention: Linear(256,64) -> tanh -> Linear(64,1) -> softmax over L.
    # The 64->1 projection is a VPU multiply + lane reduce (no N=1 MXU matmul).
    a1 = jnp.tanh(jnp.einsum('blc,cd->bld', h.astype(jnp.bfloat16), wa1_ref[...],
                             preferred_element_type=jnp.float32) + ba1_ref[...])
    logits = jnp.sum(a1 * wa2_ref[...], axis=-1, keepdims=True) + ba2_ref[...]
    m = jnp.max(logits, axis=1, keepdims=True)
    e = jnp.exp(logits - m)
    attn = e / jnp.sum(e, axis=1, keepdims=True)            # softmax over L
    attended = h * attn                                     # (B, L, 256) f32

    # fc1: Linear(L*256, 512) over the torch (l, c) row-major flatten.
    # Instead of building a 3072-lane row, accumulate L small K=256 bf16 MXU
    # matmuls; each weight chunk is consumed as soon as its DMA lands, so the
    # int8->bf16 upcast and the matmuls overlap the remaining chunk DMAs.
    acc = jnp.zeros((bsz, H1), jnp.float32)
    for k in range(N_CHUNKS):
        copies[k].wait()
        for i in range(CHUNK_L):
            l = k * CHUNK_L + i
            # int8 -> f32 -> bf16 is exact for values in [-127, 127].
            w_l = wfc1_vmem[l].astype(jnp.float32).astype(jnp.bfloat16)
            acc = acc + jnp.dot(attended[:, l, :].astype(jnp.bfloat16), w_l,
                                preferred_element_type=jnp.float32)
    # per-output-column dequant scale, then bias + ReLU.
    f1 = jnp.maximum(acc * sfc1_ref[...] + bfc1_ref[...], 0.0)

    # TODO(synk): Dropout(0.5) layers are identity here (eval-mode semantics).
    f2 = jnp.dot(f1.astype(jnp.bfloat16), wfc2_ref[...],
                 preferred_element_type=jnp.float32) + bfc2_ref[...]
    f2 = jnp.maximum(f2, 0.0)
    # fc3 (128 -> 1) as a VPU multiply + lane reduce (no N=1 MXU matmul).
    out_ref[...] = (jnp.sum(f2 * wfc3_ref[...], axis=-1, keepdims=True)
                    + bfc3_ref[...])                        # (B, 1)


# -------------------------------- wrapper ------------------------------------

@jax.jit
def traffic_cnn_forward(x_ncl, params):
    # x_ncl: (B, CIN, L), like the PyTorch module input
    x = jnp.transpose(x_ncl, (0, 2, 1)).astype(jnp.float32)       # -> (B, L, CIN)
    inputs = (x,) + tuple(params)

    vmem = pl.BlockSpec(memory_space=pltpu.MemorySpace.VMEM)
    in_specs = [vmem] * len(inputs)
    # wfc1 (int8) stays in HBM; the kernel streams it with chunked manual
    # async copies that overlap the conv/attention compute and the fc1 matmuls.
    in_specs[_WFC1_ARG_IDX] = pl.BlockSpec(memory_space=pl.ANY)

    return pl.pallas_call(
        traffic_cnn_kernel,
        out_shape=jax.ShapeDtypeStruct((x.shape[0], 1), jnp.float32),
        in_specs=in_specs,
        out_specs=vmem,
        scratch_shapes=[
            pltpu.VMEM((L, C3, H1), jnp.int8),          # fc1 weight landing buffer
            pltpu.SemaphoreType.DMA((N_CHUNKS,)),       # one sem per DMA chunk
        ],
        compiler_params=pltpu.CompilerParams(
            vmem_limit_bytes=12 * 1024 * 1024),
        cost_estimate=pl.CostEstimate(
            flops=13_300_000, transcendentals=1_600, bytes_accessed=2_100_000),
    )(*inputs)


# --------------------------- deterministic params ----------------------------

def init_params(key):
    ks = iter(jax.random.split(key, 16))

    def uniform(shape, bound):
        return jax.random.uniform(next(ks), shape, jnp.float32, -bound, bound)

    # BatchNorm1d eval with default params: gamma=1, beta=0, mean=0, var=1.
    # The scale is folded into the conv weights; shift = scale * conv_bias.
    bn_scale = 1.0 / math.sqrt(1.0 + BN_EPS)

    def conv_folded(cin, cout):
        # torch Conv1d weight (cout, cin, 3) stored tap-major and concatenated
        # along the output dim: (cin, 3*cout) = [w_tap0 | w_tap1 | w_tap2],
        # with the BN scale pre-multiplied into the weights.
        bound = 1.0 / math.sqrt(cin * 3)
        taps = uniform((3, cin, cout), bound)
        bias = uniform((cout,), bound)
        w_cat = jnp.concatenate([taps[0], taps[1], taps[2]], axis=1) * bn_scale
        shift = (bn_scale * bias).reshape(1, cout)
        return w_cat, shift

    # conv1 (Cin == 1, VPU path, stays f32)
    b = 1.0 / math.sqrt(CIN * 3)
    w1 = uniform((3, CIN, C1), b) * bn_scale
    t1 = (bn_scale * uniform((C1,), b)).reshape(1, C1)

    w2, t2 = conv_folded(C1, C2)
    w2 = w2.astype(jnp.bfloat16)                          # (64, 384) bf16
    w3, t3 = conv_folded(C2, C3)
    w3 = w3.astype(jnp.bfloat16)                          # (128, 768) bf16

    b = 1.0 / math.sqrt(C3)
    wa1 = uniform((C3, H_ATT), b).astype(jnp.bfloat16)
    ba1 = uniform((1, H_ATT), b)
    b = 1.0 / math.sqrt(H_ATT)
    wa2 = uniform((1, H_ATT), b)                          # f32 row (VPU reduce)
    ba2 = uniform((1, 1), b)

    # fc1: torch flattens attended (B, L, C) row-major -> weight rows are in
    # (l, c) order, so the (L*C3, H1) matrix reshapes exactly to (L, C3, H1).
    # Stored int8 with a per-output-column f32 dequant scale (halves the HBM
    # bytes of the dominant DMA; MXU still runs bf16 with f32 accumulation).
    b = 1.0 / math.sqrt(L * C3)
    wfc1 = uniform((L * C3, H1), b).reshape(L, C3, H1)
    sfc1 = jnp.maximum(jnp.max(jnp.abs(wfc1), axis=(0, 1)) / 127.0, 1e-12)
    wfc1_q = jnp.clip(jnp.round(wfc1 / sfc1), -127, 127).astype(jnp.int8)
    sfc1 = sfc1.reshape(1, H1)
    bfc1 = uniform((1, H1), b)

    b = 1.0 / math.sqrt(H1)
    wfc2 = uniform((H1, H2), b).astype(jnp.bfloat16)
    bfc2 = uniform((1, H2), b)
    b = 1.0 / math.sqrt(H2)
    wfc3 = uniform((1, H2), b)                            # f32 row (VPU reduce)
    bfc3 = uniform((1, 1), b)

    return (w1, t1, w2, t2, w3, t3,
            wa1, ba1, wa2, ba2,
            wfc1_q, sfc1, bfc1, wfc2, bfc2, wfc3, bfc3)


# ------------------------------ pure-JAX reference ---------------------------

def reference_forward(x_ncl, params):
    (w1, t1, w2, t2, w3, t3, wa1, ba1, wa2, ba2,
     wfc1_q, sfc1, bfc1, wfc2, bfc2, wfc3, bfc3) = params
    x = jnp.transpose(x_ncl, (0, 2, 1)).astype(jnp.float32)

    def shifts(h):
        z = jnp.zeros_like(h[:, :1, :])
        return (jnp.concatenate([z, h[:, :-1, :]], axis=1),
                jnp.concatenate([h[:, 1:, :], z], axis=1))

    # conv1 (Cin == 1)
    xp, xn = shifts(x)
    h = xp * w1[0, 0] + x * w1[1, 0] + xn * w1[2, 0]
    h = jnp.maximum(h + t1, 0.0)

    def conv(h, w_cat_bf, t):
        # per-tap formulation (independent of the kernel's fused rewrite),
        # same bf16 matmul inputs as the kernel.
        cout = w_cat_bf.shape[-1] // 3
        w0, wm, w2_ = (w_cat_bf[:, :cout], w_cat_bf[:, cout:2 * cout],
                       w_cat_bf[:, 2 * cout:])
        hb = h.astype(jnp.bfloat16)
        xp, xn = shifts(hb)
        y = (jnp.einsum('blc,cd->bld', xp, w0, preferred_element_type=jnp.float32)
             + jnp.einsum('blc,cd->bld', hb, wm, preferred_element_type=jnp.float32)
             + jnp.einsum('blc,cd->bld', xn, w2_, preferred_element_type=jnp.float32))
        return jnp.maximum(y + t, 0.0)

    h = conv(h, w2, t2)
    h = conv(h, w3, t3)

    a1 = jnp.tanh(jnp.einsum('blc,cd->bld', h.astype(jnp.bfloat16), wa1,
                             preferred_element_type=jnp.float32) + ba1)
    logits = jnp.sum(a1 * wa2, axis=-1, keepdims=True) + ba2
    attn = jax.nn.softmax(logits, axis=1)
    attended = h * attn
    flat = attended.reshape(x.shape[0], L * C3)            # torch (l, c) flatten
    w_fc1 = wfc1_q.reshape(L * C3, H1).astype(jnp.bfloat16)
    f1 = jnp.maximum(jnp.dot(flat.astype(jnp.bfloat16), w_fc1,
                             preferred_element_type=jnp.float32) * sfc1 + bfc1, 0.0)
    f2 = jnp.maximum(jnp.dot(f1.astype(jnp.bfloat16), wfc2,
                             preferred_element_type=jnp.float32) + bfc2, 0.0)
    return jnp.sum(f2 * wfc3, axis=-1, keepdims=True) + bfc3


# ----------------------------------- main ------------------------------------

if __name__ == "__main__":
    key = jax.random.PRNGKey(0)
    pkey, xkey = jax.random.split(key)
    params = init_params(pkey)
    x = jax.random.normal(xkey, (B, CIN, L), jnp.float32)   # NCL, like PyTorch

    out = jax.block_until_ready(traffic_cnn_forward(x, params))
    assert out.shape == (B, 1), out.shape

    ref = reference_forward(x, params)
    # bf16/int8-stored weights on both sides; residual diff is MXU/accumulation
    # order rounding only.  (Numerics differ from the f32 PyTorch model by the
    # documented bf16/int8 weight storage.)
    if not jnp.allclose(out, ref, rtol=2e-2, atol=2e-2):
        raise AssertionError(f"kernel/reference mismatch:\n{out}\nvs\n{ref}")

    print("KERNEL_OK")
</pallas_src>

<mosaic_0001>
module attributes {stable_mosaic.version = 11 : i64} {
  func.func @traffic_cnn_kernel(%arg0: memref<2x12x1xf32, #tpu.memory_space<vmem>>, %arg1: memref<3x1x64xf32, #tpu.memory_space<vmem>>, %arg2: memref<1x64xf32, #tpu.memory_space<vmem>>, %arg3: memref<64x384xbf16, #tpu.memory_space<vmem>>, %arg4: memref<1x128xf32, #tpu.memory_space<vmem>>, %arg5: memref<128x768xbf16, #tpu.memory_space<vmem>>, %arg6: memref<1x256xf32, #tpu.memory_space<vmem>>, %arg7: memref<256x64xbf16, #tpu.memory_space<vmem>>, %arg8: memref<1x64xf32, #tpu.memory_space<vmem>>, %arg9: memref<1x64xf32, #tpu.memory_space<vmem>>, %arg10: memref<1x1xf32, #tpu.memory_space<vmem>>, %arg11: memref<12x256x512xi8, #tpu.memory_space<any>>, %arg12: memref<1x512xf32, #tpu.memory_space<vmem>>, %arg13: memref<1x512xf32, #tpu.memory_space<vmem>>, %arg14: memref<512x128xbf16, #tpu.memory_space<vmem>>, %arg15: memref<1x128xf32, #tpu.memory_space<vmem>>, %arg16: memref<1x128xf32, #tpu.memory_space<vmem>>, %arg17: memref<1x1xf32, #tpu.memory_space<vmem>>, %arg18: memref<2x1xf32, #tpu.memory_space<vmem>>, %arg19: memref<12x256x512xi8, #tpu.memory_space<vmem>>, %arg20: memref<4x!tpu.dma_semaphore, #tpu.memory_space<semaphore_mem>>) attributes {dimension_semantics = [], scalar_prefetch = 0 : i64, scratch_operands = 2 : i64, tpu.core_type = #tpu.core_type<tc>} {
    %c0_i32 = arith.constant 0 : i32
    %c0_i32_0 = arith.constant 0 : i32
    %c0_i32_1 = arith.constant 0 : i32
    %c0_i32_2 = arith.constant 0 : i32
    %0 = tpu.memref_slice %arg11[%c0_i32_0, %c0_i32_1, %c0_i32_2] : memref<12x256x512xi8, #tpu.memory_space<any>> -> memref<3x256x512xi8, #tpu.memory_space<any>>
    %c0_i32_3 = arith.constant 0 : i32
    %c0_i32_4 = arith.constant 0 : i32
    %c0_i32_5 = arith.constant 0 : i32
    %1 = tpu.memref_slice %arg19[%c0_i32_3, %c0_i32_4, %c0_i32_5] : memref<12x256x512xi8, #tpu.memory_space<vmem>> -> memref<3x256x512xi8, #tpu.memory_space<vmem>>
    %2 = tpu.memref_slice %arg20[%c0_i32] : memref<4x!tpu.dma_semaphore, #tpu.memory_space<semaphore_mem>> -> memref<1x!tpu.dma_semaphore, #tpu.memory_space<semaphore_mem>>
    %3 = tpu.memref_squeeze %2 : memref<1x!tpu.dma_semaphore, #tpu.memory_space<semaphore_mem>> -> memref<!tpu.dma_semaphore, #tpu.memory_space<semaphore_mem>>
    tpu.enqueue_dma source(%0 : memref<3x256x512xi8, #tpu.memory_space<any>>) target(%1 : memref<3x256x512xi8, #tpu.memory_space<vmem>>) target_semaphore(%3 : memref<!tpu.dma_semaphore, #tpu.memory_space<semaphore_mem>>)
    %c1_i32 = arith.constant 1 : i32
    %c3_i32 = arith.constant 3 : i32
    %c0_i32_6 = arith.constant 0 : i32
    %c0_i32_7 = arith.constant 0 : i32
    %4 = tpu.memref_slice %arg11[%c3_i32, %c0_i32_6, %c0_i32_7] : memref<12x256x512xi8, #tpu.memory_space<any>> -> memref<3x256x512xi8, #tpu.memory_space<any>>
    %c3_i32_8 = arith.constant 3 : i32
    %c0_i32_9 = arith.constant 0 : i32
    %c0_i32_10 = arith.constant 0 : i32
    %5 = tpu.memref_slice %arg19[%c3_i32_8, %c0_i32_9, %c0_i32_10] : memref<12x256x512xi8, #tpu.memory_space<vmem>> -> memref<3x256x512xi8, #tpu.memory_space<vmem>>
    %6 = tpu.memref_slice %arg20[%c1_i32] : memref<4x!tpu.dma_semaphore, #tpu.memory_space<semaphore_mem>> -> memref<1x!tpu.dma_semaphore, #tpu.memory_space<semaphore_mem>>
    %7 = tpu.memref_squeeze %6 : memref<1x!tpu.dma_semaphore, #tpu.memory_space<semaphore_mem>> -> memref<!tpu.dma_semaphore, #tpu.memory_space<semaphore_mem>>
    tpu.enqueue_dma source(%4 : memref<3x256x512xi8, #tpu.memory_space<any>>) target(%5 : memref<3x256x512xi8, #tpu.memory_space<vmem>>) target_semaphore(%7 : memref<!tpu.dma_semaphore, #tpu.memory_space<semaphore_mem>>)
    %c2_i32 = arith.constant 2 : i32
    %c6_i32 = arith.constant 6 : i32
    %c0_i32_11 = arith.constant 0 : i32
    %c0_i32_12 = arith.constant 0 : i32
    %8 = tpu.memref_slice %arg11[%c6_i32, %c0_i32_11, %c0_i32_12] : memref<12x256x512xi8, #tpu.memory_space<any>> -> memref<3x256x512xi8, #tpu.memory_space<any>>
    %c6_i32_13 = arith.constant 6 : i32
    %c0_i32_14 = arith.constant 0 : i32
    %c0_i32_15 = arith.constant 0 : i32
    %9 = tpu.memref_slice %arg19[%c6_i32_13, %c0_i32_14, %c0_i32_15] : memref<12x256x512xi8, #tpu.memory_space<vmem>> -> memref<3x256x512xi8, #tpu.memory_space<vmem>>
    %10 = tpu.memref_slice %arg20[%c2_i32] : memref<4x!tpu.dma_semaphore, #tpu.memory_space<semaphore_mem>> -> memref<1x!tpu.dma_semaphore, #tpu.memory_space<semaphore_mem>>
    %11 = tpu.memref_squeeze %10 : memref<1x!tpu.dma_semaphore, #tpu.memory_space<semaphore_mem>> -> memref<!tpu.dma_semaphore, #tpu.memory_space<semaphore_mem>>
    tpu.enqueue_dma source(%8 : memref<3x256x512xi8, #tpu.memory_space<any>>) target(%9 : memref<3x256x512xi8, #tpu.memory_space<vmem>>) target_semaphore(%11 : memref<!tpu.dma_semaphore, #tpu.memory_space<semaphore_mem>>)
    %c3_i32_16 = arith.constant 3 : i32
    %c9_i32 = arith.constant 9 : i32
    %c0_i32_17 = arith.constant 0 : i32
    %c0_i32_18 = arith.constant 0 : i32
    %12 = tpu.memref_slice %arg11[%c9_i32, %c0_i32_17, %c0_i32_18] : memref<12x256x512xi8, #tpu.memory_space<any>> -> memref<3x256x512xi8, #tpu.memory_space<any>>
    %c9_i32_19 = arith.constant 9 : i32
    %c0_i32_20 = arith.constant 0 : i32
    %c0_i32_21 = arith.constant 0 : i32
    %13 = tpu.memref_slice %arg19[%c9_i32_19, %c0_i32_20, %c0_i32_21] : memref<12x256x512xi8, #tpu.memory_space<vmem>> -> memref<3x256x512xi8, #tpu.memory_space<vmem>>
    %14 = tpu.memref_slice %arg20[%c3_i32_16] : memref<4x!tpu.dma_semaphore, #tpu.memory_space<semaphore_mem>> -> memref<1x!tpu.dma_semaphore, #tpu.memory_space<semaphore_mem>>
    %15 = tpu.memref_squeeze %14 : memref<1x!tpu.dma_semaphore, #tpu.memory_space<semaphore_mem>> -> memref<!tpu.dma_semaphore, #tpu.memory_space<semaphore_mem>>
    tpu.enqueue_dma source(%12 : memref<3x256x512xi8, #tpu.memory_space<any>>) target(%13 : memref<3x256x512xi8, #tpu.memory_space<vmem>>) target_semaphore(%15 : memref<!tpu.dma_semaphore, #tpu.memory_space<semaphore_mem>>)
    %c0 = arith.constant 0 : index
    %c0_22 = arith.constant 0 : index
    %c0_23 = arith.constant 0 : index
    %16 = vector.load %arg0[%c0, %c0_22, %c0_23] : memref<2x12x1xf32, #tpu.memory_space<vmem>>, vector<2x12x1xf32>
    %c0_24 = arith.constant 0 : index
    %c0_25 = arith.constant 0 : index
    %c0_26 = arith.constant 0 : index
    %17 = vector.load %arg1[%c0_24, %c0_25, %c0_26] : memref<3x1x64xf32, #tpu.memory_space<vmem>>, vector<3x1x64xf32>
    %c0_27 = arith.constant 0 : index
    %c0_28 = arith.constant 0 : index
    %18 = vector.load %arg2[%c0_27, %c0_28] : memref<1x64xf32, #tpu.memory_space<vmem>>, vector<1x64xf32>
    %cst = arith.constant 0.000000e+00 : f32
    %19 = vector.broadcast %cst : f32 to vector<2x1x1xf32>
    %20 = vector.extract_strided_slice %16 {offsets = [0, 0, 0], sizes = [2, 11, 1], strides = [1, 1, 1]} : vector<2x12x1xf32> to vector<2x11x1xf32>
    %21 = tpu.concatenate %19, %20 in 1 : vector<2x1x1xf32>, vector<2x11x1xf32> -> vector<2x12x1xf32>
    %22 = vector.extract_strided_slice %17 {offsets = [0, 0, 0], sizes = [1, 1, 64], strides = [1, 1, 1]} : vector<3x1x64xf32> to vector<1x1x64xf32>
    %23 = vector.shape_cast %22 : vector<1x1x64xf32> to vector<64xf32>
    %24 = vector.shape_cast %23 : vector<64xf32> to vector<1x1x64xf32>
    %25 = vector.broadcast %21 : vector<2x12x1xf32> to vector<2x12x64xf32>
    %26 = vector.broadcast %24 : vector<1x1x64xf32> to vector<2x12x64xf32>
    %27 = arith.mulf %25, %26 : vector<2x12x64xf32>
    %28 = vector.extract_strided_slice %17 {offsets = [1, 0, 0], sizes = [1, 1, 64], strides = [1, 1, 1]} : vector<3x1x64xf32> to vector<1x1x64xf32>
    %29 = vector.shape_cast %28 : vector<1x1x64xf32> to vector<64xf32>
    %30 = vector.shape_cast %29 : vector<64xf32> to vector<1x1x64xf32>
    %31 = vector.broadcast %16 : vector<2x12x1xf32> to vector<2x12x64xf32>
    %32 = vector.broadcast %30 : vector<1x1x64xf32> to vector<2x12x64xf32>
    %33 = arith.mulf %31, %32 : vector<2x12x64xf32>
    %34 = arith.addf %27, %33 : vector<2x12x64xf32>
    %cst_29 = arith.constant 0.000000e+00 : f32
    %35 = vector.broadcast %cst_29 : f32 to vector<2x1x1xf32>
    %36 = vector.extract_strided_slice %16 {offsets = [0, 1, 0], sizes = [2, 11, 1], strides = [1, 1, 1]} : vector<2x12x1xf32> to vector<2x11x1xf32>
    %37 = tpu.concatenate %36, %35 in 1 : vector<2x11x1xf32>, vector<2x1x1xf32> -> vector<2x12x1xf32>
    %38 = vector.extract_strided_slice %17 {offsets = [2, 0, 0], sizes = [1, 1, 64], strides = [1, 1, 1]} : vector<3x1x64xf32> to vector<1x1x64xf32>
    %39 = vector.shape_cast %38 : vector<1x1x64xf32> to vector<64xf32>
    %40 = vector.shape_cast %39 : vector<64xf32> to vector<1x1x64xf32>
    %41 = vector.broadcast %37 : vector<2x12x1xf32> to vector<2x12x64xf32>
    %42 = vector.broadcast %40 : vector<1x1x64xf32> to vector<2x12x64xf32>
    %43 = arith.mulf %41, %42 : vector<2x12x64xf32>
    %44 = arith.addf %34, %43 : vector<2x12x64xf32>
    %45 = vector.shape_cast %18 : vector<1x64xf32> to vector<1x1x64xf32>
    %46 = vector.broadcast %45 : vector<1x1x64xf32> to vector<2x12x64xf32>
    %47 = arith.addf %44, %46 : vector<2x12x64xf32>
    %cst_30 = arith.constant 0.000000e+00 : f32
    %48 = vector.broadcast %cst_30 : f32 to vector<2x12x64xf32>
    %49 = arith.maximumf %47, %48 : vector<2x12x64xf32>
    %c0_31 = arith.constant 0 : index
    %c0_32 = arith.constant 0 : index
    %50 = vector.load %arg3[%c0_31, %c0_32] : memref<64x384xbf16, #tpu.memory_space<vmem>>, vector<64x384xbf16>
    %c0_33 = arith.constant 0 : index
    %c0_34 = arith.constant 0 : index
    %51 = vector.load %arg4[%c0_33, %c0_34] : memref<1x128xf32, #tpu.memory_space<vmem>>, vector<1x128xf32>
    %52 = arith.truncf %49 : vector<2x12x64xf32> to vector<2x12x64xbf16>
    "tpu.trace_start"() <{level = 10 : i32, message = "blc,cd->bld"}> : () -> ()
    %cst_35 = arith.constant dense<0.000000e+00> : vector<2x12x384xf32>
    %53 = tpu.matmul %52, %50, %cst_35 {dimension_numbers = #tpu.dot_dimension_numbers<[2], [0], [0, 1], [1], [0, 0, 0, 1, 1, 1], [], []>} : vector<2x12x64xbf16>, vector<64x384xbf16>, vector<2x12x384xf32> -> vector<2x12x384xf32>
    "tpu.trace_stop"() : () -> ()
    %54 = vector.extract_strided_slice %53 {offsets = [0, 0, 0], sizes = [2, 12, 128], strides = [1, 1, 1]} : vector<2x12x384xf32> to vector<2x12x128xf32>
    %cst_36 = arith.constant 0.000000e+00 : f32
    %55 = vector.broadcast %cst_36 : f32 to vector<2x1x128xf32>
    %56 = vector.extract_strided_slice %54 {offsets = [0, 0, 0], sizes = [2, 11, 128], strides = [1, 1, 1]} : vector<2x12x128xf32> to vector<2x11x128xf32>
    %57 = tpu.concatenate %55, %56 in 1 : vector<2x1x128xf32>, vector<2x11x128xf32> -> vector<2x12x128xf32>
    %58 = vector.extract_strided_slice %53 {offsets = [0, 0, 128], sizes = [2, 12, 128], strides = [1, 1, 1]} : vector<2x12x384xf32> to vector<2x12x128xf32>
    %59 = arith.addf %57, %58 : vector<2x12x128xf32>
    %60 = vector.extract_strided_slice %53 {offsets = [0, 0, 256], sizes = [2, 12, 128], strides = [1, 1, 1]} : vector<2x12x384xf32> to vector<2x12x128xf32>
    %cst_37 = arith.constant 0.000000e+00 : f32
    %61 = vector.broadcast %cst_37 : f32 to vector<2x1x128xf32>
    %62 = vector.extract_strided_slice %60 {offsets = [0, 1, 0], sizes = [2, 11, 128], strides = [1, 1, 1]} : vector<2x12x128xf32> to vector<2x11x128xf32>
    %63 = tpu.concatenate %62, %61 in 1 : vector<2x11x128xf32>, vector<2x1x128xf32> -> vector<2x12x128xf32>
    %64 = arith.addf %59, %63 : vector<2x12x128xf32>
    %65 = vector.shape_cast %51 : vector<1x128xf32> to vector<1x1x128xf32>
    %66 = vector.broadcast %65 : vector<1x1x128xf32> to vector<2x12x128xf32>
    %67 = arith.addf %64, %66 : vector<2x12x128xf32>
    %cst_38 = arith.constant 0.000000e+00 : f32
    %68 = vector.broadcast %cst_38 : f32 to vector<2x12x128xf32>
    %69 = arith.maximumf %67, %68 : vector<2x12x128xf32>
    %c0_39 = arith.constant 0 : index
    %c0_40 = arith.constant 0 : index
    %70 = vector.load %arg5[%c0_39, %c0_40] : memref<128x768xbf16, #tpu.memory_space<vmem>>, vector<128x768xbf16>
    %c0_41 = arith.constant 0 : index
    %c0_42 = arith.constant 0 : index
    %71 = vector.load %arg6[%c0_41, %c0_42] : memref<1x256xf32, #tpu.memory_space<vmem>>, vector<1x256xf32>
    %72 = arith.truncf %69 : vector<2x12x128xf32> to vector<2x12x128xbf16>
    "tpu.trace_start"() <{level = 10 : i32, message = "blc,cd->bld"}> : () -> ()
    %cst_43 = arith.constant dense<0.000000e+00> : vector<2x12x768xf32>
    %73 = tpu.matmul %72, %70, %cst_43 {dimension_numbers = #tpu.dot_dimension_numbers<[2], [0], [0, 1], [1], [0, 0, 0, 1, 1, 1], [], []>} : vector<2x12x128xbf16>, vector<128x768xbf16>, vector<2x12x768xf32> -> vector<2x12x768xf32>
    "tpu.trace_stop"() : () -> ()
    %74 = vector.extract_strided_slice %73 {offsets = [0, 0, 0], sizes = [2, 12, 256], strides = [1, 1, 1]} : vector<2x12x768xf32> to vector<2x12x256xf32>
    %cst_44 = arith.constant 0.000000e+00 : f32
    %75 = vector.broadcast %cst_44 : f32 to vector<2x1x256xf32>
    %76 = vector.extract_strided_slice %74 {offsets = [0, 0, 0], sizes = [2, 11, 256], strides = [1, 1, 1]} : vector<2x12x256xf32> to vector<2x11x256xf32>
    %77 = tpu.concatenate %75, %76 in 1 : vector<2x1x256xf32>, vector<2x11x256xf32> -> vector<2x12x256xf32>
    %78 = vector.extract_strided_slice %73 {offsets = [0, 0, 256], sizes = [2, 12, 256], strides = [1, 1, 1]} : vector<2x12x768xf32> to vector<2x12x256xf32>
    %79 = arith.addf %77, %78 : vector<2x12x256xf32>
    %80 = vector.extract_strided_slice %73 {offsets = [0, 0, 512], sizes = [2, 12, 256], strides = [1, 1, 1]} : vector<2x12x768xf32> to vector<2x12x256xf32>
    %cst_45 = arith.constant 0.000000e+00 : f32
    %81 = vector.broadcast %cst_45 : f32 to vector<2x1x256xf32>
    %82 = vector.extract_strided_slice %80 {offsets = [0, 1, 0], sizes = [2, 11, 256], strides = [1, 1, 1]} : vector<2x12x256xf32> to vector<2x11x256xf32>
    %83 = tpu.concatenate %82, %81 in 1 : vector<2x11x256xf32>, vector<2x1x256xf32> -> vector<2x12x256xf32>
    %84 = arith.addf %79, %83 : vector<2x12x256xf32>
    %85 = vector.shape_cast %71 : vector<1x256xf32> to vector<1x1x256xf32>
    %86 = vector.broadcast %85 : vector<1x1x256xf32> to vector<2x12x256xf32>
    %87 = arith.addf %84, %86 : vector<2x12x256xf32>
    %cst_46 = arith.constant 0.000000e+00 : f32
    %88 = vector.broadcast %cst_46 : f32 to vector<2x12x256xf32>
    %89 = arith.maximumf %87, %88 : vector<2x12x256xf32>
    %90 = arith.truncf %89 : vector<2x12x256xf32> to vector<2x12x256xbf16>
    %c0_47 = arith.constant 0 : index
    %c0_48 = arith.constant 0 : index
    %91 = vector.load %arg7[%c0_47, %c0_48] : memref<256x64xbf16, #tpu.memory_space<vmem>>, vector<256x64xbf16>
    "tpu.trace_start"() <{level = 10 : i32, message = "blc,cd->bld"}> : () -> ()
    %cst_49 = arith.constant dense<0.000000e+00> : vector<2x12x64xf32>
    %92 = tpu.matmul %90, %91, %cst_49 {dimension_numbers = #tpu.dot_dimension_numbers<[2], [0], [0, 1], [1], [0, 0, 0, 1, 1, 1], [], []>} : vector<2x12x256xbf16>, vector<256x64xbf16>, vector<2x12x64xf32> -> vector<2x12x64xf32>
    "tpu.trace_stop"() : () -> ()
    %c0_50 = arith.constant 0 : index
    %c0_51 = arith.constant 0 : index
    %93 = vector.load %arg8[%c0_50, %c0_51] : memref<1x64xf32, #tpu.memory_space<vmem>>, vector<1x64xf32>
    %94 = vector.shape_cast %93 : vector<1x64xf32> to vector<1x1x64xf32>
    %95 = vector.broadcast %94 : vector<1x1x64xf32> to vector<2x12x64xf32>
    %96 = arith.addf %92, %95 : vector<2x12x64xf32>
    %97 = math.tanh %96 : vector<2x12x64xf32>
    %c0_52 = arith.constant 0 : index
    %c0_53 = arith.constant 0 : index
    %98 = vector.load %arg9[%c0_52, %c0_53] : memref<1x64xf32, #tpu.memory_space<vmem>>, vector<1x64xf32>
    %99 = vector.shape_cast %98 : vector<1x64xf32> to vector<1x1x64xf32>
    %100 = vector.broadcast %99 : vector<1x1x64xf32> to vector<2x12x64xf32>
    %101 = arith.mulf %97, %100 : vector<2x12x64xf32>
    %cst_54 = arith.constant dense<0.000000e+00> : vector<2x12xf32>
    %102 = vector.multi_reduction <add>, %101, %cst_54 [2] : vector<2x12x64xf32> to vector<2x12xf32>
    %103 = vector.shape_cast %102 : vector<2x12xf32> to vector<2x12x1xf32>
    %c0_55 = arith.constant 0 : index
    %c0_56 = arith.constant 0 : index
    %104 = vector.load %arg10[%c0_55, %c0_56] : memref<1x1xf32, #tpu.memory_space<vmem>>, vector<1x1xf32>
    %105 = vector.shape_cast %104 : vector<1x1xf32> to vector<1x1x1xf32>
    %106 = vector.broadcast %105 : vector<1x1x1xf32> to vector<2x12x1xf32>
    %107 = arith.addf %103, %106 : vector<2x12x1xf32>
    %cst_57 = arith.constant dense<0xFF800000> : vector<2x1xf32>
    %108 = vector.multi_reduction <maximumf>, %107, %cst_57 [1] : vector<2x12x1xf32> to vector<2x1xf32>
    %109 = vector.shape_cast %108 : vector<2x1xf32> to vector<2x1x1xf32>
    %110 = vector.broadcast %109 : vector<2x1x1xf32> to vector<2x12x1xf32>
    %111 = arith.subf %107, %110 : vector<2x12x1xf32>
    %112 = math.exp %111 : vector<2x12x1xf32>
    %cst_58 = arith.constant dense<0.000000e+00> : vector<2x1xf32>
    %113 = vector.multi_reduction <add>, %112, %cst_58 [1] : vector<2x12x1xf32> to vector<2x1xf32>
    %114 = vector.shape_cast %113 : vector<2x1xf32> to vector<2x1x1xf32>
    %115 = vector.broadcast %114 : vector<2x1x1xf32> to vector<2x12x1xf32>
    %116 = arith.divf %112, %115 : vector<2x12x1xf32>
    %117 = vector.broadcast %116 : vector<2x12x1xf32> to vector<2x12x256xf32>
    %118 = arith.mulf %89, %117 : vector<2x12x256xf32>
    %cst_59 = arith.constant 0.000000e+00 : f32
    %119 = vector.broadcast %cst_59 : f32 to vector<2x512xf32>
    %c0_i32_60 = arith.constant 0 : i32
    %c0_i32_61 = arith.constant 0 : i32
    %c0_i32_62 = arith.constant 0 : i32
    %c0_i32_63 = arith.constant 0 : i32
    %120 = tpu.memref_slice %arg11[%c0_i32_61, %c0_i32_62, %c0_i32_63] : memref<12x256x512xi8, #tpu.memory_space<any>> -> memref<3x256x512xi8, #tpu.memory_space<any>>
    %c0_i32_64 = arith.constant 0 : i32
    %c0_i32_65 = arith.constant 0 : i32
    %c0_i32_66 = arith.constant 0 : i32
    %121 = tpu.memref_slice %arg19[%c0_i32_64, %c0_i32_65, %c0_i32_66] : memref<12x256x512xi8, #tpu.memory_space<vmem>> -> memref<3x256x512xi8, #tpu.memory_space<vmem>>
    %122 = tpu.memref_slice %arg20[%c0_i32_60] : memref<4x!tpu.dma_semaphore, #tpu.memory_space<semaphore_mem>> -> memref<1x!tpu.dma_semaphore, #tpu.memory_space<semaphore_mem>>
    %123 = tpu.memref_squeeze %122 : memref<1x!tpu.dma_semaphore, #tpu.memory_space<semaphore_mem>> -> memref<!tpu.dma_semaphore, #tpu.memory_space<semaphore_mem>>
    tpu.wait_dma2 semaphore(%123 : memref<!tpu.dma_semaphore, #tpu.memory_space<semaphore_mem>>) src(%120 : memref<3x256x512xi8, #tpu.memory_space<any>>) dst(%121 : memref<3x256x512xi8, #tpu.memory_space<vmem>>)
    %c0_67 = arith.constant 0 : index
    %c0_68 = arith.constant 0 : index
    %c0_69 = arith.constant 0 : index
    %124 = vector.load %arg19[%c0_67, %c0_68, %c0_69] : memref<12x256x512xi8, #tpu.memory_space<vmem>>, vector<1x256x512xi8>
    %125 = vector.shape_cast %124 : vector<1x256x512xi8> to vector<256x512xi8>
    %126 = arith.sitofp %125 : vector<256x512xi8> to vector<256x512xf32>
    %127 = arith.truncf %126 : vector<256x512xf32> to vector<256x512xbf16>
    %128 = vector.extract_strided_slice %118 {offsets = [0, 0, 0], sizes = [2, 1, 256], strides = [1, 1, 1]} : vector<2x12x256xf32> to vector<2x1x256xf32>
    %129 = vector.shape_cast %128 : vector<2x1x256xf32> to vector<2x256xf32>
    %130 = arith.truncf %129 : vector<2x256xf32> to vector<2x256xbf16>
    %cst_70 = arith.constant dense<0.000000e+00> : vector<2x512xf32>
    %131 = tpu.matmul %130, %127, %cst_70 {dimension_numbers = #tpu.dot_dimension_numbers<[1], [0], [0], [1], [0, 0, 1, 1], [], []>} : vector<2x256xbf16>, vector<256x512xbf16>, vector<2x512xf32> -> vector<2x512xf32>
    %132 = arith.addf %119, %131 : vector<2x512xf32>
    %c1 = arith.constant 1 : index
    %c0_71 = arith.constant 0 : index
    %c0_72 = arith.constant 0 : index
    %133 = vector.load %arg19[%c1, %c0_71, %c0_72] : memref<12x256x512xi8, #tpu.memory_space<vmem>>, vector<1x256x512xi8>
    %134 = vector.shape_cast %133 : vector<1x256x512xi8> to vector<256x512xi8>
    %135 = arith.sitofp %134 : vector<256x512xi8> to vector<256x512xf32>
    %136 = arith.truncf %135 : vector<256x512xf32> to vector<256x512xbf16>
    %137 = vector.extract_strided_slice %118 {offsets = [0, 1, 0], sizes = [2, 1, 256], strides = [1, 1, 1]} : vector<2x12x256xf32> to vector<2x1x256xf32>
    %138 = vector.shape_cast %137 : vector<2x1x256xf32> to vector<2x256xf32>
    %139 = arith.truncf %138 : vector<2x256xf32> to vector<2x256xbf16>
    %cst_73 = arith.constant dense<0.000000e+00> : vector<2x512xf32>
    %140 = tpu.matmul %139, %136, %cst_73 {dimension_numbers = #tpu.dot_dimension_numbers<[1], [0], [0], [1], [0, 0, 1, 1], [], []>} : vector<2x256xbf16>, vector<256x512xbf16>, vector<2x512xf32> -> vector<2x512xf32>
    %141 = arith.addf %132, %140 : vector<2x512xf32>
    %c2 = arith.constant 2 : index
    %c0_74 = arith.constant 0 : index
    %c0_75 = arith.constant 0 : index
    %142 = vector.load %arg19[%c2, %c0_74, %c0_75] : memref<12x256x512xi8, #tpu.memory_space<vmem>>, vector<1x256x512xi8>
    %143 = vector.shape_cast %142 : vector<1x256x512xi8> to vector<256x512xi8>
    %144 = arith.sitofp %143 : vector<256x512xi8> to vector<256x512xf32>
    %145 = arith.truncf %144 : vector<256x512xf32> to vector<256x512xbf16>
    %146 = vector.extract_strided_slice %118 {offsets = [0, 2, 0], sizes = [2, 1, 256], strides = [1, 1, 1]} : vector<2x12x256xf32> to vector<2x1x256xf32>
    %147 = vector.shape_cast %146 : vector<2x1x256xf32> to vector<2x256xf32>
    %148 = arith.truncf %147 : vector<2x256xf32> to vector<2x256xbf16>
    %cst_76 = arith.constant dense<0.000000e+00> : vector<2x512xf32>
    %149 = tpu.matmul %148, %145, %cst_76 {dimension_numbers = #tpu.dot_dimension_numbers<[1], [0], [0], [1], [0, 0, 1, 1], [], []>} : vector<2x256xbf16>, vector<256x512xbf16>, vector<2x512xf32> -> vector<2x512xf32>
    %150 = arith.addf %141, %149 : vector<2x512xf32>
    %c1_i32_77 = arith.constant 1 : i32
    %c3_i32_78 = arith.constant 3 : i32
    %c0_i32_79 = arith.constant 0 : i32
    %c0_i32_80 = arith.constant 0 : i32
    %151 = tpu.memref_slice %arg11[%c3_i32_78, %c0_i32_79, %c0_i32_80] : memref<12x256x512xi8, #tpu.memory_space<any>> -> memref<3x256x512xi8, #tpu.memory_space<any>>
    %c3_i32_81 = arith.constant 3 : i32
    %c0_i32_82 = arith.constant 0 : i32
    %c0_i32_83 = arith.constant 0 : i32
    %152 = tpu.memref_slice %arg19[%c3_i32_81, %c0_i32_82, %c0_i32_83] : memref<12x256x512xi8, #tpu.memory_space<vmem>> -> memref<3x256x512xi8, #tpu.memory_space<vmem>>
    %153 = tpu.memref_slice %arg20[%c1_i32_77] : memref<4x!tpu.dma_semaphore, #tpu.memory_space<semaphore_mem>> -> memref<1x!tpu.dma_semaphore, #tpu.memory_space<semaphore_mem>>
    %154 = tpu.memref_squeeze %153 : memref<1x!tpu.dma_semaphore, #tpu.memory_space<semaphore_mem>> -> memref<!tpu.dma_semaphore, #tpu.memory_space<semaphore_mem>>
    tpu.wait_dma2 semaphore(%154 : memref<!tpu.dma_semaphore, #tpu.memory_space<semaphore_mem>>) src(%151 : memref<3x256x512xi8, #tpu.memory_space<any>>) dst(%152 : memref<3x256x512xi8, #tpu.memory_space<vmem>>)
    %c3 = arith.constant 3 : index
    %c0_84 = arith.constant 0 : index
    %c0_85 = arith.constant 0 : index
    %155 = vector.load %arg19[%c3, %c0_84, %c0_85] : memref<12x256x512xi8, #tpu.memory_space<vmem>>, vector<1x256x512xi8>
    %156 = vector.shape_cast %155 : vector<1x256x512xi8> to vector<256x512xi8>
    %157 = arith.sitofp %156 : vector<256x512xi8> to vector<256x512xf32>
    %158 = arith.truncf %157 : vector<256x512xf32> to vector<256x512xbf16>
    %159 = vector.extract_strided_slice %118 {offsets = [0, 3, 0], sizes = [2, 1, 256], strides = [1, 1, 1]} : vector<2x12x256xf32> to vector<2x1x256xf32>
    %160 = vector.shape_cast %159 : vector<2x1x256xf32> to vector<2x256xf32>
    %161 = arith.truncf %160 : vector<2x256xf32> to vector<2x256xbf16>
    %cst_86 = arith.constant dense<0.000000e+00> : vector<2x512xf32>
    %162 = tpu.matmul %161, %158, %cst_86 {dimension_numbers = #tpu.dot_dimension_numbers<[1], [0], [0], [1], [0, 0, 1, 1], [], []>} : vector<2x256xbf16>, vector<256x512xbf16>, vector<2x512xf32> -> vector<2x512xf32>
    %163 = arith.addf %150, %162 : vector<2x512xf32>
    %c4 = arith.constant 4 : index
    %c0_87 = arith.constant 0 : index
    %c0_88 = arith.constant 0 : index
    %164 = vector.load %arg19[%c4, %c0_87, %c0_88] : memref<12x256x512xi8, #tpu.memory_space<vmem>>, vector<1x256x512xi8>
    %165 = vector.shape_cast %164 : vector<1x256x512xi8> to vector<256x512xi8>
    %166 = arith.sitofp %165 : vector<256x512xi8> to vector<256x512xf32>
    %167 = arith.truncf %166 : vector<256x512xf32> to vector<256x512xbf16>
    %168 = vector.extract_strided_slice %118 {offsets = [0, 4, 0], sizes = [2, 1, 256], strides = [1, 1, 1]} : vector<2x12x256xf32> to vector<2x1x256xf32>
    %169 = vector.shape_cast %168 : vector<2x1x256xf32> to vector<2x256xf32>
    %170 = arith.truncf %169 : vector<2x256xf32> to vector<2x256xbf16>
    %cst_89 = arith.constant dense<0.000000e+00> : vector<2x512xf32>
    %171 = tpu.matmul %170, %167, %cst_89 {dimension_numbers = #tpu.dot_dimension_numbers<[1], [0], [0], [1], [0, 0, 1, 1], [], []>} : vector<2x256xbf16>, vector<256x512xbf16>, vector<2x512xf32> -> vector<2x512xf32>
    %172 = arith.addf %163, %171 : vector<2x512xf32>
    %c5 = arith.constant 5 : index
    %c0_90 = arith.constant 0 : index
    %c0_91 = arith.constant 0 : index
    %173 = vector.load %arg19[%c5, %c0_90, %c0_91] : memref<12x256x512xi8, #tpu.memory_space<vmem>>, vector<1x256x512xi8>
    %174 = vector.shape_cast %173 : vector<1x256x512xi8> to vector<256x512xi8>
    %175 = arith.sitofp %174 : vector<256x512xi8> to vector<256x512xf32>
    %176 = arith.truncf %175 : vector<256x512xf32> to vector<256x512xbf16>
    %177 = vector.extract_strided_slice %118 {offsets = [0, 5, 0], sizes = [2, 1, 256], strides = [1, 1, 1]} : vector<2x12x256xf32> to vector<2x1x256xf32>
    %178 = vector.shape_cast %177 : vector<2x1x256xf32> to vector<2x256xf32>
    %179 = arith.truncf %178 : vector<2x256xf32> to vector<2x256xbf16>
    %cst_92 = arith.constant dense<0.000000e+00> : vector<2x512xf32>
    %180 = tpu.matmul %179, %176, %cst_92 {dimension_numbers = #tpu.dot_dimension_numbers<[1], [0], [0], [1], [0, 0, 1, 1], [], []>} : vector<2x256xbf16>, vector<256x512xbf16>, vector<2x512xf32> -> vector<2x512xf32>
    %181 = arith.addf %172, %180 : vector<2x512xf32>
    %c2_i32_93 = arith.constant 2 : i32
    %c6_i32_94 = arith.constant 6 : i32
    %c0_i32_95 = arith.constant 0 : i32
    %c0_i32_96 = arith.constant 0 : i32
    %182 = tpu.memref_slice %arg11[%c6_i32_94, %c0_i32_95, %c0_i32_96] : memref<12x256x512xi8, #tpu.memory_space<any>> -> memref<3x256x512xi8, #tpu.memory_space<any>>
    %c6_i32_97 = arith.constant 6 : i32
    %c0_i32_98 = arith.constant 0 : i32
    %c0_i32_99 = arith.constant 0 : i32
    %183 = tpu.memref_slice %arg19[%c6_i32_97, %c0_i32_98, %c0_i32_99] : memref<12x256x512xi8, #tpu.memory_space<vmem>> -> memref<3x256x512xi8, #tpu.memory_space<vmem>>
    %184 = tpu.memref_slice %arg20[%c2_i32_93] : memref<4x!tpu.dma_semaphore, #tpu.memory_space<semaphore_mem>> -> memref<1x!tpu.dma_semaphore, #tpu.memory_space<semaphore_mem>>
    %185 = tpu.memref_squeeze %184 : memref<1x!tpu.dma_semaphore, #tpu.memory_space<semaphore_mem>> -> memref<!tpu.dma_semaphore, #tpu.memory_space<semaphore_mem>>
    tpu.wait_dma2 semaphore(%185 : memref<!tpu.dma_semaphore, #tpu.memory_space<semaphore_mem>>) src(%182 : memref<3x256x512xi8, #tpu.memory_space<any>>) dst(%183 : memref<3x256x512xi8, #tpu.memory_space<vmem>>)
    %c6 = arith.constant 6 : index
    %c0_100 = arith.constant 0 : index
    %c0_101 = arith.constant 0 : index
    %186 = vector.load %arg19[%c6, %c0_100, %c0_101] : memref<12x256x512xi8, #tpu.memory_space<vmem>>, vector<1x256x512xi8>
    %187 = vector.shape_cast %186 : vector<1x256x512xi8> to vector<256x512xi8>
    %188 = arith.sitofp %187 : vector<256x512xi8> to vector<256x512xf32>
    %189 = arith.truncf %188 : vector<256x512xf32> to vector<256x512xbf16>
    %190 = vector.extract_strided_slice %118 {offsets = [0, 6, 0], sizes = [2, 1, 256], strides = [1, 1, 1]} : vector<2x12x256xf32> to vector<2x1x256xf32>
    %191 = vector.shape_cast %190 : vector<2x1x256xf32> to vector<2x256xf32>
    %192 = arith.truncf %191 : vector<2x256xf32> to vector<2x256xbf16>
    %cst_102 = arith.constant dense<0.000000e+00> : vector<2x512xf32>
    %193 = tpu.matmul %192, %189, %cst_102 {dimension_numbers = #tpu.dot_dimension_numbers<[1], [0], [0], [1], [0, 0, 1, 1], [], []>} : vector<2x256xbf16>, vector<256x512xbf16>, vector<2x512xf32> -> vector<2x512xf32>
    %194 = arith.addf %181, %193 : vector<2x512xf32>
    %c7 = arith.constant 7 : index
    %c0_103 = arith.constant 0 : index
    %c0_104 = arith.constant 0 : index
    %195 = vector.load %arg19[%c7, %c0_103, %c0_104] : memref<12x256x512xi8, #tpu.memory_space<vmem>>, vector<1x256x512xi8>
    %196 = vector.shape_cast %195 : vector<1x256x512xi8> to vector<256x512xi8>
    %197 = arith.sitofp %196 : vector<256x512xi8> to vector<256x512xf32>
    %198 = arith.truncf %197 : vector<256x512xf32> to vector<256x512xbf16>
    %199 = vector.extract_strided_slice %118 {offsets = [0, 7, 0], sizes = [2, 1, 256], strides = [1, 1, 1]} : vector<2x12x256xf32> to vector<2x1x256xf32>
    %200 = vector.shape_cast %199 : vector<2x1x256xf32> to vector<2x256xf32>
    %201 = arith.truncf %200 : vector<2x256xf32> to vector<2x256xbf16>
    %cst_105 = arith.constant dense<0.000000e+00> : vector<2x512xf32>
    %202 = tpu.matmul %201, %198, %cst_105 {dimension_numbers = #tpu.dot_dimension_numbers<[1], [0], [0], [1], [0, 0, 1, 1], [], []>} : vector<2x256xbf16>, vector<256x512xbf16>, vector<2x512xf32> -> vector<2x512xf32>
    %203 = arith.addf %194, %202 : vector<2x512xf32>
    %c8 = arith.constant 8 : index
    %c0_106 = arith.constant 0 : index
    %c0_107 = arith.constant 0 : index
    %204 = vector.load %arg19[%c8, %c0_106, %c0_107] : memref<12x256x512xi8, #tpu.memory_space<vmem>>, vector<1x256x512xi8>
    %205 = vector.shape_cast %204 : vector<1x256x512xi8> to vector<256x512xi8>
    %206 = arith.sitofp %205 : vector<256x512xi8> to vector<256x512xf32>
    %207 = arith.truncf %206 : vector<256x512xf32> to vector<256x512xbf16>
    %208 = vector.extract_strided_slice %118 {offsets = [0, 8, 0], sizes = [2, 1, 256], strides = [1, 1, 1]} : vector<2x12x256xf32> to vector<2x1x256xf32>
    %209 = vector.shape_cast %208 : vector<2x1x256xf32> to vector<2x256xf32>
    %210 = arith.truncf %209 : vector<2x256xf32> to vector<2x256xbf16>
    %cst_108 = arith.constant dense<0.000000e+00> : vector<2x512xf32>
    %211 = tpu.matmul %210, %207, %cst_108 {dimension_numbers = #tpu.dot_dimension_numbers<[1], [0], [0], [1], [0, 0, 1, 1], [], []>} : vector<2x256xbf16>, vector<256x512xbf16>, vector<2x512xf32> -> vector<2x512xf32>
    %212 = arith.addf %203, %211 : vector<2x512xf32>
    %c3_i32_109 = arith.constant 3 : i32
    %c9_i32_110 = arith.constant 9 : i32
    %c0_i32_111 = arith.constant 0 : i32
    %c0_i32_112 = arith.constant 0 : i32
    %213 = tpu.memref_slice %arg11[%c9_i32_110, %c0_i32_111, %c0_i32_112] : memref<12x256x512xi8, #tpu.memory_space<any>> -> memref<3x256x512xi8, #tpu.memory_space<any>>
    %c9_i32_113 = arith.constant 9 : i32
    %c0_i32_114 = arith.constant 0 : i32
    %c0_i32_115 = arith.constant 0 : i32
    %214 = tpu.memref_slice %arg19[%c9_i32_113, %c0_i32_114, %c0_i32_115] : memref<12x256x512xi8, #tpu.memory_space<vmem>> -> memref<3x256x512xi8, #tpu.memory_space<vmem>>
    %215 = tpu.memref_slice %arg20[%c3_i32_109] : memref<4x!tpu.dma_semaphore, #tpu.memory_space<semaphore_mem>> -> memref<1x!tpu.dma_semaphore, #tpu.memory_space<semaphore_mem>>
    %216 = tpu.memref_squeeze %215 : memref<1x!tpu.dma_semaphore, #tpu.memory_space<semaphore_mem>> -> memref<!tpu.dma_semaphore, #tpu.memory_space<semaphore_mem>>
    tpu.wait_dma2 semaphore(%216 : memref<!tpu.dma_semaphore, #tpu.memory_space<semaphore_mem>>) src(%213 : memref<3x256x512xi8, #tpu.memory_space<any>>) dst(%214 : memref<3x256x512xi8, #tpu.memory_space<vmem>>)
    %c9 = arith.constant 9 : index
    %c0_116 = arith.constant 0 : index
    %c0_117 = arith.constant 0 : index
    %217 = vector.load %arg19[%c9, %c0_116, %c0_117] : memref<12x256x512xi8, #tpu.memory_space<vmem>>, vector<1x256x512xi8>
    %218 = vector.shape_cast %217 : vector<1x256x512xi8> to vector<256x512xi8>
    %219 = arith.sitofp %218 : vector<256x512xi8> to vector<256x512xf32>
    %220 = arith.truncf %219 : vector<256x512xf32> to vector<256x512xbf16>
    %221 = vector.extract_strided_slice %118 {offsets = [0, 9, 0], sizes = [2, 1, 256], strides = [1, 1, 1]} : vector<2x12x256xf32> to vector<2x1x256xf32>
    %222 = vector.shape_cast %221 : vector<2x1x256xf32> to vector<2x256xf32>
    %223 = arith.truncf %222 : vector<2x256xf32> to vector<2x256xbf16>
    %cst_118 = arith.constant dense<0.000000e+00> : vector<2x512xf32>
    %224 = tpu.matmul %223, %220, %cst_118 {dimension_numbers = #tpu.dot_dimension_numbers<[1], [0], [0], [1], [0, 0, 1, 1], [], []>} : vector<2x256xbf16>, vector<256x512xbf16>, vector<2x512xf32> -> vector<2x512xf32>
    %225 = arith.addf %212, %224 : vector<2x512xf32>
    %c10 = arith.constant 10 : index
    %c0_119 = arith.constant 0 : index
    %c0_120 = arith.constant 0 : index
    %226 = vector.load %arg19[%c10, %c0_119, %c0_120] : memref<12x256x512xi8, #tpu.memory_space<vmem>>, vector<1x256x512xi8>
    %227 = vector.shape_cast %226 : vector<1x256x512xi8> to vector<256x512xi8>
    %228 = arith.sitofp %227 : vector<256x512xi8> to vector<256x512xf32>
    %229 = arith.truncf %228 : vector<256x512xf32> to vector<256x512xbf16>
    %230 = vector.extract_strided_slice %118 {offsets = [0, 10, 0], sizes = [2, 1, 256], strides = [1, 1, 1]} : vector<2x12x256xf32> to vector<2x1x256xf32>
    %231 = vector.shape_cast %230 : vector<2x1x256xf32> to vector<2x256xf32>
    %232 = arith.truncf %231 : vector<2x256xf32> to vector<2x256xbf16>
    %cst_121 = arith.constant dense<0.000000e+00> : vector<2x512xf32>
    %233 = tpu.matmul %232, %229, %cst_121 {dimension_numbers = #tpu.dot_dimension_numbers<[1], [0], [0], [1], [0, 0, 1, 1], [], []>} : vector<2x256xbf16>, vector<256x512xbf16>, vector<2x512xf32> -> vector<2x512xf32>
    %234 = arith.addf %225, %233 : vector<2x512xf32>
    %c11 = arith.constant 11 : index
    %c0_122 = arith.constant 0 : index
    %c0_123 = arith.constant 0 : index
    %235 = vector.load %arg19[%c11, %c0_122, %c0_123] : memref<12x256x512xi8, #tpu.memory_space<vmem>>, vector<1x256x512xi8>
    %236 = vector.shape_cast %235 : vector<1x256x512xi8> to vector<256x512xi8>
    %237 = arith.sitofp %236 : vector<256x512xi8> to vector<256x512xf32>
    %238 = arith.truncf %237 : vector<256x512xf32> to vector<256x512xbf16>
    %239 = vector.extract_strided_slice %118 {offsets = [0, 11, 0], sizes = [2, 1, 256], strides = [1, 1, 1]} : vector<2x12x256xf32> to vector<2x1x256xf32>
    %240 = vector.shape_cast %239 : vector<2x1x256xf32> to vector<2x256xf32>
    %241 = arith.truncf %240 : vector<2x256xf32> to vector<2x256xbf16>
    %cst_124 = arith.constant dense<0.000000e+00> : vector<2x512xf32>
    %242 = tpu.matmul %241, %238, %cst_124 {dimension_numbers = #tpu.dot_dimension_numbers<[1], [0], [0], [1], [0, 0, 1, 1], [], []>} : vector<2x256xbf16>, vector<256x512xbf16>, vector<2x512xf32> -> vector<2x512xf32>
    %243 = arith.addf %234, %242 : vector<2x512xf32>
    %c0_125 = arith.constant 0 : index
    %c0_126 = arith.constant 0 : index
    %244 = vector.load %arg12[%c0_125, %c0_126] : memref<1x512xf32, #tpu.memory_space<vmem>>, vector<1x512xf32>
    %245 = vector.broadcast %244 : vector<1x512xf32> to vector<2x512xf32>
    %246 = arith.mulf %243, %245 : vector<2x512xf32>
    %c0_127 = arith.constant 0 : index
    %c0_128 = arith.constant 0 : index
    %247 = vector.load %arg13[%c0_127, %c0_128] : memref<1x512xf32, #tpu.memory_space<vmem>>, vector<1x512xf32>
    %248 = vector.broadcast %247 : vector<1x512xf32> to vector<2x512xf32>
    %249 = arith.addf %246, %248 : vector<2x512xf32>
    %cst_129 = arith.constant 0.000000e+00 : f32
    %250 = vector.broadcast %cst_129 : f32 to vector<2x512xf32>
    %251 = arith.maximumf %249, %250 : vector<2x512xf32>
    %252 = arith.truncf %251 : vector<2x512xf32> to vector<2x512xbf16>
    %c0_130 = arith.constant 0 : index
    %c0_131 = arith.constant 0 : index
    %253 = vector.load %arg14[%c0_130, %c0_131] : memref<512x128xbf16, #tpu.memory_space<vmem>>, vector<512x128xbf16>
    %cst_132 = arith.constant dense<0.000000e+00> : vector<2x128xf32>
    %254 = tpu.matmul %252, %253, %cst_132 {dimension_numbers = #tpu.dot_dimension_numbers<[1], [0], [0], [1], [0, 0, 1, 1], [], []>} : vector<2x512xbf16>, vector<512x128xbf16>, vector<2x128xf32> -> vector<2x128xf32>
    %c0_133 = arith.constant 0 : index
    %c0_134 = arith.constant 0 : index
    %255 = vector.load %arg15[%c0_133, %c0_134] : memref<1x128xf32, #tpu.memory_space<vmem>>, vector<1x128xf32>
    %256 = vector.broadcast %255 : vector<1x128xf32> to vector<2x128xf32>
    %257 = arith.addf %254, %256 : vector<2x128xf32>
    %cst_135 = arith.constant 0.000000e+00 : f32
    %258 = vector.broadcast %cst_135 : f32 to vector<2x128xf32>
    %259 = arith.maximumf %257, %258 : vector<2x128xf32>
    %c0_136 = arith.constant 0 : index
    %c0_137 = arith.constant 0 : index
    %260 = vector.load %arg16[%c0_136, %c0_137] : memref<1x128xf32, #tpu.memory_space<vmem>>, vector<1x128xf32>
    %261 = vector.broadcast %260 : vector<1x128xf32> to vector<2x128xf32>
    %262 = arith.mulf %259, %261 : vector<2x128xf32>
    %cst_138 = arith.constant dense<0.000000e+00> : vector<2xf32>
    %263 = vector.multi_reduction <add>, %262, %cst_138 [1] : vector<2x128xf32> to vector<2xf32>
    %264 = vector.shape_cast %263 : vector<2xf32> to vector<2x1xf32>
    %c0_139 = arith.constant 0 : index
    %c0_140 = arith.constant 0 : index
    %265 = vector.load %arg17[%c0_139, %c0_140] : memref<1x1xf32, #tpu.memory_space<vmem>>, vector<1x1xf32>
    %266 = vector.broadcast %265 : vector<1x1xf32> to vector<2x1xf32>
    %267 = arith.addf %264, %266 : vector<2x1xf32>
    %c0_141 = arith.constant 0 : index
    %c0_142 = arith.constant 0 : index
    %268 = vector.load %arg18[%c0_141, %c0_142] : memref<2x1xf32, #tpu.memory_space<vmem>>, vector<2x1xf32>
    tpu.vector_store %arg18[%c0_141, %c0_142], %267 {strides = array<i32>} : memref<2x1xf32, #tpu.memory_space<vmem>>, vector<2x1xf32>,
    return
  }
}

</mosaic_0001>

<llo_original>
// kernel: traffic_cnn_forward.1
$region0: #{traffic_cnn_forward.1}
  #allocation0 [shape = 'u32[]', space=smem, size = 0x4, offset = 0x4, fixed_abs, tag = 'smem constant byte address 0x4 - core index']
  #allocation1 [shape = 'u32[144,128]{1,0:T(1,128)}', space=vmem, size = 0x12000, scoped, tag = 'internal scratch']
  #allocation2 [shape = 's8[12,256,512]{2,1,0:T(32,128)(4,1)}', space=vmem, size = 0x180000, scoped, tag = 'scratch operand']
  #allocation3 [shape = 's32[4]{0}', space=sflag, size = 0x10, scoped, tag = 'scratch operand']
  #allocation4 [shape = 'f32[1,1]{1,0:T(1,128)S(1)}', space=vmem, size = 0x200, scoped, tag = 'scoped memory for traffic_cnn_forward.1']
  #allocation5 [shape = 'f32[1,1]{1,0:T(1,128)S(1)}', space=vmem, size = 0x200, scoped, tag = 'scoped memory for traffic_cnn_forward.1']
  #allocation26 [shape = 's32[]', space=sflag, size = 0x4, offset = 0, fixed_abs, tag = 'sflag constant byte address 0x0 - dummy sync flag']
  #allocation27 [shape = 's32[]', space=sflag, size = 0x4, offset = 0, fixed_abs, tag = 'sflag constant byte address 0x0 - dummy sync flag']
  #allocation28 [shape = 'u32[]', space=smem, size = 0x4, offset = 0x44, fixed_abs, tag = 'smem constant byte address 0x44 - assertion arg 0']
  #allocation29 [shape = 'u32[]', space=smem, size = 0x4, offset = 0x48, fixed_abs, tag = 'smem constant byte address 0x48 - assertion arg 1']
  #allocation30 [shape = 's32[]', space=sflag, size = 0x4, offset = 0, fixed_abs, tag = 'sflag constant byte address 0x0 - dummy sync flag']
  #allocation31 [shape = 's32[]', space=sflag, size = 0x4, offset = 0, fixed_abs, tag = 'sflag constant byte address 0x0 - dummy sync flag']
  #allocation32 [shape = 's32[]', space=sflag, size = 0x4, offset = 0, fixed_abs, tag = 'sflag constant byte address 0x0 - dummy sync flag']
  #allocation33 [shape = 's32[]', space=sflag, size = 0x4, offset = 0, fixed_abs, tag = 'sflag constant byte address 0x0 - dummy sync flag']
  #allocation34 [shape = 's32[]', space=sflag, size = 0x4, offset = 0, fixed_abs, tag = 'sflag constant byte address 0x0 - dummy sync flag']
  #allocation35 [shape = 's32[]', space=sflag, size = 0x4, offset = 0, fixed_abs, tag = 'sflag constant byte address 0x0 - dummy sync flag']
  %s0 = inlined_call_operand.vmem [shape: f32[2,12,1], index: 0, kind: input, shape index: {}]
  %s1 = inlined_call_operand.hbm [shape: f32[3,1,64], index: 1, kind: input, shape index: {}]
  %s2 = inlined_call_operand.hbm [shape: f32[1,64], index: 2, kind: input, shape index: {}]
  %s3 = inlined_call_operand.hbm [shape: bf16[64,384], index: 3, kind: input, shape index: {}]
  %s4 = inlined_call_operand.hbm [shape: f32[1,128], index: 4, kind: input, shape index: {}]
  %s5 = inlined_call_operand.hbm [shape: bf16[128,768], index: 5, kind: input, shape index: {}]
  %s6 = inlined_call_operand.hbm [shape: f32[1,256], index: 6, kind: input, shape index: {}]
  %s7 = inlined_call_operand.vmem [shape: bf16[256,64], index: 7, kind: input, shape index: {}]
  %s8 = inlined_call_operand.hbm [shape: f32[1,64], index: 8, kind: input, shape index: {}]
  %s9 = inlined_call_operand.hbm [shape: f32[1,64], index: 9, kind: input, shape index: {}]
  %s10 = inlined_call_operand.<no memory space> [shape: f32[1,1], index: 10, kind: input, shape index: {}]
  %s11 = inlined_call_operand.hbm [shape: s8[12,256,512], index: 11, kind: input, shape index: {}]
  %s12 = inlined_call_operand.hbm [shape: f32[1,512], index: 12, kind: input, shape index: {}]
  %s13 = inlined_call_operand.hbm [shape: f32[1,512], index: 13, kind: input, shape index: {}]
  %s14 = inlined_call_operand.hbm [shape: bf16[512,128], index: 14, kind: input, shape index: {}]
  %s15 = inlined_call_operand.hbm [shape: f32[1,128], index: 15, kind: input, shape index: {}]
  %s16 = inlined_call_operand.hbm [shape: f32[1,128], index: 16, kind: input, shape index: {}]
  %s17 = inlined_call_operand.<no memory space> [shape: f32[1,1], index: 17, kind: input, shape index: {}]
  %s18 = inlined_call_operand.vmem [shape: f32[2,1], index: 18, kind: output, shape index: {}]
  %s19 = sld [smem:[#allocation0]]
  $region146: #{traffic_cnn_forward.1} parent=0
    _
  %s21 = ssub.s32 1, %s19
  %s22 = scalar_select 0, %s21, %s19
  %v23 = vstv %s10
  %24 = vst [vmem:[#allocation4] sm:$0x1] %v23
  %v25 = vstv %s17
  %26 = vst [vmem:[#allocation5] sm:$0x1] %v25
  $region1: #{traffic_cnn_forward.1} parent=0
    #allocation6 [shape = 'u8[1536]{0}', space=vmem, size = 0x800, scoped, tag = 'input window, operand 1, single buffered']
    #allocation7 [shape = 's32[1]{0}', space=sflag, size = 0x4, scoped, tag = 'scoped memory for traffic_cnn_forward.1']
    #allocation8 [shape = 'u8[512]{0}', space=vmem, size = 0x400, scoped, tag = 'input window, operand 2, single buffered']
    #allocation9 [shape = 's32[1]{0}', space=sflag, size = 0x4, scoped, tag = 'scoped memory for traffic_cnn_forward.1']
    #allocation10 [shape = 'u8[49152]{0}', space=vmem, size = 0xc000, scoped, tag = 'input window, operand 3, single buffered']
    #allocation11 [shape = 'u8[512]{0}', space=vmem, size = 0x400, scoped, tag = 'input window, operand 4, single buffered']
    #allocation12 [shape = 's32[1]{0}', space=sflag, size = 0x4, scoped, tag = 'scoped memory for traffic_cnn_forward.1']
    #allocation13 [shape = 'u8[196608]{0}', space=vmem, size = 0x30000, scoped, tag = 'input window, operand 5, single buffered']
    #allocation14 [shape = 'u8[1024]{0}', space=vmem, size = 0x400, scoped, tag = 'input window, operand 6, single buffered']
    #allocation15 [shape = 's32[1]{0}', space=sflag, size = 0x4, scoped, tag = 'scoped memory for traffic_cnn_forward.1']
    #allocation16 [shape = 'u8[512]{0}', space=vmem, size = 0x400, scoped, tag = 'input window, operand 8, single buffered']
    #allocation17 [shape = 'u8[512]{0}', space=vmem, size = 0x400, scoped, tag = 'input window, operand 9, single buffered']
    #allocation18 [shape = 's32[1]{0}', space=sflag, size = 0x4, scoped, tag = 'scoped memory for traffic_cnn_forward.1']
    #allocation19 [shape = 'u8[2048]{0}', space=vmem, size = 0x800, scoped, tag = 'input window, operand 12, single buffered']
    #allocation20 [shape = 'u8[2048]{0}', space=vmem, size = 0x800, scoped, tag = 'input window, operand 13, single buffered']
    #allocation21 [shape = 's32[1]{0}', space=sflag, size = 0x4, scoped, tag = 'scoped memory for traffic_cnn_forward.1']
    #allocation22 [shape = 'u8[131072]{0}', space=vmem, size = 0x20000, scoped, tag = 'input window, operand 14, single buffered']
    #allocation23 [shape = 'u8[512]{0}', space=vmem, size = 0x400, scoped, tag = 'input window, operand 15, single buffered']
    #allocation24 [shape = 's32[1]{0}', space=sflag, size = 0x4, scoped, tag = 'scoped memory for traffic_cnn_forward.1']
    #allocation25 [shape = 'u8[512]{0}', space=vmem, size = 0x400, scoped, tag = 'input window, operand 16, single buffered']
    %27 = vsyncpa [#allocation7], 0
    %28 = vsyncpa [#allocation9], 0
    %29 = vsyncpa [#allocation12], 0
    %30 = vsyncpa [#allocation15], 0
    %31 = vsyncpa [#allocation18], 0
    %32 = vsyncpa [#allocation21], 0
    %33 = vsyncpa [#allocation24], 0
    // Predicated region
    $region2: #{traffic_cnn_forward.1} parent=1 // pred_check
      _
    $region3: #{traffic_cnn_forward.1} parent=1 // pred_check_branch
      %35 = sbr.rel (0) target = $region5
    $region4: #{traffic_cnn_forward.1} parent=1 // pred_region
      _
    $region5: #{traffic_cnn_forward.1} parent=1 // pred_fallthru
      _
    // Predicated region
    $region6: #{traffic_cnn_forward.1} parent=1 // pred_check
      _
    $region7: #{traffic_cnn_forward.1} parent=1 // pred_check_branch
      %37 = sbr.rel (0) target = $region9
    $region8: #{traffic_cnn_forward.1} parent=1 // pred_region
      %s39 = ssub.s32 48, 48
      %40 = vsyncadd [#allocation7], %s39
      %s41 = sshll.u32 [#allocation6], 4
      %s42 = int_to_ptr.vmem [resolvable:$true] %s41
      %47 = dma.hbm_to_vmem [thread:$0]  %s1, 48, %s42, [#allocation7], 16, 16, 1
    $region9: #{traffic_cnn_forward.1} parent=1 // pred_fallthru
      _
    // Predicated region
    $region10: #{traffic_cnn_forward.1} parent=1 // pred_check
      _
    $region11: #{traffic_cnn_forward.1} parent=1 // pred_check_branch
      %49 = sbr.rel (0) target = $region13
    $region12: #{traffic_cnn_forward.1} parent=1 // pred_region
      %s51 = ssub.s32 16, 16
      %52 = vsyncadd [#allocation9], %s51
      %s54 = sshll.u32 [#allocation8], 4
      %s55 = int_to_ptr.vmem [resolvable:$true] %s54
      %57 = dma.hbm_to_vmem [thread:$0]  %s2, 16, %s55, [#allocation9]
    $region13: #{traffic_cnn_forward.1} parent=1 // pred_fallthru
      _
    // Predicated region
    $region14: #{traffic_cnn_forward.1} parent=1 // pred_check
      _
    $region15: #{traffic_cnn_forward.1} parent=1 // pred_check_branch
      %59 = sbr.rel (0) target = $region17
    $region16: #{traffic_cnn_forward.1} parent=1 // pred_region
      %s61 = ssub.s32 1536, 1536
      %62 = vsyncadd [#allocation9], %s61
      %s63 = sshll.u32 [#allocation10], 4
      %s64 = int_to_ptr.vmem [resolvable:$true] %s63
      %69 = dma.hbm_to_vmem [thread:$0]  %s3, 1536, %s64, [#allocation9], 192, 192, 12
    $region17: #{traffic_cnn_forward.1} parent=1 // pred_fallthru
      _
    // Predicated region
    $region18: #{traffic_cnn_forward.1} parent=1 // pred_check
      _
    $region19: #{traffic_cnn_forward.1} parent=1 // pred_check_branch
      %71 = sbr.rel (0) target = $region21
    $region20: #{traffic_cnn_forward.1} parent=1 // pred_region
      %s73 = ssub.s32 16, 16
      %74 = vsyncadd [#allocation12], %s73
      %s76 = sshll.u32 [#allocation11], 4
      %s77 = int_to_ptr.vmem [resolvable:$true] %s76
      %79 = dma.hbm_to_vmem [thread:$0]  %s4, 16, %s77, [#allocation12]
    $region21: #{traffic_cnn_forward.1} parent=1 // pred_fallthru
      _
    // Predicated region
    $region22: #{traffic_cnn_forward.1} parent=1 // pred_check
      _
    $region23: #{traffic_cnn_forward.1} parent=1 // pred_check_branch
      %81 = sbr.rel (0) target = $region25
    $region24: #{traffic_cnn_forward.1} parent=1 // pred_region
      %s83 = ssub.s32 6144, 6144
      %84 = vsyncadd [#allocation12], %s83
      %s85 = sshll.u32 [#allocation13], 4
      %s86 = int_to_ptr.vmem [resolvable:$true] %s85
      %91 = dma.hbm_to_vmem [thread:$0]  %s5, 6144, %s86, [#allocation12], 384, 384, 24
    $region25: #{traffic_cnn_forward.1} parent=1 // pred_fallthru
      _
    // Predicated region
    $region26: #{traffic_cnn_forward.1} parent=1 // pred_check
      _
    $region27: #{traffic_cnn_forward.1} parent=1 // pred_check_branch
      %93 = sbr.rel (0) target = $region29
    $region28: #{traffic_cnn_forward.1} parent=1 // pred_region
      %s95 = ssub.s32 32, 32
      %96 = vsyncadd [#allocation15], %s95
      %s98 = sshll.u32 [#allocation14], 4
      %s99 = int_to_ptr.vmem [resolvable:$true] %s98
      %101 = dma.hbm_to_vmem [thread:$0]  %s6, 32, %s99, [#allocation15]
    $region29: #{traffic_cnn_forward.1} parent=1 // pred_fallthru
      _
    // Predicated region
    $region30: #{traffic_cnn_forward.1} parent=1 // pred_check
      _
    $region31: #{traffic_cnn_forward.1} parent=1 // pred_check_branch
      %103 = sbr.rel (0) target = $region33
    $region32: #{traffic_cnn_forward.1} parent=1 // pred_region
      _
    $region33: #{traffic_cnn_forward.1} parent=1 // pred_fallthru
      _
    // Predicated region
    $region34: #{traffic_cnn_forward.1} parent=1 // pred_check
      _
    $region35: #{traffic_cnn_forward.1} parent=1 // pred_check_branch
      %105 = sbr.rel (0) target = $region37
    $region36: #{traffic_cnn_forward.1} parent=1 // pred_region
      %s107 = ssub.s32 16, 16
      %108 = vsyncadd [#allocation15], %s107
      %s110 = sshll.u32 [#allocation16], 4
      %s111 = int_to_ptr.vmem [resolvable:$true] %s110
      %113 = dma.hbm_to_vmem [thread:$0]  %s8, 16, %s111, [#allocation15]
    $region37: #{traffic_cnn_forward.1} parent=1 // pred_fallthru
      _
    // Predicated region
    $region38: #{traffic_cnn_forward.1} parent=1 // pred_check
      _
    $region39: #{traffic_cnn_forward.1} parent=1 // pred_check_branch
      %115 = sbr.rel (0) target = $region41
    $region40: #{traffic_cnn_forward.1} parent=1 // pred_region
      %s117 = ssub.s32 16, 16
      %118 = vsyncadd [#allocation18], %s117
      %s120 = sshll.u32 [#allocation17], 4
      %s121 = int_to_ptr.vmem [resolvable:$true] %s120
      %123 = dma.hbm_to_vmem [thread:$0]  %s9, 16, %s121, [#allocation18]
    $region41: #{traffic_cnn_forward.1} parent=1 // pred_fallthru
      _
    // Predicated region
    $region42: #{traffic_cnn_forward.1} parent=1 // pred_check
      _
    $region43: #{traffic_cnn_forward.1} parent=1 // pred_check_branch
      %125 = sbr.rel (0) target = $region45
    $region44: #{traffic_cnn_forward.1} parent=1 // pred_region
      _
    $region45: #{traffic_cnn_forward.1} parent=1 // pred_fallthru
      _
    // Predicated region
    $region46: #{traffic_cnn_forward.1} parent=1 // pred_check
      _
    $region47: #{traffic_cnn_forward.1} parent=1 // pred_check_branch
      %127 = sbr.rel (0) target = $region49
    $region48: #{traffic_cnn_forward.1} parent=1 // pred_region
      %s129 = ssub.s32 64, 64
      %130 = vsyncadd [#allocation18], %s129
      %s132 = sshll.u32 [#allocation19], 4
      %s133 = int_to_ptr.vmem [resolvable:$true] %s132
      %135 = dma.hbm_to_vmem [thread:$0]  %s12, 64, %s133, [#allocation18]
    $region49: #{traffic_cnn_forward.1} parent=1 // pred_fallthru
      _
    // Predicated region
    $region50: #{traffic_cnn_forward.1} parent=1 // pred_check
      _
    $region51: #{traffic_cnn_forward.1} parent=1 // pred_check_branch
      %137 = sbr.rel (0) target = $region53
    $region52: #{traffic_cnn_forward.1} parent=1 // pred_region
      %s139 = ssub.s32 64, 64
      %140 = vsyncadd [#allocation21], %s139
      %s142 = sshll.u32 [#allocation20], 4
      %s143 = int_to_ptr.vmem [resolvable:$true] %s142
      %145 = dma.hbm_to_vmem [thread:$0]  %s13, 64, %s143, [#allocation21]
    $region53: #{traffic_cnn_forward.1} parent=1 // pred_fallthru
      _
    // Predicated region
    $region54: #{traffic_cnn_forward.1} parent=1 // pred_check
      _
    $region55: #{traffic_cnn_forward.1} parent=1 // pred_check_branch
      %147 = sbr.rel (0) target = $region57
    $region56: #{traffic_cnn_forward.1} parent=1 // pred_region
      %s149 = ssub.s32 4096, 4096
      %150 = vsyncadd [#allocation21], %s149
      %s151 = sshll.u32 [#allocation22], 4
      %s152 = int_to_ptr.vmem [resolvable:$true] %s151
      %157 = dma.hbm_to_vmem [thread:$0]  %s14, 4096, %s152, [#allocation21], 64, 64, 4
    $region57: #{traffic_cnn_forward.1} parent=1 // pred_fallthru
      _
    // Predicated region
    $region58: #{traffic_cnn_forward.1} parent=1 // pred_check
      _
    $region59: #{traffic_cnn_forward.1} parent=1 // pred_check_branch
      %159 = sbr.rel (0) target = $region61
    $region60: #{traffic_cnn_forward.1} parent=1 // pred_region
      %s161 = ssub.s32 16, 16
      %162 = vsyncadd [#allocation24], %s161
      %s164 = sshll.u32 [#allocation23], 4
      %s165 = int_to_ptr.vmem [resolvable:$true] %s164
      %167 = dma.hbm_to_vmem [thread:$0]  %s15, 16, %s165, [#allocation24]
    $region61: #{traffic_cnn_forward.1} parent=1 // pred_fallthru
      _
    // Predicated region
    $region62: #{traffic_cnn_forward.1} parent=1 // pred_check
      _
    $region63: #{traffic_cnn_forward.1} parent=1 // pred_check_branch
      %169 = sbr.rel (0) target = $region65
    $region64: #{traffic_cnn_forward.1} parent=1 // pred_region
      %s171 = ssub.s32 16, 16
      %172 = vsyncadd [#allocation24], %s171
      %s174 = sshll.u32 [#allocation25], 4
      %s175 = int_to_ptr.vmem [resolvable:$true] %s174
      %177 = dma.hbm_to_vmem [thread:$0]  %s16, 16, %s175, [#allocation24]
    $region65: #{traffic_cnn_forward.1} parent=1 // pred_fallthru
      _
    // Predicated region
    $region66: #{traffic_cnn_forward.1} parent=1 // pred_check
      _
    $region67: #{traffic_cnn_forward.1} parent=1 // pred_check_branch
      %179 = sbr.rel (0) target = $region69
    $region68: #{traffic_cnn_forward.1} parent=1 // pred_region
      _
    $region69: #{traffic_cnn_forward.1} parent=1 // pred_fallthru
      _
    // Predicated region
    $region70: #{traffic_cnn_forward.1} parent=1 // pred_check
      _
    $region71: #{traffic_cnn_forward.1} parent=1 // pred_check_branch
      %181 = sbr.rel (0) target = $region73
    $region72: #{traffic_cnn_forward.1} parent=1 // pred_region
      %182 = dma.done [#allocation7], 48
    $region73: #{traffic_cnn_forward.1} parent=1 // pred_fallthru
      _
    // Predicated region
    $region74: #{traffic_cnn_forward.1} parent=1 // pred_check
      _
    $region75: #{traffic_cnn_forward.1} parent=1 // pred_check_branch
      %184 = sbr.rel (0) target = $region77
    $region76: #{traffic_cnn_forward.1} parent=1 // pred_region
      %185 = dma.done [#allocation9], 16
    $region77: #{traffic_cnn_forward.1} parent=1 // pred_fallthru
      _
    // Predicated region
    $region78: #{traffic_cnn_forward.1} parent=1 // pred_check
      _
    $region79: #{traffic_cnn_forward.1} parent=1 // pred_check_branch
      %187 = sbr.rel (0) target = $region81
    $region80: #{traffic_cnn_forward.1} parent=1 // pred_region
      %188 = dma.done [#allocation9], 1536
    $region81: #{traffic_cnn_forward.1} parent=1 // pred_fallthru
      _
    // Predicated region
    $region82: #{traffic_cnn_forward.1} parent=1 // pred_check
      _
    $region83: #{traffic_cnn_forward.1} parent=1 // pred_check_branch
      %190 = sbr.rel (0) target = $region85
    $region84: #{traffic_cnn_forward.1} parent=1 // pred_region
      %191 = dma.done [#allocation12], 16
    $region85: #{traffic_cnn_forward.1} parent=1 // pred_fallthru
      _
    // Predicated region
    $region86: #{traffic_cnn_forward.1} parent=1 // pred_check
      _
    $region87: #{traffic_cnn_forward.1} parent=1 // pred_check_branch
      %193 = sbr.rel (0) target = $region89
    $region88: #{traffic_cnn_forward.1} parent=1 // pred_region
      %194 = dma.done [#allocation12], 6144
    $region89: #{traffic_cnn_forward.1} parent=1 // pred_fallthru
      _
    // Predicated region
    $region90: #{traffic_cnn_forward.1} parent=1 // pred_check
      _
    $region91: #{traffic_cnn_forward.1} parent=1 // pred_check_branch
      %196 = sbr.rel (0) target = $region93
    $region92: #{traffic_cnn_forward.1} parent=1 // pred_region
      %197 = dma.done [#allocation15], 32
    $region93: #{traffic_cnn_forward.1} parent=1 // pred_fallthru
      _
    // Predicated region
    $region94: #{traffic_cnn_forward.1} parent=1 // pred_check
      _
    $region95: #{traffic_cnn_forward.1} parent=1 // pred_check_branch
      %199 = sbr.rel (0) target = $region97
    $region96: #{traffic_cnn_forward.1} parent=1 // pred_region
      %200 = dma.done [#allocation15], 16
    $region97: #{traffic_cnn_forward.1} parent=1 // pred_fallthru
      _
    // Predicated region
    $region98: #{traffic_cnn_forward.1} parent=1 // pred_check
      _
    $region99: #{traffic_cnn_forward.1} parent=1 // pred_check_branch
      %202 = sbr.rel (0) target = $region101
    $region100: #{traffic_cnn_forward.1} parent=1 // pred_region
      %203 = dma.done [#allocation18], 16
    $region101: #{traffic_cnn_forward.1} parent=1 // pred_fallthru
      _
    // Predicated region
    $region102: #{traffic_cnn_forward.1} parent=1 // pred_check
      _
    $region103: #{traffic_cnn_forward.1} parent=1 // pred_check_branch
      %205 = sbr.rel (0) target = $region105
    $region104: #{traffic_cnn_forward.1} parent=1 // pred_region
      %206 = dma.done [#allocation18], 64
    $region105: #{traffic_cnn_forward.1} parent=1 // pred_fallthru
      _
    // Predicated region
    $region106: #{traffic_cnn_forward.1} parent=1 // pred_check
      _
    $region107: #{traffic_cnn_forward.1} parent=1 // pred_check_branch
      %208 = sbr.rel (0) target = $region109
    $region108: #{traffic_cnn_forward.1} parent=1 // pred_region
      %209 = dma.done [#allocation21], 64
    $region109: #{traffic_cnn_forward.1} parent=1 // pred_fallthru
      _
    // Predicated region
    $region110: #{traffic_cnn_forward.1} parent=1 // pred_check
      _
    $region111: #{traffic_cnn_forward.1} parent=1 // pred_check_branch
      %211 = sbr.rel (0) target = $region113
    $region112: #{traffic_cnn_forward.1} parent=1 // pred_region
      %212 = dma.done [#allocation21], 4096
    $region113: #{traffic_cnn_forward.1} parent=1 // pred_fallthru
      _
    // Predicated region
    $region114: #{traffic_cnn_forward.1} parent=1 // pred_check
      _
    $region115: #{traffic_cnn_forward.1} parent=1 // pred_check_branch
      %214 = sbr.rel (0) target = $region117
    $region116: #{traffic_cnn_forward.1} parent=1 // pred_region
      %215 = dma.done [#allocation24], 16
    $region117: #{traffic_cnn_forward.1} parent=1 // pred_fallthru
      _
    // Predicated region
    $region118: #{traffic_cnn_forward.1} parent=1 // pred_check
      _
    $region119: #{traffic_cnn_forward.1} parent=1 // pred_check_branch
      %217 = sbr.rel (0) target = $region121
    $region120: #{traffic_cnn_forward.1} parent=1 // pred_region
      %218 = dma.done [#allocation24], 16
    $region121: #{traffic_cnn_forward.1} parent=1 // pred_fallthru
      _
    // Predicated region
    $region122: #{traffic_cnn_forward.1} parent=1 // pred_check
      _
    $region123: #{traffic_cnn_forward.1} parent=1 // pred_check_branch
      %221 = sbr.rel target = $region125
    $region124: #{traffic_cnn_forward.1} parent=1 // pred_region
      %222 = sst [smem:[#allocation28]] [#allocation27]
      %223 = sst [smem:[#allocation29]] [#allocation26]
    $region125: #{traffic_cnn_forward.1} parent=1 // pred_fallthru
      _
    %225 = shalt.err (0)
    %s227 = sshll.u32 [#allocation2], 4
    %s228 = int_to_ptr.vmem [resolvable:$true] %s227
    %230 = dma.hbm_to_vmem [thread:$0]  %s11, 12288, %s228, [#allocation3]
    %s231 = scalar_lea.hbm %s11, 12288
    %s232 = scalar_lea.vmem [#allocation2], 768
    %s233 = scalar_lea.sflag [#allocation3], 1
    // Predicated region
    $region126: #{traffic_cnn_forward.1} parent=1 // pred_check
      _
    $region127: #{traffic_cnn_forward.1} parent=1 // pred_check_branch
      %235 = sbr.rel target = $region129
    $region128: #{traffic_cnn_forward.1} parent=1 // pred_region
      %236 = sst [smem:[#allocation28]] [#allocation31]
      %237 = sst [smem:[#allocation29]] [#allocation30]
    $region129: #{traffic_cnn_forward.1} parent=1 // pred_fallthru
      _
    %239 = shalt.err (0)
    %s241 = sshll.u32 %s232, 4
    %s242 = int_to_ptr.vmem [resolvable:$true] %s241
    %244 = dma.hbm_to_vmem [thread:$0]  %s231, 12288, %s242, %s233
    %s245 = scalar_lea.hbm %s11, 24576
    %s246 = scalar_lea.vmem [#allocation2], 1536
    %s247 = scalar_lea.sflag [#allocation3], 2
    // Predicated region
    $region130: #{traffic_cnn_forward.1} parent=1 // pred_check
      _
    $region131: #{traffic_cnn_forward.1} parent=1 // pred_check_branch
      %249 = sbr.rel target = $region133
    $region132: #{traffic_cnn_forward.1} parent=1 // pred_region
      %250 = sst [smem:[#allocation28]] [#allocation33]
      %251 = sst [smem:[#allocation29]] [#allocation32]
    $region133: #{traffic_cnn_forward.1} parent=1 // pred_fallthru
      _
    %253 = shalt.err (0)
    %s255 = sshll.u32 %s246, 4
    %s256 = int_to_ptr.vmem [resolvable:$true] %s255
    %258 = dma.hbm_to_vmem [thread:$0]  %s245, 12288, %s256, %s247
    %s259 = scalar_lea.hbm %s11, 36864
    %s260 = scalar_lea.vmem [#allocation2], 2304
    %s261 = scalar_lea.sflag [#allocation3], 3
    // Predicated region
    $region134: #{traffic_cnn_forward.1} parent=1 // pred_check
      _
    $region135: #{traffic_cnn_forward.1} parent=1 // pred_check_branch
      %263 = sbr.rel target = $region137
    $region136: #{traffic_cnn_forward.1} parent=1 // pred_region
      %264 = sst [smem:[#allocation28]] [#allocation35]
      %265 = sst [smem:[#allocation29]] [#allocation34]
    $region137: #{traffic_cnn_forward.1} parent=1 // pred_fallthru
      _
    %267 = shalt.err (0)
    %s269 = sshll.u32 %s260, 4
    %s270 = int_to_ptr.vmem [resolvable:$true] %s269
    %272 = dma.hbm_to_vmem [thread:$0]  %s259, 12288, %s270, %s261
    %v273 = vld [vmem:[%s0] sm:$0xff]
    %v274 = vld [vmem:[%s0 + $0x8] sm:$0xf]
    %v275 = vld [vmem:[%s0 + $0x10] sm:$0xff]
    %v276 = vld [vmem:[%s0 + $0x18] sm:$0xf]
    %v277 = vld [vmem:[#allocation6] sm:$0x1]
    %v278 = vld [vmem:[#allocation6 + $0x1] sm:$0x1]
    %v279 = vld [vmem:[#allocation6 + $0x2] sm:$0x1]
    %v280 = vld [vmem:[#allocation8] sm:$0x1]
    %vm285 = vcmask 1040384
    %v286 = vrot.slane %v273, 7
    %v287 = vrot.slane %v274, 7
    %v288 = vsel %vm285, %v286, %v287
    %v289 = vrot.slane %v275, 7
    %v290 = vrot.slane %v276, 7
    %v291 = vsel %vm285, %v289, %v290
    %v294 = vsel %vm285, 0.0, %v286
    %v295 = vsel %vm285, 0.0, %v289
    %297 = vset.pattern.permute.xlu0 0
    %298 = vperm.xlu0 %297, %v294
    %v299 = vpop.permute.xlu0 %298
    %301 = vset.pattern.permute.xlu0 0
    %302 = vperm.xlu0 %301, %v288
    %v303 = vpop.permute.xlu0 %302
    %306 = vset.pattern.permute.xlu0 0
    %307 = vperm.xlu0 %306, %v295
    %v308 = vpop.permute.xlu0 %307
    %310 = vset.pattern.permute.xlu0 0
    %311 = vperm.xlu0 %310, %v291
    %v312 = vpop.permute.xlu0 %311
    %v315 = vlaneseq
    %v316 = vshrl.u32 %v315, 7
    %v317 = vsub.s32 0, %v316
    %v318 = vrot.slane %v277, %v317
    %v320 = vmul.f32 %v299, %v318
    %v321 = vmul.f32 %v303, %v318
    %v322 = vmul.f32 %v308, %v318
    %v323 = vmul.f32 %v312, %v318
    %324 = vset.pattern.permute.xlu0 0
    %325 = vperm.xlu0 %324, %v273
    %v326 = vpop.permute.xlu0 %325
    %328 = vset.pattern.permute.xlu0 0
    %329 = vperm.xlu0 %328, %v274
    %v330 = vpop.permute.xlu0 %329
    %332 = vset.pattern.permute.xlu0 0
    %333 = vperm.xlu0 %332, %v275
    %v334 = vpop.permute.xlu0 %333
    %336 = vset.pattern.permute.xlu0 0
    %337 = vperm.xlu0 %336, %v276
    %v338 = vpop.permute.xlu0 %337
    %v341 = vlaneseq
    %v342 = vshrl.u32 %v341, 7
    %v343 = vsub.s32 0, %v342
    %v344 = vrot.slane %v278, %v343
    %v346 = vmul.f32 %v326, %v344
    %v347 = vmul.f32 %v330, %v344
    %v348 = vmul.f32 %v334, %v344
    %v349 = vmul.f32 %v338, %v344
    %v350 = vadd.f32 %v320, %v346
    %v351 = vadd.f32 %v321, %v347
    %v352 = vadd.f32 %v322, %v348
    %v353 = vadd.f32 %v323, %v349
    %vm354 = vcmask 1046528
    %v355 = vrot.slane %v273, 1
    %v356 = vrot.slane %v274, 1
    %v357 = vsel %vm354, %v355, %v356
    %v358 = vrot.slane %v275, 1
    %v359 = vrot.slane %v276, 1
    %v360 = vsel %vm354, %v358, %v359
    %vm363 = vcmask 1042432
    %v364 = vsel %vm363, %v356, 0.0
    %v365 = vsel %vm363, %v359, 0.0
    %366 = vset.pattern.permute.xlu0 0
    %367 = vperm.xlu0 %366, %v357
    %v368 = vpop.permute.xlu0 %367
    %371 = vset.pattern.permute.xlu0 0
    %372 = vperm.xlu0 %371, %v364
    %v373 = vpop.permute.xlu0 %372
    %375 = vset.pattern.permute.xlu0 0
    %376 = vperm.xlu0 %375, %v360
    %v377 = vpop.permute.xlu0 %376
    %380 = vset.pattern.permute.xlu0 0
    %381 = vperm.xlu0 %380, %v365
    %v382 = vpop.permute.xlu0 %381
    %v385 = vlaneseq
    %v386 = vshrl.u32 %v385, 7
    %v387 = vsub.s32 0, %v386
    %v388 = vrot.slane %v279, %v387
    %v390 = vmul.f32 %v368, %v388
    %v391 = vmul.f32 %v373, %v388
    %v392 = vmul.f32 %v377, %v388
    %v393 = vmul.f32 %v382, %v388
    %v394 = vadd.f32 %v350, %v390
    %v395 = vadd.f32 %v351, %v391
    %v396 = vadd.f32 %v352, %v392
    %v397 = vadd.f32 %v353, %v393
    %v399 = vlaneseq
    %v400 = vshrl.u32 %v399, 7
    %v401 = vsub.s32 0, %v400
    %v402 = vrot.slane %v280, %v401
    %v404 = vadd.f32 %v394, %v402
    %v405 = vadd.f32 %v395, %v402
    %v406 = vadd.f32 %v396, %v402
    %v407 = vadd.f32 %v397, %v402
    %v408 = vmax.f32 %v404, 0.0
    %v409 = vmax.f32 %v405, 0.0
    %v410 = vmax.f32 %v406, 0.0
    %v411 = vmax.f32 %v407, 0.0
    %v412 = vld [vmem:[#allocation10] sm:$0xff]
    %v413 = vld [vmem:[#allocation10 + $0x8] sm:$0xf]
    %v414 = vld [vmem:[#allocation10 + $0xc] sm:$0xff]
    %v415 = vld [vmem:[#allocation10 + $0x14] sm:$0xf]
    %v416 = vld [vmem:[#allocation10 + $0x18] sm:$0xff]
    %v417 = vld [vmem:[#allocation10 + $0x20] sm:$0xf]
    %v418 = vld [vmem:[#allocation10 + $0x24] sm:$0xff]
    %v419 = vld [vmem:[#allocation10 + $0x2c] sm:$0xf]
    %v420 = vld [vmem:[#allocation10 + $0x30] sm:$0xff]
    %v421 = vld [vmem:[#allocation10 + $0x38] sm:$0xf]
    %v422 = vld [vmem:[#allocation10 + $0x3c] sm:$0xff]
    %v423 = vld [vmem:[#allocation10 + $0x44] sm:$0xf]
    %v424 = vld [vmem:[#allocation10 + $0x48] sm:$0xff]
    %v425 = vld [vmem:[#allocation10 + $0x50] sm:$0xf]
    %v426 = vld [vmem:[#allocation10 + $0x54] sm:$0xff]
    %v427 = vld [vmem:[#allocation10 + $0x5c] sm:$0xf]
    %v428 = vld [vmem:[#allocation11] sm:$0x1]
    %v429 = vpack.c.bf16 %v409, %v408
    %v430 = vpack.c.bf16 %v411, %v410
    %v433 = vcombine.high %v429, %v429
    %v435 = vunpack.c.l.s4 1983009808
    %v436 = vunpack.c.0.s8 %v435
    %v437 = vlaneseq
    %v438 = vshrl.u32 %v437, 7
    %v439 = vsub.s32 %v436, %v438
    %v440 = vrot.slane %v429, %v439
    %v442 = vunpack.c.l.s4 1983009808
    %v443 = vunpack.c.0.s8 %v442
    %v444 = vlaneseq
    %v445 = vshrl.u32 %v444, 7
    %v446 = vsub.s32 %v443, %v445
    %v447 = vrot.slane %v433, %v446
    %v448 = vcombine.high %v440, %v440
    %v449 = vcombine.high %v430, %v430
    %v451 = vunpack.c.l.s4 1983009808
    %v452 = vunpack.c.0.s8 %v451
    %v453 = vlaneseq
    %v454 = vshrl.u32 %v453, 7
    %v455 = vsub.s32 %v452, %v454
    %v456 = vrot.slane %v430, %v455
    %v458 = vunpack.c.l.s4 1983009808
    %v459 = vunpack.c.0.s8 %v458
    %v460 = vlaneseq
    %v461 = vshrl.u32 %v460, 7
    %v462 = vsub.s32 %v459, %v461
    %v463 = vrot.slane %v449, %v462
    %v464 = vcombine.high %v456, %v456
    %v465 = vcombine.low %v440, %v448
    %v466 = vcombine.low %v447, %v456
    %v468 = vunpack.c.l.s4 1983009808
    %v469 = vunpack.c.0.s8 %v468
    %v470 = vlaneseq
    %v471 = vshrl.u32 %v470, 7
    %v472 = vsub.s32 %v469, %v471
    %v473 = vrot.slane %v465, %v472
    %v475 = vunpack.c.l.s4 1983009808
    %v476 = vunpack.c.0.s8 %v475
    %v477 = vlaneseq
    %v478 = vshrl.u32 %v477, 7
    %v479 = vsub.s32 %v476, %v478
    %v480 = vrot.slane %v466, %v479
    %v481 = vcombine.low %v473, %v480
    %v482 = vcombine.low %v464, %v463
    %v484 = vunpack.c.l.s4 1983009808
    %v485 = vunpack.c.0.s8 %v484
    %v486 = vlaneseq
    %v487 = vshrl.u32 %v486, 7
    %v488 = vsub.s32 %v485, %v487
    %v489 = vrot.slane %v482, %v488
    %v506 = vunpack.c.l.b16 %v412
    %v507 = vunpack.c.h.b16 %v412
    %v508 = vunpack.c.l.b16 %v413
    %v509 = vunpack.c.l.b16 %v414
    %v510 = vunpack.c.h.b16 %v414
    %v511 = vunpack.c.l.b16 %v415
    %v512 = vunpack.c.l.b16 %v416
    %v513 = vunpack.c.h.b16 %v416
    %v514 = vunpack.c.l.b16 %v417
    %v515 = vunpack.c.l.b16 %v418
    %v516 = vunpack.c.h.b16 %v418
    %v517 = vunpack.c.l.b16 %v419
    %v518 = vunpack.c.l.b16 %v420
    %v519 = vunpack.c.h.b16 %v420
    %v520 = vunpack.c.l.b16 %v421
    %v521 = vunpack.c.l.b16 %v422
    %v522 = vunpack.c.h.b16 %v422
    %v523 = vunpack.c.l.b16 %v423
    %v524 = vunpack.c.l.b16 %v424
    %v525 = vunpack.c.h.b16 %v424
    %v526 = vunpack.c.l.b16 %v425
    %v527 = vunpack.c.l.b16 %v426
    %v528 = vunpack.c.h.b16 %v426
    %v529 = vunpack.c.l.b16 %v427
    %v530 = vpack.c.b16 %v509, %v506
    %v531 = vpack.c.b16 %v510, %v507
    %v532 = vpack.c.b16 %v511, %v508
    %v533 = vpack.c.b16 %v515, %v512
    %v534 = vpack.c.b16 %v516, %v513
    %v535 = vpack.c.b16 %v517, %v514
    %v536 = vpack.c.b16 %v521, %v518
    %v537 = vpack.c.b16 %v522, %v519
    %v538 = vpack.c.b16 %v523, %v520
    %v539 = vpack.c.b16 %v527, %v524
    %v540 = vpack.c.b16 %v528, %v525
    %v541 = vpack.c.b16 %v529, %v526
    %vm554 = vcmask 523264
    %v556 = vsel %vm554, %v481, 0
    %v559 = vsel %vm554, %v489, 0
    %561 = vmatprep.subr.bf16.mxu0 0
    %562 = vmatpush1.bf16.msra.mxu0 0
    %563 = vmatprep.subr.bf16.mxu0 0
    %564 = vmatpush1.bf16.msra.mxu0 0
    %565 = vmatprep.subr.bf16.mxu0 0
    %566 = vmatpush1.bf16.msra.mxu0 0
    %567 = vmatprep.subr.bf16.mxu0 0
    %568 = vmatpush1.bf16.msra.mxu0 0
    %569 = vmatprep.subr.bf16.mxu0 %v540
    %570 = vmatpush1.bf16.msra.mxu0 %v539
    %571 = vmatprep.subr.bf16.mxu0 %v537
    %572 = vmatpush1.bf16.msra.mxu0 %v536
    %573 = vmatprep.subr.bf16.mxu0 %v534
    %574 = vmatpush1.bf16.msra.mxu0 %v533
    %575 = vmatprep.subr.bf16.mxu0 %v531
    %576 = vmatpush1.bf16.msra.mxu0 %v530
    %577 = vmatprep.subr.bf16.mxu0 0
    %578 = vmatpush2.bf16.msra.mxu0 0
    %579 = vmatprep.subr.bf16.mxu0 0
    %580 = vmatpush2.bf16.msra.mxu0 0
    %581 = vmatprep.subr.bf16.mxu0 0
    %582 = vmatpush2.bf16.msra.mxu0 0
    %583 = vmatprep.subr.bf16.mxu0 0
    %584 = vmatpush2.bf16.msra.mxu0 0
    %585 = vmatprep.subr.bf16.mxu0 0
    %586 = vmatpush2.bf16.msra.mxu0 0
    %587 = vmatprep.subr.bf16.mxu0 0
    %588 = vmatpush2.bf16.msra.mxu0 0
    %589 = vmatprep.subr.bf16.mxu0 0
    %590 = vmatpush2.bf16.msra.mxu0 0
    %591 = vmatprep.subr.bf16.mxu0 0
    %592 = vmatpush2.bf16.msra.mxu0 0
    %593 = vmatprep.mubr.bf16.mxu0 0
    %594 = vmatmul.mubr.bf16.gmra.mxu0 %v556
    %v595 = vpop.f32.mrf.mxu0
    %v596 = vadd.f32 0.0, %v595
    %v597 = vpop.f32.mrf.mxu0
    %v598 = vadd.f32 0.0, %v597
    %v599 = vpop.f32.mrf.mxu0
    %v600 = vadd.f32 0.0, %v599
    %v601 = vpop.f32.mrf.mxu0
    %v602 = vadd.f32 0.0, %v601
    %603 = vmatprep.mubr.bf16.mxu0 0
    %604 = vmatmul.mubr.bf16.gmra.mxu0 %v559
    %v605 = vpop.f32.mrf.mxu0
    %v606 = vadd.f32 0.0, %v605
    %v607 = vpop.f32.mrf.mxu0
    %v608 = vadd.f32 0.0, %v607
    %v609 = vpop.f32.mrf.mxu0
    %v610 = vpop.f32.mrf.mxu0
    %611 = vdwg.mxu0
    %612 = vmatprep.subr.bf16.mxu0 0
    %613 = vmatpush1.bf16.msra.mxu0 0
    %614 = vmatprep.subr.bf16.mxu0 0
    %615 = vmatpush1.bf16.msra.mxu0 0
    %616 = vmatprep.subr.bf16.mxu0 0
    %617 = vmatpush1.bf16.msra.mxu0 0
    %618 = vmatprep.subr.bf16.mxu0 0
    %619 = vmatpush1.bf16.msra.mxu0 0
    %620 = vmatprep.subr.bf16.mxu0 0
    %621 = vmatpush1.bf16.msra.mxu0 %v541
    %622 = vmatprep.subr.bf16.mxu0 0
    %623 = vmatpush1.bf16.msra.mxu0 %v538
    %624 = vmatprep.subr.bf16.mxu0 0
    %625 = vmatpush1.bf16.msra.mxu0 %v535
    %626 = vmatprep.subr.bf16.mxu0 0
    %627 = vmatpush1.bf16.msra.mxu0 %v532
    %628 = vmatprep.subr.bf16.mxu0 0
    %629 = vmatpush2.bf16.msra.mxu0 0
    %630 = vmatprep.subr.bf16.mxu0 0
    %631 = vmatpush2.bf16.msra.mxu0 0
    %632 = vmatprep.subr.bf16.mxu0 0
    %633 = vmatpush2.bf16.msra.mxu0 0
    %634 = vmatprep.subr.bf16.mxu0 0
    %635 = vmatpush2.bf16.msra.mxu0 0
    %636 = vmatprep.subr.bf16.mxu0 0
    %637 = vmatpush2.bf16.msra.mxu0 0
    %638 = vmatprep.subr.bf16.mxu0 0
    %639 = vmatpush2.bf16.msra.mxu0 0
    %640 = vmatprep.subr.bf16.mxu0 0
    %641 = vmatpush2.bf16.msra.mxu0 0
    %642 = vmatprep.subr.bf16.mxu0 0
    %643 = vmatpush2.bf16.msra.mxu0 0
    %644 = vmatprep.mubr.bf16.mxu0 0
    %645 = vmatmul.mubr.bf16.gmra.mxu0 %v556
    %v646 = vpop.f32.mrf.mxu0
    %v647 = vadd.f32 0.0, %v646
    %v648 = vpop.f32.mrf.mxu0
    %v649 = vpop.f32.mrf.mxu0
    %v650 = vadd.f32 0.0, %v649
    %v651 = vpop.f32.mrf.mxu0
    %652 = vmatprep.mubr.bf16.mxu0 0
    %653 = vmatmul.mubr.bf16.gmra.mxu0 %v559
    %v654 = vpop.f32.mrf.mxu0
    %v655 = vadd.f32 0.0, %v654
    %v656 = vpop.f32.mrf.mxu0
    %v657 = vpop.f32.mrf.mxu0
    %v658 = vpop.f32.mrf.mxu0
    %659 = vdwg.mxu0
    %v669 = vcombine.low %v596, %v598
    %v670 = vcombine.high %v596, %v598
    %v671 = vcombine.high %v647, %v647
    %v672 = vcombine.low %v600, %v602
    %v673 = vcombine.high %v600, %v602
    %v674 = vcombine.high %v650, %v650
    %v675 = vcombine.low %v606, %v608
    %v676 = vcombine.high %v606, %v608
    %v677 = vcombine.high %v655, %v655
    %v678 = vcombine.low %v669, %v670
    %v679 = vcombine.low %v673, %v675
    %v680 = vrot.slane %v678, 7
    %v681 = vrot.slane %v672, 7
    %v682 = vsel %vm285, %v680, %v681
    %v683 = vrot.slane %v679, 7
    %v684 = vrot.slane %v676, 7
    %v685 = vsel %vm285, %v683, %v684
    %v690 = vsel %vm285, 0.0, %v680
    %v691 = vsel %vm285, 0.0, %v683
    %v692 = vcombine.high %v669, %v670
    %v693 = vcombine.high %v672, %v672
    %v694 = vcombine.high %v673, %v675
    %v695 = vcombine.high %v676, %v676
    %v700 = vadd.f32 %v690, %v692
    %v701 = vadd.f32 %v682, %v693
    %v702 = vadd.f32 %v691, %v694
    %v703 = vadd.f32 %v685, %v695
    %v704 = vcombine.low %v647, %v671
    %v705 = vcombine.low %v674, %v655
    %v706 = vrot.slane %v704, 1
    %v707 = vrot.slane %v650, 1
    %v708 = vsel %vm354, %v706, %v707
    %v709 = vrot.slane %v705, 1
    %v710 = vrot.slane %v677, 1
    %v711 = vsel %vm354, %v709, %v710
    %v716 = vsel %vm363, %v707, 0.0
    %v717 = vsel %vm363, %v710, 0.0
    %v718 = vadd.f32 %v700, %v708
    %v719 = vadd.f32 %v701, %v716
    %v720 = vadd.f32 %v702, %v711
    %v721 = vadd.f32 %v703, %v717
    %v723 = vlaneseq
    %v724 = vshrl.u32 %v723, 7
    %v725 = vsub.s32 0, %v724
    %v726 = vrot.slane %v428, %v725
    %v728 = vadd.f32 %v718, %v726
    %v729 = vadd.f32 %v719, %v726
    %v730 = vadd.f32 %v720, %v726
    %v731 = vadd.f32 %v721, %v726
    %v732 = vmax.f32 %v728, 0.0
    %v733 = vmax.f32 %v729, 0.0
    %v734 = vmax.f32 %v730, 0.0
    %v735 = vmax.f32 %v731, 0.0
    %v736 = vld [vmem:[#allocation13] sm:$0xff]
    %v737 = vld [vmem:[#allocation13 + $0x8] sm:$0xff]
    %v738 = vld [vmem:[#allocation13 + $0x10] sm:$0xff]
    %v739 = vld [vmem:[#allocation13 + $0x18] sm:$0xff]
    %v740 = vld [vmem:[#allocation13 + $0x20] sm:$0xff]
    %v741 = vld [vmem:[#allocation13 + $0x28] sm:$0xff]
    %v742 = vld [vmem:[#allocation13 + $0x30] sm:$0xff]
    %v743 = vld [vmem:[#allocation13 + $0x38] sm:$0xff]
    %v744 = vld [vmem:[#allocation13 + $0x40] sm:$0xff]
    %v745 = vld [vmem:[#allocation13 + $0x48] sm:$0xff]
    %v746 = vld [vmem:[#allocation13 + $0x50] sm:$0xff]
    %v747 = vld [vmem:[#allocation13 + $0x58] sm:$0xff]
    %v748 = vld [vmem:[#allocation13 + $0x60] sm:$0xff]
    %v749 = vld [vmem:[#allocation13 + $0x68] sm:$0xff]
    %v750 = vld [vmem:[#allocation13 + $0x70] sm:$0xff]
    %v751 = vld [vmem:[#allocation13 + $0x78] sm:$0xff]
    %v752 = vld [vmem:[#allocation13 + $0x80] sm:$0xff]
    %v753 = vld [vmem:[#allocation13 + $0x88] sm:$0xff]
    %v754 = vld [vmem:[#allocation13 + $0x90] sm:$0xff]
    %v755 = vld [vmem:[#allocation13 + $0x98] sm:$0xff]
    %v756 = vld [vmem:[#allocation13 + $0xa0] sm:$0xff]
    %v757 = vld [vmem:[#allocation13 + $0xa8] sm:$0xff]
    %v758 = vld [vmem:[#allocation13 + $0xb0] sm:$0xff]
    %v759 = vld [vmem:[#allocation13 + $0xb8] sm:$0xff]
    %v760 = vld [vmem:[#allocation13 + $0xc0] sm:$0xff]
    %v761 = vld [vmem:[#allocation13 + $0xc8] sm:$0xff]
    %v762 = vld [vmem:[#allocation13 + $0xd0] sm:$0xff]
    %v763 = vld [vmem:[#allocation13 + $0xd8] sm:$0xff]
    %v764 = vld [vmem:[#allocation13 + $0xe0] sm:$0xff]
    %v765 = vld [vmem:[#allocation13 + $0xe8] sm:$0xff]
    %v766 = vld [vmem:[#allocation13 + $0xf0] sm:$0xff]
    %v767 = vld [vmem:[#allocation13 + $0xf8] sm:$0xff]
    %v768 = vld [vmem:[#allocation13 + $0x100] sm:$0xff]
    %v769 = vld [vmem:[#allocation13 + $0x108] sm:$0xff]
    %v770 = vld [vmem:[#allocation13 + $0x110] sm:$0xff]
    %v771 = vld [vmem:[#allocation13 + $0x118] sm:$0xff]
    %v772 = vld [vmem:[#allocation13 + $0x120] sm:$0xff]
    %v773 = vld [vmem:[#allocation13 + $0x128] sm:$0xff]
    %v774 = vld [vmem:[#allocation13 + $0x130] sm:$0xff]
    %v775 = vld [vmem:[#allocation13 + $0x138] sm:$0xff]
    %v776 = vld [vmem:[#allocation13 + $0x140] sm:$0xff]
    %v777 = vld [vmem:[#allocation13 + $0x148] sm:$0xff]
    %v778 = vld [vmem:[#allocation13 + $0x150] sm:$0xff]
    %v779 = vld [vmem:[#allocation13 + $0x158] sm:$0xff]
    %v780 = vld [vmem:[#allocation13 + $0x160] sm:$0xff]
    %v781 = vld [vmem:[#allocation13 + $0x168] sm:$0xff]
    %v782 = vld [vmem:[#allocation13 + $0x170] sm:$0xff]
    %v783 = vld [vmem:[#allocation13 + $0x178] sm:$0xff]
    %v784 = vld [vmem:[#allocation14] sm:$0x3]
    %v785 = vpack.c.bf16 %v733, %v732
    %v786 = vpack.c.bf16 %v735, %v734
    %v789 = vcombine.high %v785, %v785
    %v791 = vunpack.c.l.s4 1983009808
    %v792 = vunpack.c.0.s8 %v791
    %v793 = vlaneseq
    %v794 = vshrl.u32 %v793, 7
    %v795 = vsub.s32 %v792, %v794
    %v796 = vrot.slane %v785, %v795
    %v798 = vunpack.c.l.s4 1983009808
    %v799 = vunpack.c.0.s8 %v798
    %v800 = vlaneseq
    %v801 = vshrl.u32 %v800, 7
    %v802 = vsub.s32 %v799, %v801
    %v803 = vrot.slane %v789, %v802
    %v804 = vcombine.high %v796, %v796
    %v805 = vcombine.high %v786, %v786
    %v807 = vunpack.c.l.s4 1983009808
    %v808 = vunpack.c.0.s8 %v807
    %v809 = vlaneseq
    %v810 = vshrl.u32 %v809, 7
    %v811 = vsub.s32 %v808, %v810
    %v812 = vrot.slane %v786, %v811
    %v814 = vunpack.c.l.s4 1983009808
    %v815 = vunpack.c.0.s8 %v814
    %v816 = vlaneseq
    %v817 = vshrl.u32 %v816, 7
    %v818 = vsub.s32 %v815, %v817
    %v819 = vrot.slane %v805, %v818
    %v820 = vcombine.high %v812, %v812
    %v821 = vcombine.low %v796, %v804
    %v822 = vcombine.low %v803, %v812
    %v824 = vunpack.c.l.s4 1983009808
    %v825 = vunpack.c.0.s8 %v824
    %v826 = vlaneseq
    %v827 = vshrl.u32 %v826, 7
    %v828 = vsub.s32 %v825, %v827
    %v829 = vrot.slane %v821, %v828
    %v831 = vunpack.c.l.s4 1983009808
    %v832 = vunpack.c.0.s8 %v831
    %v833 = vlaneseq
    %v834 = vshrl.u32 %v833, 7
    %v835 = vsub.s32 %v832, %v834
    %v836 = vrot.slane %v822, %v835
    %v837 = vcombine.low %v829, %v836
    %v838 = vcombine.low %v820, %v819
    %v840 = vunpack.c.l.s4 1983009808
    %v841 = vunpack.c.0.s8 %v840
    %v842 = vlaneseq
    %v843 = vshrl.u32 %v842, 7
    %v844 = vsub.s32 %v841, %v843
    %v845 = vrot.slane %v838, %v844
    %v896 = vunpack.c.l.b16 %v736
    %v897 = vunpack.c.h.b16 %v736
    %v898 = vunpack.c.l.b16 %v737
    %v899 = vunpack.c.h.b16 %v737
    %v900 = vunpack.c.l.b16 %v738
    %v901 = vunpack.c.h.b16 %v738
    %v902 = vunpack.c.l.b16 %v739
    %v903 = vunpack.c.h.b16 %v739
    %v904 = vunpack.c.l.b16 %v740
    %v905 = vunpack.c.h.b16 %v740
    %v906 = vunpack.c.l.b16 %v741
    %v907 = vunpack.c.h.b16 %v741
    %v908 = vunpack.c.l.b16 %v742
    %v909 = vunpack.c.h.b16 %v742
    %v910 = vunpack.c.l.b16 %v743
    %v911 = vunpack.c.h.b16 %v743
    %v912 = vunpack.c.l.b16 %v744
    %v913 = vunpack.c.h.b16 %v744
    %v914 = vunpack.c.l.b16 %v745
    %v915 = vunpack.c.h.b16 %v745
    %v916 = vunpack.c.l.b16 %v746
    %v917 = vunpack.c.h.b16 %v746
    %v918 = vunpack.c.l.b16 %v747
    %v919 = vunpack.c.h.b16 %v747
    %v920 = vunpack.c.l.b16 %v748
    %v921 = vunpack.c.h.b16 %v748
    %v922 = vunpack.c.l.b16 %v749
    %v923 = vunpack.c.h.b16 %v749
    %v924 = vunpack.c.l.b16 %v750
    %v925 = vunpack.c.h.b16 %v750
    %v926 = vunpack.c.l.b16 %v751
    %v927 = vunpack.c.h.b16 %v751
    %v928 = vunpack.c.l.b16 %v752
    %v929 = vunpack.c.h.b16 %v752
    %v930 = vunpack.c.l.b16 %v753
    %v931 = vunpack.c.h.b16 %v753
    %v932 = vunpack.c.l.b16 %v754
    %v933 = vunpack.c.h.b16 %v754
    %v934 = vunpack.c.l.b16 %v755
    %v935 = vunpack.c.h.b16 %v755
    %v936 = vunpack.c.l.b16 %v756
    %v937 = vunpack.c.h.b16 %v756
    %v938 = vunpack.c.l.b16 %v757
    %v939 = vunpack.c.h.b16 %v757
    %v940 = vunpack.c.l.b16 %v758
    %v941 = vunpack.c.h.b16 %v758
    %v942 = vunpack.c.l.b16 %v759
    %v943 = vunpack.c.h.b16 %v759
    %v944 = vunpack.c.l.b16 %v760
    %v945 = vunpack.c.h.b16 %v760
    %v946 = vunpack.c.l.b16 %v761
    %v947 = vunpack.c.h.b16 %v761
    %v948 = vunpack.c.l.b16 %v762
    %v949 = vunpack.c.h.b16 %v762
    %v950 = vunpack.c.l.b16 %v763
    %v951 = vunpack.c.h.b16 %v763
    %v952 = vunpack.c.l.b16 %v764
    %v953 = vunpack.c.h.b16 %v764
    %v954 = vunpack.c.l.b16 %v765
    %v955 = vunpack.c.h.b16 %v765
    %v956 = vunpack.c.l.b16 %v766
    %v957 = vunpack.c.h.b16 %v766
    %v958 = vunpack.c.l.b16 %v767
    %v959 = vunpack.c.h.b16 %v767
    %v960 = vunpack.c.l.b16 %v768
    %v961 = vunpack.c.h.b16 %v768
    %v962 = vunpack.c.l.b16 %v769
    %v963 = vunpack.c.h.b16 %v769
    %v964 = vunpack.c.l.b16 %v770
    %v965 = vunpack.c.h.b16 %v770
    %v966 = vunpack.c.l.b16 %v771
    %v967 = vunpack.c.h.b16 %v771
    %v968 = vunpack.c.l.b16 %v772
    %v969 = vunpack.c.h.b16 %v772
    %v970 = vunpack.c.l.b16 %v773
    %v971 = vunpack.c.h.b16 %v773
    %v972 = vunpack.c.l.b16 %v774
    %v973 = vunpack.c.h.b16 %v774
    %v974 = vunpack.c.l.b16 %v775
    %v975 = vunpack.c.h.b16 %v775
    %v976 = vunpack.c.l.b16 %v776
    %v977 = vunpack.c.h.b16 %v776
    %v978 = vunpack.c.l.b16 %v777
    %v979 = vunpack.c.h.b16 %v777
    %v980 = vunpack.c.l.b16 %v778
    %v981 = vunpack.c.h.b16 %v778
    %v982 = vunpack.c.l.b16 %v779
    %v983 = vunpack.c.h.b16 %v779
    %v984 = vunpack.c.l.b16 %v780
    %v985 = vunpack.c.h.b16 %v780
    %v986 = vunpack.c.l.b16 %v781
    %v987 = vunpack.c.h.b16 %v781
    %v988 = vunpack.c.l.b16 %v782
    %v989 = vunpack.c.h.b16 %v782
    %v990 = vunpack.c.l.b16 %v783
    %v991 = vunpack.c.h.b16 %v783
    %v992 = vpack.c.b16 %v902, %v896
    %v993 = vpack.c.b16 %v903, %v897
    %v994 = vpack.c.b16 %v904, %v898
    %v995 = vpack.c.b16 %v905, %v899
    %v996 = vpack.c.b16 %v906, %v900
    %v997 = vpack.c.b16 %v907, %v901
    %v998 = vpack.c.b16 %v914, %v908
    %v999 = vpack.c.b16 %v915, %v909
    %v1000 = vpack.c.b16 %v916, %v910
    %v1001 = vpack.c.b16 %v917, %v911
    %v1002 = vpack.c.b16 %v918, %v912
    %v1003 = vpack.c.b16 %v919, %v913
    %v1004 = vpack.c.b16 %v926, %v920
    %v1005 = vpack.c.b16 %v927, %v921
    %v1006 = vpack.c.b16 %v928, %v922
    %v1007 = vpack.c.b16 %v929, %v923
    %v1008 = vpack.c.b16 %v930, %v924
    %v1009 = vpack.c.b16 %v931, %v925
    %v1010 = vpack.c.b16 %v938, %v932
    %v1011 = vpack.c.b16 %v939, %v933
    %v1012 = vpack.c.b16 %v940, %v934
    %v1013 = vpack.c.b16 %v941, %v935
    %v1014 = vpack.c.b16 %v942, %v936
    %v1015 = vpack.c.b16 %v943, %v937
    %v1016 = vpack.c.b16 %v950, %v944
    %v1017 = vpack.c.b16 %v951, %v945
    %v1018 = vpack.c.b16 %v952, %v946
    %v1019 = vpack.c.b16 %v953, %v947
    %v1020 = vpack.c.b16 %v954, %v948
    %v1021 = vpack.c.b16 %v955, %v949
    %v1022 = vpack.c.b16 %v962, %v956
    %v1023 = vpack.c.b16 %v963, %v957
    %v1024 = vpack.c.b16 %v964, %v958
    %v1025 = vpack.c.b16 %v965, %v959
    %v1026 = vpack.c.b16 %v966, %v960
    %v1027 = vpack.c.b16 %v967, %v961
    %v1028 = vpack.c.b16 %v974, %v968
    %v1029 = vpack.c.b16 %v975, %v969
    %v1030 = vpack.c.b16 %v976, %v970
    %v1031 = vpack.c.b16 %v977, %v971
    %v1032 = vpack.c.b16 %v978, %v972
    %v1033 = vpack.c.b16 %v979, %v973
    %v1034 = vpack.c.b16 %v986, %v980
    %v1035 = vpack.c.b16 %v987, %v981
    %v1036 = vpack.c.b16 %v988, %v982
    %v1037 = vpack.c.b16 %v989, %v983
    %v1038 = vpack.c.b16 %v990, %v984
    %v1039 = vpack.c.b16 %v991, %v985
    %1088 = vmatprep.subr.bf16.mxu0 %v1035
    %1089 = vmatpush1.bf16.msra.mxu0 %v1034
    %1090 = vmatprep.subr.bf16.mxu0 %v1029
    %1091 = vmatpush1.bf16.msra.mxu0 %v1028
    %1092 = vmatprep.subr.bf16.mxu0 %v1023
    %1093 = vmatpush1.bf16.msra.mxu0 %v1022
    %1094 = vmatprep.subr.bf16.mxu0 %v1017
    %1095 = vmatpush1.bf16.msra.mxu0 %v1016
    %1096 = vmatprep.subr.bf16.mxu0 %v1011
    %1097 = vmatpush1.bf16.msra.mxu0 %v1010
    %1098 = vmatprep.subr.bf16.mxu0 %v1005
    %1099 = vmatpush1.bf16.msra.mxu0 %v1004
    %1100 = vmatprep.subr.bf16.mxu0 %v999
    %1101 = vmatpush1.bf16.msra.mxu0 %v998
    %1102 = vmatprep.subr.bf16.mxu0 %v993
    %1103 = vmatpush1.bf16.msra.mxu0 %v992
    %1104 = vmatprep.subr.bf16.mxu0 0
    %1105 = vmatpush2.bf16.msra.mxu0 0
    %1106 = vmatprep.subr.bf16.mxu0 0
    %1107 = vmatpush2.bf16.msra.mxu0 0
    %1108 = vmatprep.subr.bf16.mxu0 0
    %1109 = vmatpush2.bf16.msra.mxu0 0
    %1110 = vmatprep.subr.bf16.mxu0 0
    %1111 = vmatpush2.bf16.msra.mxu0 0
    %1112 = vmatprep.subr.bf16.mxu0 0
    %1113 = vmatpush2.bf16.msra.mxu0 0
    %1114 = vmatprep.subr.bf16.mxu0 0
    %1115 = vmatpush2.bf16.msra.mxu0 0
    %1116 = vmatprep.subr.bf16.mxu0 0
    %1117 = vmatpush2.bf16.msra.mxu0 0
    %1118 = vmatprep.subr.bf16.mxu0 0
    %1119 = vmatpush2.bf16.msra.mxu0 0
    %1120 = vmatprep.mubr.bf16.mxu0 0
    %1121 = vmatmul.mubr.bf16.gmra.mxu0 %v837
    %v1122 = vpop.f32.mrf.mxu0
    %v1123 = vadd.f32 0.0, %v1122
    %v1124 = vpop.f32.mrf.mxu0
    %v1125 = vadd.f32 0.0, %v1124
    %v1126 = vpop.f32.mrf.mxu0
    %v1127 = vadd.f32 0.0, %v1126
    %v1128 = vpop.f32.mrf.mxu0
    %v1129 = vadd.f32 0.0, %v1128
    %1130 = vmatprep.mubr.bf16.mxu0 0
    %1131 = vmatmul.mubr.bf16.gmra.mxu0 %v845
    %v1132 = vpop.f32.mrf.mxu0
    %v1133 = vadd.f32 0.0, %v1132
    %v1134 = vpop.f32.mrf.mxu0
    %v1135 = vadd.f32 0.0, %v1134
    %v1136 = vpop.f32.mrf.mxu0
    %v1137 = vpop.f32.mrf.mxu0
    %1138 = vdwg.mxu0
    %1139 = vmatprep.subr.bf16.mxu0 %v1037
    %1140 = vmatpush1.bf16.msra.mxu0 %v1036
    %1141 = vmatprep.subr.bf16.mxu0 %v1031
    %1142 = vmatpush1.bf16.msra.mxu0 %v1030
    %1143 = vmatprep.subr.bf16.mxu0 %v1025
    %1144 = vmatpush1.bf16.msra.mxu0 %v1024
    %1145 = vmatprep.subr.bf16.mxu0 %v1019
    %1146 = vmatpush1.bf16.msra.mxu0 %v1018
    %1147 = vmatprep.subr.bf16.mxu0 %v1013
    %1148 = vmatpush1.bf16.msra.mxu0 %v1012
    %1149 = vmatprep.subr.bf16.mxu0 %v1007
    %1150 = vmatpush1.bf16.msra.mxu0 %v1006
    %1151 = vmatprep.subr.bf16.mxu0 %v1001
    %1152 = vmatpush1.bf16.msra.mxu0 %v1000
    %1153 = vmatprep.subr.bf16.mxu0 %v995
    %1154 = vmatpush1.bf16.msra.mxu0 %v994
    %1155 = vmatprep.subr.bf16.mxu0 0
    %1156 = vmatpush2.bf16.msra.mxu0 0
    %1157 = vmatprep.subr.bf16.mxu0 0
    %1158 = vmatpush2.bf16.msra.mxu0 0
    %1159 = vmatprep.subr.bf16.mxu0 0
    %1160 = vmatpush2.bf16.msra.mxu0 0
    %1161 = vmatprep.subr.bf16.mxu0 0
    %1162 = vmatpush2.bf16.msra.mxu0 0
    %1163 = vmatprep.subr.bf16.mxu0 0
    %1164 = vmatpush2.bf16.msra.mxu0 0
    %1165 = vmatprep.subr.bf16.mxu0 0
    %1166 = vmatpush2.bf16.msra.mxu0 0
    %1167 = vmatprep.subr.bf16.mxu0 0
    %1168 = vmatpush2.bf16.msra.mxu0 0
    %1169 = vmatprep.subr.bf16.mxu0 0
    %1170 = vmatpush2.bf16.msra.mxu0 0
    %1171 = vmatprep.mubr.bf16.mxu0 0
    %1172 = vmatmul.mubr.bf16.gmra.mxu0 %v837
    %v1173 = vpop.f32.mrf.mxu0
    %v1174 = vadd.f32 0.0, %v1173
    %v1175 = vpop.f32.mrf.mxu0
    %v1176 = vadd.f32 0.0, %v1175
    %v1177 = vpop.f32.mrf.mxu0
    %v1178 = vadd.f32 0.0, %v1177
    %v1179 = vpop.f32.mrf.mxu0
    %v1180 = vadd.f32 0.0, %v1179
    %1181 = vmatprep.mubr.bf16.mxu0 0
    %1182 = vmatmul.mubr.bf16.gmra.mxu0 %v845
    %v1183 = vpop.f32.mrf.mxu0
    %v1184 = vadd.f32 0.0, %v1183
    %v1185 = vpop.f32.mrf.mxu0
    %v1186 = vadd.f32 0.0, %v1185
    %v1187 = vpop.f32.mrf.mxu0
    %v1188 = vpop.f32.mrf.mxu0
    %1189 = vdwg.mxu0
    %1190 = vmatprep.subr.bf16.mxu0 %v1039
    %1191 = vmatpush1.bf16.msra.mxu0 %v1038
    %1192 = vmatprep.subr.bf16.mxu0 %v1033
    %1193 = vmatpush1.bf16.msra.mxu0 %v1032
    %1194 = vmatprep.subr.bf16.mxu0 %v1027
    %1195 = vmatpush1.bf16.msra.mxu0 %v1026
    %1196 = vmatprep.subr.bf16.mxu0 %v1021
    %1197 = vmatpush1.bf16.msra.mxu0 %v1020
    %1198 = vmatprep.subr.bf16.mxu0 %v1015
    %1199 = vmatpush1.bf16.msra.mxu0 %v1014
    %1200 = vmatprep.subr.bf16.mxu0 %v1009
    %1201 = vmatpush1.bf16.msra.mxu0 %v1008
    %1202 = vmatprep.subr.bf16.mxu0 %v1003
    %1203 = vmatpush1.bf16.msra.mxu0 %v1002
    %1204 = vmatprep.subr.bf16.mxu0 %v997
    %1205 = vmatpush1.bf16.msra.mxu0 %v996
    %1206 = vmatprep.subr.bf16.mxu0 0
    %1207 = vmatpush2.bf16.msra.mxu0 0
    %1208 = vmatprep.subr.bf16.mxu0 0
    %1209 = vmatpush2.bf16.msra.mxu0 0
    %1210 = vmatprep.subr.bf16.mxu0 0
    %1211 = vmatpush2.bf16.msra.mxu0 0
    %1212 = vmatprep.subr.bf16.mxu0 0
    %1213 = vmatpush2.bf16.msra.mxu0 0
    %1214 = vmatprep.subr.bf16.mxu0 0
    %1215 = vmatpush2.bf16.msra.mxu0 0
    %1216 = vmatprep.subr.bf16.mxu0 0
    %1217 = vmatpush2.bf16.msra.mxu0 0
    %1218 = vmatprep.subr.bf16.mxu0 0
    %1219 = vmatpush2.bf16.msra.mxu0 0
    %1220 = vmatprep.subr.bf16.mxu0 0
    %1221 = vmatpush2.bf16.msra.mxu0 0
    %1222 = vmatprep.mubr.bf16.mxu0 0
    %1223 = vmatmul.mubr.bf16.gmra.mxu0 %v837
    %v1224 = vpop.f32.mrf.mxu0
    %v1225 = vadd.f32 0.0, %v1224
    %v1226 = vpop.f32.mrf.mxu0
    %v1227 = vadd.f32 0.0, %v1226
    %v1228 = vpop.f32.mrf.mxu0
    %v1229 = vadd.f32 0.0, %v1228
    %v1230 = vpop.f32.mrf.mxu0
    %v1231 = vadd.f32 0.0, %v1230
    %1232 = vmatprep.mubr.bf16.mxu0 0
    %1233 = vmatmul.mubr.bf16.gmra.mxu0 %v845
    %v1234 = vpop.f32.mrf.mxu0
    %v1235 = vadd.f32 0.0, %v1234
    %v1236 = vpop.f32.mrf.mxu0
    %v1237 = vadd.f32 0.0, %v1236
    %v1238 = vpop.f32.mrf.mxu0
    %v1239 = vpop.f32.mrf.mxu0
    %1240 = vdwg.mxu0
    %v1259 = vcombine.low %v1123, %v1125
    %v1260 = vcombine.high %v1123, %v1125
    %v1261 = vcombine.low %v1174, %v1176
    %v1262 = vcombine.high %v1174, %v1176
    %v1263 = vcombine.low %v1225, %v1227
    %v1264 = vcombine.high %v1225, %v1227
    %v1265 = vcombine.low %v1127, %v1129
    %v1266 = vcombine.high %v1127, %v1129
    %v1267 = vcombine.low %v1178, %v1180
    %v1268 = vcombine.high %v1178, %v1180
    %v1269 = vcombine.low %v1229, %v1231
    %v1270 = vcombine.high %v1229, %v1231
    %v1271 = vcombine.low %v1133, %v1135
    %v1272 = vcombine.high %v1133, %v1135
    %v1273 = vcombine.low %v1184, %v1186
    %v1274 = vcombine.high %v1184, %v1186
    %v1275 = vcombine.low %v1235, %v1237
    %v1276 = vcombine.high %v1235, %v1237
    %v1279 = vcombine.low %v1259, %v1260
    %v1280 = vcombine.high %v1259, %v1260
    %v1281 = vcombine.high %v1265, %v1265
    %v1282 = vcombine.low %v1266, %v1271
    %v1283 = vcombine.high %v1266, %v1271
    %v1284 = vcombine.high %v1272, %v1272
    %v1285 = vrot.slane %v1279, 7
    %v1286 = vrot.slane %v1280, 7
    %v1287 = vrot.slane %v1265, 7
    %v1288 = vsel %vm285, %v1285, %v1287
    %v1289 = vrot.slane %v1281, 7
    %v1290 = vsel %vm285, %v1286, %v1289
    %v1291 = vrot.slane %v1282, 7
    %v1292 = vrot.slane %v1283, 7
    %v1293 = vrot.slane %v1272, 7
    %v1294 = vsel %vm285, %v1291, %v1293
    %v1295 = vrot.slane %v1284, 7
    %v1296 = vsel %vm285, %v1292, %v1295
    %v1305 = vsel %vm285, 0.0, %v1285
    %v1306 = vsel %vm285, 0.0, %v1286
    %v1307 = vsel %vm285, 0.0, %v1291
    %v1308 = vsel %vm285, 0.0, %v1292
    %v1309 = vcombine.low %v1261, %v1262
    %v1310 = vcombine.high %v1261, %v1262
    %v1311 = vcombine.high %v1267, %v1267
    %v1312 = vcombine.low %v1268, %v1273
    %v1313 = vcombine.high %v1268, %v1273
    %v1314 = vcombine.high %v1274, %v1274
    %v1321 = vadd.f32 %v1305, %v1309
    %v1322 = vadd.f32 %v1306, %v1310
    %v1323 = vadd.f32 %v1288, %v1267
    %v1324 = vadd.f32 %v1290, %v1311
    %v1325 = vadd.f32 %v1307, %v1312
    %v1326 = vadd.f32 %v1308, %v1313
    %v1327 = vadd.f32 %v1294, %v1274
    %v1328 = vadd.f32 %v1296, %v1314
    %v1329 = vcombine.low %v1263, %v1264
    %v1330 = vcombine.high %v1263, %v1264
    %v1331 = vcombine.high %v1269, %v1269
    %v1332 = vcombine.low %v1270, %v1275
    %v1333 = vcombine.high %v1270, %v1275
    %v1334 = vcombine.high %v1276, %v1276
    %v1335 = vrot.slane %v1329, 1
    %v1336 = vrot.slane %v1269, 1
    %v1337 = vsel %vm354, %v1335, %v1336
    %v1338 = vrot.slane %v1330, 1
    %v1339 = vrot.slane %v1331, 1
    %v1340 = vsel %vm354, %v1338, %v1339
    %v1341 = vrot.slane %v1332, 1
    %v1342 = vrot.slane %v1276, 1
    %v1343 = vsel %vm354, %v1341, %v1342
    %v1344 = vrot.slane %v1333, 1
    %v1345 = vrot.slane %v1334, 1
    %v1346 = vsel %vm354, %v1344, %v1345
    %v1355 = vsel %vm363, %v1336, 0.0
    %v1356 = vsel %vm363, %v1339, 0.0
    %v1357 = vsel %vm363, %v1342, 0.0
    %v1358 = vsel %vm363, %v1345, 0.0
    %v1359 = vadd.f32 %v1321, %v1337
    %v1360 = vadd.f32 %v1322, %v1340
    %v1361 = vadd.f32 %v1323, %v1355
    %v1362 = vadd.f32 %v1324, %v1356
    %v1363 = vadd.f32 %v1325, %v1343
    %v1364 = vadd.f32 %v1326, %v1346
    %v1365 = vadd.f32 %v1327, %v1357
    %v1366 = vadd.f32 %v1328, %v1358
    %v1368 = vlaneseq
    %v1369 = vshrl.u32 %v1368, 7
    %v1370 = vsub.s32 0, %v1369
    %v1371 = vrot.slane %v784, %v1370
    %v1372 = vlaneseq
    %v1373 = vshrl.u32 %v1372, 7
    %v1374 = vsub.s32 1, %v1373
    %v1375 = vrot.slane %v784, %v1374
    %v1378 = vadd.f32 %v1359, %v1371
    %v1379 = vadd.f32 %v1360, %v1375
    %v1380 = vadd.f32 %v1361, %v1371
    %v1381 = vadd.f32 %v1362, %v1375
    %v1382 = vadd.f32 %v1363, %v1371
    %v1383 = vadd.f32 %v1364, %v1375
    %v1384 = vadd.f32 %v1365, %v1371
    %v1385 = vadd.f32 %v1366, %v1375
    %v1386 = vmax.f32 %v1378, 0.0
    %v1387 = vmax.f32 %v1379, 0.0
    %v1388 = vmax.f32 %v1380, 0.0
    %v1389 = vmax.f32 %v1381, 0.0
    %v1390 = vmax.f32 %v1382, 0.0
    %v1391 = vmax.f32 %v1383, 0.0
    %v1392 = vmax.f32 %v1384, 0.0
    %v1393 = vmax.f32 %v1385, 0.0
    %v1394 = vpack.c.bf16 %v1388, %v1386
    %v1395 = vpack.c.bf16 %v1389, %v1387
    %v1396 = vpack.c.bf16 %v1392, %v1390
    %v1397 = vpack.c.bf16 %v1393, %v1391
    %v1398 = vld [vmem:[%s7] sm:$0xf]
    %v1399 = vld [vmem:[%s7 + $0x4] sm:$0xf]
    %v1400 = vld [vmem:[%s7 + $0x8] sm:$0xf]
    %v1401 = vld [vmem:[%s7 + $0xc] sm:$0xf]
    %v1402 = vld [vmem:[%s7 + $0x10] sm:$0xf]
    %v1403 = vld [vmem:[%s7 + $0x14] sm:$0xf]
    %v1404 = vld [vmem:[%s7 + $0x18] sm:$0xf]
    %v1405 = vld [vmem:[%s7 + $0x1c] sm:$0xf]
    %v1406 = vld [vmem:[%s7 + $0x20] sm:$0xf]
    %v1407 = vld [vmem:[%s7 + $0x24] sm:$0xf]
    %v1408 = vld [vmem:[%s7 + $0x28] sm:$0xf]
    %v1409 = vld [vmem:[%s7 + $0x2c] sm:$0xf]
    %v1410 = vld [vmem:[%s7 + $0x30] sm:$0xf]
    %v1411 = vld [vmem:[%s7 + $0x34] sm:$0xf]
    %v1412 = vld [vmem:[%s7 + $0x38] sm:$0xf]
    %v1413 = vld [vmem:[%s7 + $0x3c] sm:$0xf]
    %v1414 = vld [vmem:[%s7 + $0x40] sm:$0xf]
    %v1415 = vld [vmem:[%s7 + $0x44] sm:$0xf]
    %v1416 = vld [vmem:[%s7 + $0x48] sm:$0xf]
    %v1417 = vld [vmem:[%s7 + $0x4c] sm:$0xf]
    %v1418 = vld [vmem:[%s7 + $0x50] sm:$0xf]
    %v1419 = vld [vmem:[%s7 + $0x54] sm:$0xf]
    %v1420 = vld [vmem:[%s7 + $0x58] sm:$0xf]
    %v1421 = vld [vmem:[%s7 + $0x5c] sm:$0xf]
    %v1422 = vld [vmem:[%s7 + $0x60] sm:$0xf]
    %v1423 = vld [vmem:[%s7 + $0x64] sm:$0xf]
    %v1424 = vld [vmem:[%s7 + $0x68] sm:$0xf]
    %v1425 = vld [vmem:[%s7 + $0x6c] sm:$0xf]
    %v1426 = vld [vmem:[%s7 + $0x70] sm:$0xf]
    %v1427 = vld [vmem:[%s7 + $0x74] sm:$0xf]
    %v1428 = vld [vmem:[%s7 + $0x78] sm:$0xf]
    %v1429 = vld [vmem:[%s7 + $0x7c] sm:$0xf]
    %v1430 = vld [vmem:[#allocation16] sm:$0x1]
    %v1432 = vlaneseq
    %v1433 = vshrl.u32 %v1432, 7
    %v1434 = vsub.s32 0, %v1433
    %v1435 = vrot.slane %v1430, %v1434
    %v1440 = vcombine.low %v1394, %v1395
    %v1441 = vcombine.high %v1394, %v1395
    %v1443 = vunpack.c.l.s4 1983009808
    %v1444 = vunpack.c.0.s8 %v1443
    %v1445 = vlaneseq
    %v1446 = vshrl.u32 %v1445, 7
    %v1447 = vsub.s32 %v1444, %v1446
    %v1448 = vrot.slane %v1440, %v1447
    %v1450 = vunpack.c.l.s4 1983009808
    %v1451 = vunpack.c.0.s8 %v1450
    %v1452 = vlaneseq
    %v1453 = vshrl.u32 %v1452, 7
    %v1454 = vsub.s32 %v1451, %v1453
    %v1455 = vrot.slane %v1441, %v1454
    %v1456 = vcombine.high %v1448, %v1448
    %v1457 = vcombine.low %v1396, %v1397
    %v1458 = vcombine.high %v1396, %v1397
    %v1460 = vunpack.c.l.s4 1983009808
    %v1461 = vunpack.c.0.s8 %v1460
    %v1462 = vlaneseq
    %v1463 = vshrl.u32 %v1462, 7
    %v1464 = vsub.s32 %v1461, %v1463
    %v1465 = vrot.slane %v1457, %v1464
    %v1467 = vunpack.c.l.s4 1983009808
    %v1468 = vunpack.c.0.s8 %v1467
    %v1469 = vlaneseq
    %v1470 = vshrl.u32 %v1469, 7
    %v1471 = vsub.s32 %v1468, %v1470
    %v1472 = vrot.slane %v1458, %v1471
    %v1473 = vcombine.high %v1465, %v1465
    %v1474 = vcombine.high %v1435, %v1435
    %v1475 = vcombine.low %v1448, %v1456
    %v1476 = vcombine.low %v1455, %v1465
    %v1478 = vunpack.c.l.s4 1983009808
    %v1479 = vunpack.c.0.s8 %v1478
    %v1480 = vlaneseq
    %v1481 = vshrl.u32 %v1480, 7
    %v1482 = vsub.s32 %v1479, %v1481
    %v1483 = vrot.slane %v1475, %v1482
    %v1485 = vunpack.c.l.s4 1983009808
    %v1486 = vunpack.c.0.s8 %v1485
    %v1487 = vlaneseq
    %v1488 = vshrl.u32 %v1487, 7
    %v1489 = vsub.s32 %v1486, %v1488
    %v1490 = vrot.slane %v1476, %v1489
    %v1491 = vcombine.low %v1483, %v1490
    %v1492 = vcombine.high %v1483, %v1490
    %v1493 = vcombine.low %v1473, %v1472
    %v1495 = vunpack.c.l.s4 1983009808
    %v1496 = vunpack.c.0.s8 %v1495
    %v1497 = vlaneseq
    %v1498 = vshrl.u32 %v1497, 7
    %v1499 = vsub.s32 %v1496, %v1498
    %v1500 = vrot.slane %v1493, %v1499
    %v1501 = vcombine.high %v1500, %v1500
    %v1538 = vunpack.c.l.b16 %v1398
    %v1539 = vunpack.c.l.b16 %v1399
    %v1540 = vunpack.c.l.b16 %v1400
    %v1541 = vunpack.c.l.b16 %v1401
    %v1542 = vunpack.c.l.b16 %v1402
    %v1543 = vunpack.c.l.b16 %v1403
    %v1544 = vunpack.c.l.b16 %v1404
    %v1545 = vunpack.c.l.b16 %v1405
    %v1546 = vunpack.c.l.b16 %v1406
    %v1547 = vunpack.c.l.b16 %v1407
    %v1548 = vunpack.c.l.b16 %v1408
    %v1549 = vunpack.c.l.b16 %v1409
    %v1550 = vunpack.c.l.b16 %v1410
    %v1551 = vunpack.c.l.b16 %v1411
    %v1552 = vunpack.c.l.b16 %v1412
    %v1553 = vunpack.c.l.b16 %v1413
    %v1554 = vunpack.c.l.b16 %v1414
    %v1555 = vunpack.c.l.b16 %v1415
    %v1556 = vunpack.c.l.b16 %v1416
    %v1557 = vunpack.c.l.b16 %v1417
    %v1558 = vunpack.c.l.b16 %v1418
    %v1559 = vunpack.c.l.b16 %v1419
    %v1560 = vunpack.c.l.b16 %v1420
    %v1561 = vunpack.c.l.b16 %v1421
    %v1562 = vunpack.c.l.b16 %v1422
    %v1563 = vunpack.c.l.b16 %v1423
    %v1564 = vunpack.c.l.b16 %v1424
    %v1565 = vunpack.c.l.b16 %v1425
    %v1566 = vunpack.c.l.b16 %v1426
    %v1567 = vunpack.c.l.b16 %v1427
    %v1568 = vunpack.c.l.b16 %v1428
    %v1569 = vunpack.c.l.b16 %v1429
    %v1570 = vpack.c.b16 %v1539, %v1538
    %v1571 = vpack.c.b16 %v1541, %v1540
    %v1572 = vpack.c.b16 %v1543, %v1542
    %v1573 = vpack.c.b16 %v1545, %v1544
    %v1574 = vpack.c.b16 %v1547, %v1546
    %v1575 = vpack.c.b16 %v1549, %v1548
    %v1576 = vpack.c.b16 %v1551, %v1550
    %v1577 = vpack.c.b16 %v1553, %v1552
    %v1578 = vpack.c.b16 %v1555, %v1554
    %v1579 = vpack.c.b16 %v1557, %v1556
    %v1580 = vpack.c.b16 %v1559, %v1558
    %v1581 = vpack.c.b16 %v1561, %v1560
    %v1582 = vpack.c.b16 %v1563, %v1562
    %v1583 = vpack.c.b16 %v1565, %v1564
    %v1584 = vpack.c.b16 %v1567, %v1566
    %v1585 = vpack.c.b16 %v1569, %v1568
    %v1602 = vcombine.low %v1435, %v1474
    %v1603 = vcombine.low %v1435, %v1435
    %v1604 = vcombine.low %v1474, %v1435
    %1608 = vmatprep.subr.bf16.mxu0 0
    %1609 = vmatpush1.bf16.msra.mxu0 %v1577
    %1610 = vmatprep.subr.bf16.mxu0 0
    %1611 = vmatpush1.bf16.msra.mxu0 %v1576
    %1612 = vmatprep.subr.bf16.mxu0 0
    %1613 = vmatpush1.bf16.msra.mxu0 %v1575
    %1614 = vmatprep.subr.bf16.mxu0 0
    %1615 = vmatpush1.bf16.msra.mxu0 %v1574
    %1616 = vmatprep.subr.bf16.mxu0 0
    %1617 = vmatpush1.bf16.msra.mxu0 %v1573
    %1618 = vmatprep.subr.bf16.mxu0 0
    %1619 = vmatpush1.bf16.msra.mxu0 %v1572
    %1620 = vmatprep.subr.bf16.mxu0 0
    %1621 = vmatpush1.bf16.msra.mxu0 %v1571
    %1622 = vmatprep.subr.bf16.mxu0 0
    %1623 = vmatpush1.bf16.msra.mxu0 %v1570
    %1624 = vmatprep.subr.bf16.mxu0 0
    %1625 = vmatpush2.bf16.msra.mxu0 %v1585
    %1626 = vmatprep.subr.bf16.mxu0 0
    %1627 = vmatpush2.bf16.msra.mxu0 %v1584
    %1628 = vmatprep.subr.bf16.mxu0 0
    %1629 = vmatpush2.bf16.msra.mxu0 %v1583
    %1630 = vmatprep.subr.bf16.mxu0 0
    %1631 = vmatpush2.bf16.msra.mxu0 %v1582
    %1632 = vmatprep.subr.bf16.mxu0 0
    %1633 = vmatpush2.bf16.msra.mxu0 %v1581
    %1634 = vmatprep.subr.bf16.mxu0 0
    %1635 = vmatpush2.bf16.msra.mxu0 %v1580
    %1636 = vmatprep.subr.bf16.mxu0 0
    %1637 = vmatpush2.bf16.msra.mxu0 %v1579
    %1638 = vmatprep.subr.bf16.mxu0 0
    %1639 = vmatpush2.bf16.msra.mxu0 %v1578
    %1640 = vmatprep.mubr.bf16.mxu0 %v1492
    %1641 = vmatmul.mubr.bf16.gmra.mxu0 %v1491
    %v1642 = vpop.f32.mrf.mxu0
    %v1643 = vadd.f32 %v1602, %v1642
    %v1644 = vpop.f32.mrf.mxu0
    %v1645 = vpop.f32.mrf.mxu0
    %v1646 = vadd.f32 %v1603, %v1645
    %v1647 = vpop.f32.mrf.mxu0
    %1648 = vmatprep.mubr.bf16.mxu0 %v1501
    %1649 = vmatmul.mubr.bf16.gmra.mxu0 %v1500
    %v1650 = vpop.f32.mrf.mxu0
    %v1651 = vadd.f32 %v1604, %v1650
    %v1652 = vpop.f32.mrf.mxu0
    %v1653 = vpop.f32.mrf.mxu0
    %v1654 = vpop.f32.mrf.mxu0
    %1655 = vdwg.mxu0
    %v1659 = vcombine.high %v1643, %v1643
    %v1660 = vcombine.high %v1646, %v1646
    %v1661 = vcombine.high %v1651, %v1651
    %v1665 = vtanh.pop %v1643
    %v1666 = vtanh.pop %v1659
    %v1667 = vtanh.pop %v1646
    %v1668 = vtanh.pop %v1660
    %v1669 = vtanh.pop %v1651
    %v1670 = vtanh.pop %v1661
    %v1671 = vld [vmem:[#allocation17] sm:$0x1]
    %v1673 = vlaneseq
    %v1674 = vshrl.u32 %v1673, 7
    %v1675 = vsub.s32 0, %v1674
    %v1676 = vrot.slane %v1671, %v1675
    %v1678 = vcombine.high %v1676, %v1676
    %v1680 = vmul.f32 %v1665, %v1676
    %v1681 = vmul.f32 %v1666, %v1678
    %v1682 = vmul.f32 %v1667, %v1676
    %v1683 = vmul.f32 %v1668, %v1676
    %v1684 = vmul.f32 %v1669, %v1678
    %v1685 = vmul.f32 %v1670, %v1676
    %v1690 = vcombine.low %v1680, %v1681
    %v1691 = vcombine.low %v1683, %v1684
    %v1694 = vsel %vm554, %v1690, 0.0
    %1695 = vadd.xlane.f32.xlu0 %v1694
    %v1696 = vpop.xlane.xlu0 %1695
    %vm1697 = vcmask 519168
    %v1698 = vsel %vm1697, %v1682, 0.0
    %1699 = vadd.xlane.f32.xlu0 %v1698
    %v1700 = vpop.xlane.xlu0 %1699
    %v1701 = vsel %vm554, %v1691, 0.0
    %1702 = vadd.xlane.f32.xlu0 %v1701
    %v1703 = vpop.xlane.xlu0 %1702
    %v1704 = vsel %vm1697, %v1685, 0.0
    %1705 = vadd.xlane.f32.xlu0 %v1704
    %v1706 = vpop.xlane.xlu0 %1705
    %v1707 = vld [vmem:[#allocation4] sm:$0x1]
    %v1709 = vlaneseq
    %v1710 = vshrl.u32 %v1709, 7
    %v1711 = vsub.s32 0, %v1710
    %v1712 = vrot.slane %v1707, %v1711
    %v1714 = vadd.f32 %v1696, %v1712
    %v1715 = vadd.f32 %v1700, %v1712
    %v1716 = vadd.f32 %v1703, %v1712
    %v1717 = vadd.f32 %v1706, %v1712
    %vm1718 = vcmask 7168
    %v1719 = vsel %vm1718, %v1714, -inf
    %vm1720 = vcmask 3072
    %v1721 = vsel %vm1720, %v1715, -inf
    %v1722 = vmax.f32 %v1719, %v1721
    %v1723 = vrot.slane %v1722, 4
    %v1724 = vmax.f32 %v1722, %v1723
    %v1725 = vrot.slane %v1724, 2
    %v1726 = vmax.f32 %v1724, %v1725
    %v1727 = vrot.slane %v1726, 1
    %v1728 = vmax.f32 %v1726, %v1727
    %v1729 = vsel %vm1718, %v1716, -inf
    %v1730 = vsel %vm1720, %v1717, -inf
    %v1731 = vmax.f32 %v1729, %v1730
    %v1732 = vrot.slane %v1731, 4
    %v1733 = vmax.f32 %v1731, %v1732
    %v1734 = vrot.slane %v1733, 2
    %v1735 = vmax.f32 %v1733, %v1734
    %v1736 = vrot.slane %v1735, 1
    %v1737 = vmax.f32 %v1735, %v1736
    %v1738 = vsub.f32 %v1714, %v1728
    %v1739 = vsub.f32 %v1715, %v1728
    %v1740 = vsub.f32 %v1716, %v1737
    %v1741 = vsub.f32 %v1717, %v1737
    %v1742 = vmul.f32 %v1738, 1.442695
    %v1743 = vpow.pop %v1742
    %v1744 = vmul.f32 %v1739, 1.442695
    %v1745 = vpow.pop %v1744
    %v1746 = vmul.f32 %v1740, 1.442695
    %v1747 = vpow.pop %v1746
    %v1748 = vmul.f32 %v1741, 1.442695
    %v1749 = vpow.pop %v1748
    %v1750 = vsel %vm1718, %v1743, 0.0
    %v1751 = vsel %vm1720, %v1745, 0.0
    %v1752 = vadd.f32 %v1750, %v1751
    %v1753 = vrot.slane %v1752, 4
    %v1754 = vadd.f32 %v1752, %v1753
    %v1755 = vrot.slane %v1754, 2
    %v1756 = vadd.f32 %v1754, %v1755
    %v1757 = vrot.slane %v1756, 1
    %v1758 = vadd.f32 %v1756, %v1757
    %v1759 = vsel %vm1718, %v1747, 0.0
    %v1760 = vsel %vm1720, %v1749, 0.0
    %v1761 = vadd.f32 %v1759, %v1760
    %v1762 = vrot.slane %v1761, 4
    %v1763 = vadd.f32 %v1761, %v1762
    %v1764 = vrot.slane %v1763, 2
    %v1765 = vadd.f32 %v1763, %v1764
    %v1766 = vrot.slane %v1765, 1
    %v1767 = vadd.f32 %v1765, %v1766
    %v1768 = vrcp.pop %v1758
    %v1769 = vmul.f32 %v1743, %v1768
    %v1770 = vmul.f32 %v1745, %v1768
    %v1771 = vrcp.pop %v1767
    %v1772 = vmul.f32 %v1747, %v1771
    %v1773 = vmul.f32 %v1749, %v1771
    %1775 = vset.pattern.permute.xlu0 0
    %1776 = vperm.xlu0 %1775, %v1769
    %v1777 = vpop.permute.xlu0 %1776
    %1780 = vset.pattern.permute.xlu0 0
    %1781 = vperm.xlu0 %1780, %v1770
    %v1782 = vpop.permute.xlu0 %1781
    %1785 = vset.pattern.permute.xlu0 0
    %1786 = vperm.xlu0 %1785, %v1772
    %v1787 = vpop.permute.xlu0 %1786
    %1790 = vset.pattern.permute.xlu0 0
    %1791 = vperm.xlu0 %1790, %v1773
    %v1792 = vpop.permute.xlu0 %1791
    %v1794 = vmul.f32 %v1386, %v1777
    %v1795 = vmul.f32 %v1387, %v1777
    %v1796 = vmul.f32 %v1388, %v1782
    %v1797 = vmul.f32 %v1389, %v1782
    %v1798 = vmul.f32 %v1390, %v1787
    %v1799 = vmul.f32 %v1391, %v1787
    %v1800 = vmul.f32 %v1392, %v1792
    %v1801 = vmul.f32 %v1393, %v1792
    %s1802 = smul.u32 2, 3
    %s1803 = smul.u32 %s1802, 32
    %s1804 = smul.u32 %s1803, 4
    %s1805 = sshll.u32 %s1804, 4
    %1806 = dma.done [#allocation3], %s1805
    %v1807 = vld [vmem:[#allocation2] sm:$0xff]
    %v1808 = vld [vmem:[#allocation2 + $0x8] sm:$0xff]
    %v1809 = vld [vmem:[#allocation2 + $0x10] sm:$0xff]
    %v1810 = vld [vmem:[#allocation2 + $0x18] sm:$0xff]
    %v1811 = vld [vmem:[#allocation2 + $0x20] sm:$0xff]
    %v1812 = vld [vmem:[#allocation2 + $0x28] sm:$0xff]
    %v1813 = vld [vmem:[#allocation2 + $0x30] sm:$0xff]
    %v1814 = vld [vmem:[#allocation2 + $0x38] sm:$0xff]
    %v1815 = vld [vmem:[#allocation2 + $0x40] sm:$0xff]
    %v1816 = vld [vmem:[#allocation2 + $0x48] sm:$0xff]
    %v1817 = vld [vmem:[#allocation2 + $0x50] sm:$0xff]
    %v1818 = vld [vmem:[#allocation2 + $0x58] sm:$0xff]
    %v1819 = vld [vmem:[#allocation2 + $0x60] sm:$0xff]
    %v1820 = vld [vmem:[#allocation2 + $0x68] sm:$0xff]
    %v1821 = vld [vmem:[#allocation2 + $0x70] sm:$0xff]
    %v1822 = vld [vmem:[#allocation2 + $0x78] sm:$0xff]
    %v1823 = vld [vmem:[#allocation2 + $0x80] sm:$0xff]
    %v1824 = vld [vmem:[#allocation2 + $0x88] sm:$0xff]
    %v1825 = vld [vmem:[#allocation2 + $0x90] sm:$0xff]
    %v1826 = vld [vmem:[#allocation2 + $0x98] sm:$0xff]
    %v1827 = vld [vmem:[#allocation2 + $0xa0] sm:$0xff]
    %v1828 = vld [vmem:[#allocation2 + $0xa8] sm:$0xff]
    %v1829 = vld [vmem:[#allocation2 + $0xb0] sm:$0xff]
    %v1830 = vld [vmem:[#allocation2 + $0xb8] sm:$0xff]
    %v1831 = vld [vmem:[#allocation2 + $0xc0] sm:$0xff]
    %v1832 = vld [vmem:[#allocation2 + $0xc8] sm:$0xff]
    %v1833 = vld [vmem:[#allocation2 + $0xd0] sm:$0xff]
    %v1834 = vld [vmem:[#allocation2 + $0xd8] sm:$0xff]
    %v1835 = vld [vmem:[#allocation2 + $0xe0] sm:$0xff]
    %v1836 = vld [vmem:[#allocation2 + $0xe8] sm:$0xff]
    %v1837 = vld [vmem:[#allocation2 + $0xf0] sm:$0xff]
    %v1838 = vld [vmem:[#allocation2 + $0xf8] sm:$0xff]
    %v1839 = vunpack.c.l.s8.bf16 %v1807
    %v1840 = vunpack.c.l.s8.bf16 %v1808
    %v1841 = vunpack.c.l.s8.bf16 %v1809
    %v1842 = vunpack.c.l.s8.bf16 %v1810
    %v1843 = vunpack.c.h.s8.bf16 %v1807
    %v1844 = vunpack.c.h.s8.bf16 %v1808
    %v1845 = vunpack.c.h.s8.bf16 %v1809
    %v1846 = vunpack.c.h.s8.bf16 %v1810
    %v1847 = vunpack.c.l.s8.bf16 %v1811
    %v1848 = vunpack.c.l.s8.bf16 %v1812
    %v1849 = vunpack.c.l.s8.bf16 %v1813
    %v1850 = vunpack.c.l.s8.bf16 %v1814
    %v1851 = vunpack.c.h.s8.bf16 %v1811
    %v1852 = vunpack.c.h.s8.bf16 %v1812
    %v1853 = vunpack.c.h.s8.bf16 %v1813
    %v1854 = vunpack.c.h.s8.bf16 %v1814
    %v1855 = vunpack.c.l.s8.bf16 %v1815
    %v1856 = vunpack.c.l.s8.bf16 %v1816
    %v1857 = vunpack.c.l.s8.bf16 %v1817
    %v1858 = vunpack.c.l.s8.bf16 %v1818
    %v1859 = vunpack.c.h.s8.bf16 %v1815
    %v1860 = vunpack.c.h.s8.bf16 %v1816
    %v1861 = vunpack.c.h.s8.bf16 %v1817
    %v1862 = vunpack.c.h.s8.bf16 %v1818
    %v1863 = vunpack.c.l.s8.bf16 %v1819
    %v1864 = vunpack.c.l.s8.bf16 %v1820
    %v1865 = vunpack.c.l.s8.bf16 %v1821
    %v1866 = vunpack.c.l.s8.bf16 %v1822
    %v1867 = vunpack.c.h.s8.bf16 %v1819
    %v1868 = vunpack.c.h.s8.bf16 %v1820
    %v1869 = vunpack.c.h.s8.bf16 %v1821
    %v1870 = vunpack.c.h.s8.bf16 %v1822
    %v1871 = vunpack.c.l.s8.bf16 %v1823
    %v1872 = vunpack.c.l.s8.bf16 %v1824
    %v1873 = vunpack.c.l.s8.bf16 %v1825
    %v1874 = vunpack.c.l.s8.bf16 %v1826
    %v1875 = vunpack.c.h.s8.bf16 %v1823
    %v1876 = vunpack.c.h.s8.bf16 %v1824
    %v1877 = vunpack.c.h.s8.bf16 %v1825
    %v1878 = vunpack.c.h.s8.bf16 %v1826
    %v1879 = vunpack.c.l.s8.bf16 %v1827
    %v1880 = vunpack.c.l.s8.bf16 %v1828
    %v1881 = vunpack.c.l.s8.bf16 %v1829
    %v1882 = vunpack.c.l.s8.bf16 %v1830
    %v1883 = vunpack.c.h.s8.bf16 %v1827
    %v1884 = vunpack.c.h.s8.bf16 %v1828
    %v1885 = vunpack.c.h.s8.bf16 %v1829
    %v1886 = vunpack.c.h.s8.bf16 %v1830
    %v1887 = vunpack.c.l.s8.bf16 %v1831
    %v1888 = vunpack.c.l.s8.bf16 %v1832
    %v1889 = vunpack.c.l.s8.bf16 %v1833
    %v1890 = vunpack.c.l.s8.bf16 %v1834
    %v1891 = vunpack.c.h.s8.bf16 %v1831
    %v1892 = vunpack.c.h.s8.bf16 %v1832
    %v1893 = vunpack.c.h.s8.bf16 %v1833
    %v1894 = vunpack.c.h.s8.bf16 %v1834
    %v1895 = vunpack.c.l.s8.bf16 %v1835
    %v1896 = vunpack.c.l.s8.bf16 %v1836
    %v1897 = vunpack.c.l.s8.bf16 %v1837
    %v1898 = vunpack.c.l.s8.bf16 %v1838
    %v1899 = vunpack.c.h.s8.bf16 %v1835
    %v1900 = vunpack.c.h.s8.bf16 %v1836
    %v1901 = vunpack.c.h.s8.bf16 %v1837
    %v1902 = vunpack.c.h.s8.bf16 %v1838
    %v1903 = vpack.c.bf16 %v1794, %v1794
    %v1904 = vpack.c.bf16 %v1795, %v1795
    %v1905 = vpack.c.bf16 %v1798, %v1798
    %v1906 = vpack.c.bf16 %v1799, %v1799
    %s1907 = scalar_lea.vmem [#allocation2], 256
    %v1908 = vld [vmem:[%s1907] sm:$0xff]
    %v1909 = vld [vmem:[%s1907 + $0x8] sm:$0xff]
    %v1910 = vld [vmem:[%s1907 + $0x10] sm:$0xff]
    %v1911 = vld [vmem:[%s1907 + $0x18] sm:$0xff]
    %v1912 = vld [vmem:[%s1907 + $0x20] sm:$0xff]
    %v1913 = vld [vmem:[%s1907 + $0x28] sm:$0xff]
    %v1914 = vld [vmem:[%s1907 + $0x30] sm:$0xff]
    %v1915 = vld [vmem:[%s1907 + $0x38] sm:$0xff]
    %v1916 = vld [vmem:[%s1907 + $0x40] sm:$0xff]
    %v1917 = vld [vmem:[%s1907 + $0x48] sm:$0xff]
    %v1918 = vld [vmem:[%s1907 + $0x50] sm:$0xff]
    %v1919 = vld [vmem:[%s1907 + $0x58] sm:$0xff]
    %v1920 = vld [vmem:[%s1907 + $0x60] sm:$0xff]
    %v1921 = vld [vmem:[%s1907 + $0x68] sm:$0xff]
    %v1922 = vld [vmem:[%s1907 + $0x70] sm:$0xff]
    %v1923 = vld [vmem:[%s1907 + $0x78] sm:$0xff]
    %v1924 = vld [vmem:[%s1907 + $0x80] sm:$0xff]
    %v1925 = vld [vmem:[%s1907 + $0x88] sm:$0xff]
    %v1926 = vld [vmem:[%s1907 + $0x90] sm:$0xff]
    %v1927 = vld [vmem:[%s1907 + $0x98] sm:$0xff]
    %v1928 = vld [vmem:[%s1907 + $0xa0] sm:$0xff]
    %v1929 = vld [vmem:[%s1907 + $0xa8] sm:$0xff]
    %v1930 = vld [vmem:[%s1907 + $0xb0] sm:$0xff]
    %v1931 = vld [vmem:[%s1907 + $0xb8] sm:$0xff]
    %v1932 = vld [vmem:[%s1907 + $0xc0] sm:$0xff]
    %v1933 = vld [vmem:[%s1907 + $0xc8] sm:$0xff]
    %v1934 = vld [vmem:[%s1907 + $0xd0] sm:$0xff]
    %v1935 = vld [vmem:[%s1907 + $0xd8] sm:$0xff]
    %v1936 = vld [vmem:[%s1907 + $0xe0] sm:$0xff]
    %v1937 = vld [vmem:[%s1907 + $0xe8] sm:$0xff]
    %v1938 = vld [vmem:[%s1907 + $0xf0] sm:$0xff]
    %v1939 = vld [vmem:[%s1907 + $0xf8] sm:$0xff]
    %v1940 = vunpack.c.l.s8.bf16 %v1908
    %v1941 = vunpack.c.l.s8.bf16 %v1909
    %v1942 = vunpack.c.l.s8.bf16 %v1910
    %v1943 = vunpack.c.l.s8.bf16 %v1911
    %v1944 = vunpack.c.h.s8.bf16 %v1908
    %v1945 = vunpack.c.h.s8.bf16 %v1909
    %v1946 = vunpack.c.h.s8.bf16 %v1910
    %v1947 = vunpack.c.h.s8.bf16 %v1911
    %v1948 = vunpack.c.l.s8.bf16 %v1912
    %v1949 = vunpack.c.l.s8.bf16 %v1913
    %v1950 = vunpack.c.l.s8.bf16 %v1914
    %v1951 = vunpack.c.l.s8.bf16 %v1915
    %v1952 = vunpack.c.h.s8.bf16 %v1912
    %v1953 = vunpack.c.h.s8.bf16 %v1913
    %v1954 = vunpack.c.h.s8.bf16 %v1914
    %v1955 = vunpack.c.h.s8.bf16 %v1915
    %v1956 = vunpack.c.l.s8.bf16 %v1916
    %v1957 = vunpack.c.l.s8.bf16 %v1917
    %v1958 = vunpack.c.l.s8.bf16 %v1918
    %v1959 = vunpack.c.l.s8.bf16 %v1919
    %v1960 = vunpack.c.h.s8.bf16 %v1916
    %v1961 = vunpack.c.h.s8.bf16 %v1917
    %v1962 = vunpack.c.h.s8.bf16 %v1918
    %v1963 = vunpack.c.h.s8.bf16 %v1919
    %v1964 = vunpack.c.l.s8.bf16 %v1920
    %v1965 = vunpack.c.l.s8.bf16 %v1921
    %v1966 = vunpack.c.l.s8.bf16 %v1922
    %v1967 = vunpack.c.l.s8.bf16 %v1923
    %v1968 = vunpack.c.h.s8.bf16 %v1920
    %v1969 = vunpack.c.h.s8.bf16 %v1921
    %v1970 = vunpack.c.h.s8.bf16 %v1922
    %v1971 = vunpack.c.h.s8.bf16 %v1923
    %v1972 = vunpack.c.l.s8.bf16 %v1924
    %v1973 = vunpack.c.l.s8.bf16 %v1925
    %v1974 = vunpack.c.l.s8.bf16 %v1926
    %v1975 = vunpack.c.l.s8.bf16 %v1927
    %v1976 = vunpack.c.h.s8.bf16 %v1924
    %v1977 = vunpack.c.h.s8.bf16 %v1925
    %v1978 = vunpack.c.h.s8.bf16 %v1926
    %v1979 = vunpack.c.h.s8.bf16 %v1927
    %v1980 = vunpack.c.l.s8.bf16 %v1928
    %v1981 = vunpack.c.l.s8.bf16 %v1929
    %v1982 = vunpack.c.l.s8.bf16 %v1930
    %v1983 = vunpack.c.l.s8.bf16 %v1931
    %v1984 = vunpack.c.h.s8.bf16 %v1928
    %v1985 = vunpack.c.h.s8.bf16 %v1929
    %v1986 = vunpack.c.h.s8.bf16 %v1930
    %v1987 = vunpack.c.h.s8.bf16 %v1931
    %v1988 = vunpack.c.l.s8.bf16 %v1932
    %v1989 = vunpack.c.l.s8.bf16 %v1933
    %v1990 = vunpack.c.l.s8.bf16 %v1934
    %v1991 = vunpack.c.l.s8.bf16 %v1935
    %v1992 = vunpack.c.h.s8.bf16 %v1932
    %v1993 = vunpack.c.h.s8.bf16 %v1933
    %v1994 = vunpack.c.h.s8.bf16 %v1934
    %v1995 = vunpack.c.h.s8.bf16 %v1935
    %v1996 = vunpack.c.l.s8.bf16 %v1936
    %v1997 = vunpack.c.l.s8.bf16 %v1937
    %v1998 = vunpack.c.l.s8.bf16 %v1938
    %v1999 = vunpack.c.l.s8.bf16 %v1939
    %v2000 = vunpack.c.h.s8.bf16 %v1936
    %v2001 = vunpack.c.h.s8.bf16 %v1937
    %v2002 = vunpack.c.h.s8.bf16 %v1938
    %v2003 = vunpack.c.h.s8.bf16 %v1939
    %v2008 = vunpack.c.l.b16 %v1903
    %v2009 = vunpack.c.l.b16 %v1904
    %v2010 = vunpack.c.l.b16 %v1905
    %v2011 = vunpack.c.l.b16 %v1906
    %v2012 = vrot.slane %v2008, 1
    %vm2013 = vcmask 1041409
    %v2014 = vsel %vm2013, %v2010, %v2012
    %v2015 = vrot.slane %v2009, 1
    %v2016 = vsel %vm2013, %v2011, %v2015
    %v2017 = vpack.c.b16 %v2014, %v2014
    %v2018 = vpack.c.b16 %v2016, %v2016
    %2021 = vmatprep.subr.bf16.mxu0 %v1969
    %2022 = vmatpush1.bf16.msra.mxu0 %v1968
    %2023 = vmatprep.subr.bf16.mxu0 %v1965
    %2024 = vmatpush1.bf16.msra.mxu0 %v1964
    %2025 = vmatprep.subr.bf16.mxu0 %v1961
    %2026 = vmatpush1.bf16.msra.mxu0 %v1960
    %2027 = vmatprep.subr.bf16.mxu0 %v1957
    %2028 = vmatpush1.bf16.msra.mxu0 %v1956
    %2029 = vmatprep.subr.bf16.mxu0 %v1953
    %2030 = vmatpush1.bf16.msra.mxu0 %v1952
    %2031 = vmatprep.subr.bf16.mxu0 %v1949
    %2032 = vmatpush1.bf16.msra.mxu0 %v1948
    %2033 = vmatprep.subr.bf16.mxu0 %v1945
    %2034 = vmatpush1.bf16.msra.mxu0 %v1944
    %2035 = vmatprep.subr.bf16.mxu0 %v1941
    %2036 = vmatpush1.bf16.msra.mxu0 %v1940
    %2037 = vmatprep.subr.bf16.mxu0 %v2001
    %2038 = vmatpush2.bf16.msra.mxu0 %v2000
    %2039 = vmatprep.subr.bf16.mxu0 %v1997
    %2040 = vmatpush2.bf16.msra.mxu0 %v1996
    %2041 = vmatprep.subr.bf16.mxu0 %v1993
    %2042 = vmatpush2.bf16.msra.mxu0 %v1992
    %2043 = vmatprep.subr.bf16.mxu0 %v1989
    %2044 = vmatpush2.bf16.msra.mxu0 %v1988
    %2045 = vmatprep.subr.bf16.mxu0 %v1985
    %2046 = vmatpush2.bf16.msra.mxu0 %v1984
    %2047 = vmatprep.subr.bf16.mxu0 %v1981
    %2048 = vmatpush2.bf16.msra.mxu0 %v1980
    %2049 = vmatprep.subr.bf16.mxu0 %v1977
    %2050 = vmatpush2.bf16.msra.mxu0 %v1976
    %2051 = vmatprep.subr.bf16.mxu0 %v1973
    %2052 = vmatpush2.bf16.msra.mxu0 %v1972
    %2053 = vmatprep.mubr.bf16.mxu0 %v2018
    %2054 = vmatmul.mubr.bf16.gmra.mxu0 %v2017
    %v2055 = vpop.f32.mrf.mxu0
    %v2056 = vadd.f32 0.0, %v2055
    %v2057 = vpop.f32.mrf.mxu0
    %v2058 = vadd.f32 0.0, %v2057
    %v2059 = vpop.f32.mrf.mxu0
    %v2060 = vpop.f32.mrf.mxu0
    %2061 = vdwg.mxu0
    %2062 = vmatprep.subr.bf16.mxu0 %v1971
    %2063 = vmatpush1.bf16.msra.mxu0 %v1970
    %2064 = vmatprep.subr.bf16.mxu0 %v1967
    %2065 = vmatpush1.bf16.msra.mxu0 %v1966
    %2066 = vmatprep.subr.bf16.mxu0 %v1963
    %2067 = vmatpush1.bf16.msra.mxu0 %v1962
    %2068 = vmatprep.subr.bf16.mxu0 %v1959
    %2069 = vmatpush1.bf16.msra.mxu0 %v1958
    %2070 = vmatprep.subr.bf16.mxu0 %v1955
    %2071 = vmatpush1.bf16.msra.mxu0 %v1954
    %2072 = vmatprep.subr.bf16.mxu0 %v1951
    %2073 = vmatpush1.bf16.msra.mxu0 %v1950
    %2074 = vmatprep.subr.bf16.mxu0 %v1947
    %2075 = vmatpush1.bf16.msra.mxu0 %v1946
    %2076 = vmatprep.subr.bf16.mxu0 %v1943
    %2077 = vmatpush1.bf16.msra.mxu0 %v1942
    %2078 = vmatprep.subr.bf16.mxu0 %v2003
    %2079 = vmatpush2.bf16.msra.mxu0 %v2002
    %2080 = vmatprep.subr.bf16.mxu0 %v1999
    %2081 = vmatpush2.bf16.msra.mxu0 %v1998
    %2082 = vmatprep.subr.bf16.mxu0 %v1995
    %2083 = vmatpush2.bf16.msra.mxu0 %v1994
    %2084 = vmatprep.subr.bf16.mxu0 %v1991
    %2085 = vmatpush2.bf16.msra.mxu0 %v1990
    %2086 = vmatprep.subr.bf16.mxu0 %v1987
    %2087 = vmatpush2.bf16.msra.mxu0 %v1986
    %2088 = vmatprep.subr.bf16.mxu0 %v1983
    %2089 = vmatpush2.bf16.msra.mxu0 %v1982
    %2090 = vmatprep.subr.bf16.mxu0 %v1979
    %2091 = vmatpush2.bf16.msra.mxu0 %v1978
    %2092 = vmatprep.subr.bf16.mxu0 %v1975
    %2093 = vmatpush2.bf16.msra.mxu0 %v1974
    %2094 = vmatprep.mubr.bf16.mxu0 %v2018
    %2095 = vmatmul.mubr.bf16.gmra.mxu0 %v2017
    %v2096 = vpop.f32.mrf.mxu0
    %v2097 = vadd.f32 0.0, %v2096
    %v2098 = vpop.f32.mrf.mxu0
    %v2099 = vadd.f32 0.0, %v2098
    %v2100 = vpop.f32.mrf.mxu0
    %v2101 = vpop.f32.mrf.mxu0
    %2102 = vdwg.mxu0
    %v2103 = vrot.slane %v2010, 7
    %v2104 = vsel %vm2013, %v2103, %v2008
    %v2105 = vrot.slane %v2011, 7
    %v2106 = vsel %vm2013, %v2105, %v2009
    %v2107 = vpack.c.b16 %v2104, %v2104
    %v2108 = vpack.c.b16 %v2106, %v2106
    %2111 = vmatprep.subr.bf16.mxu0 %v1868
    %2112 = vmatpush1.bf16.msra.mxu0 %v1867
    %2113 = vmatprep.subr.bf16.mxu0 %v1864
    %2114 = vmatpush1.bf16.msra.mxu0 %v1863
    %2115 = vmatprep.subr.bf16.mxu0 %v1860
    %2116 = vmatpush1.bf16.msra.mxu0 %v1859
    %2117 = vmatprep.subr.bf16.mxu0 %v1856
    %2118 = vmatpush1.bf16.msra.mxu0 %v1855
    %2119 = vmatprep.subr.bf16.mxu0 %v1852
    %2120 = vmatpush1.bf16.msra.mxu0 %v1851
    %2121 = vmatprep.subr.bf16.mxu0 %v1848
    %2122 = vmatpush1.bf16.msra.mxu0 %v1847
    %2123 = vmatprep.subr.bf16.mxu0 %v1844
    %2124 = vmatpush1.bf16.msra.mxu0 %v1843
    %2125 = vmatprep.subr.bf16.mxu0 %v1840
    %2126 = vmatpush1.bf16.msra.mxu0 %v1839
    %2127 = vmatprep.subr.bf16.mxu0 %v1900
    %2128 = vmatpush2.bf16.msra.mxu0 %v1899
    %2129 = vmatprep.subr.bf16.mxu0 %v1896
    %2130 = vmatpush2.bf16.msra.mxu0 %v1895
    %2131 = vmatprep.subr.bf16.mxu0 %v1892
    %2132 = vmatpush2.bf16.msra.mxu0 %v1891
    %2133 = vmatprep.subr.bf16.mxu0 %v1888
    %2134 = vmatpush2.bf16.msra.mxu0 %v1887
    %2135 = vmatprep.subr.bf16.mxu0 %v1884
    %2136 = vmatpush2.bf16.msra.mxu0 %v1883
    %2137 = vmatprep.subr.bf16.mxu0 %v1880
    %2138 = vmatpush2.bf16.msra.mxu0 %v1879
    %2139 = vmatprep.subr.bf16.mxu0 %v1876
    %2140 = vmatpush2.bf16.msra.mxu0 %v1875
    %2141 = vmatprep.subr.bf16.mxu0 %v1872
    %2142 = vmatpush2.bf16.msra.mxu0 %v1871
    %2143 = vmatprep.mubr.bf16.mxu0 %v2108
    %2144 = vmatmul.mubr.bf16.gmra.mxu0 %v2107
    %v2145 = vpop.f32.mrf.mxu0
    %v2146 = vadd.f32 %v2056, %v2145
    %v2147 = vpop.f32.mrf.mxu0
    %v2148 = vadd.f32 %v2058, %v2147
    %v2149 = vpop.f32.mrf.mxu0
    %v2150 = vpop.f32.mrf.mxu0
    %2151 = vdwg.mxu0
    %2152 = vmatprep.subr.bf16.mxu0 %v1870
    %2153 = vmatpush1.bf16.msra.mxu0 %v1869
    %2154 = vmatprep.subr.bf16.mxu0 %v1866
    %2155 = vmatpush1.bf16.msra.mxu0 %v1865
    %2156 = vmatprep.subr.bf16.mxu0 %v1862
    %2157 = vmatpush1.bf16.msra.mxu0 %v1861
    %2158 = vmatprep.subr.bf16.mxu0 %v1858
    %2159 = vmatpush1.bf16.msra.mxu0 %v1857
    %2160 = vmatprep.subr.bf16.mxu0 %v1854
    %2161 = vmatpush1.bf16.msra.mxu0 %v1853
    %2162 = vmatprep.subr.bf16.mxu0 %v1850
    %2163 = vmatpush1.bf16.msra.mxu0 %v1849
    %2164 = vmatprep.subr.bf16.mxu0 %v1846
    %2165 = vmatpush1.bf16.msra.mxu0 %v1845
    %2166 = vmatprep.subr.bf16.mxu0 %v1842
    %2167 = vmatpush1.bf16.msra.mxu0 %v1841
    %2168 = vmatprep.subr.bf16.mxu0 %v1902
    %2169 = vmatpush2.bf16.msra.mxu0 %v1901
    %2170 = vmatprep.subr.bf16.mxu0 %v1898
    %2171 = vmatpush2.bf16.msra.mxu0 %v1897
    %2172 = vmatprep.subr.bf16.mxu0 %v1894
    %2173 = vmatpush2.bf16.msra.mxu0 %v1893
    %2174 = vmatprep.subr.bf16.mxu0 %v1890
    %2175 = vmatpush2.bf16.msra.mxu0 %v1889
    %2176 = vmatprep.subr.bf16.mxu0 %v1886
    %2177 = vmatpush2.bf16.msra.mxu0 %v1885
    %2178 = vmatprep.subr.bf16.mxu0 %v1882
    %2179 = vmatpush2.bf16.msra.mxu0 %v1881
    %2180 = vmatprep.subr.bf16.mxu0 %v1878
    %2181 = vmatpush2.bf16.msra.mxu0 %v1877
    %2182 = vmatprep.subr.bf16.mxu0 %v1874
    %2183 = vmatpush2.bf16.msra.mxu0 %v1873
    %2184 = vmatprep.mubr.bf16.mxu0 %v2108
    %2185 = vmatmul.mubr.bf16.gmra.mxu0 %v2107
    %v2186 = vpop.f32.mrf.mxu0
    %v2187 = vadd.f32 %v2097, %v2186
    %v2188 = vpop.f32.mrf.mxu0
    %v2189 = vadd.f32 %v2099, %v2188
    %v2190 = vpop.f32.mrf.mxu0
    %v2191 = vpop.f32.mrf.mxu0
    %2192 = vdwg.mxu0
    %s2193 = scalar_lea.vmem [#allocation2], 512
    %v2194 = vld [vmem:[%s2193] sm:$0xff]
    %v2195 = vld [vmem:[%s2193 + $0x8] sm:$0xff]
    %v2196 = vld [vmem:[%s2193 + $0x10] sm:$0xff]
    %v2197 = vld [vmem:[%s2193 + $0x18] sm:$0xff]
    %v2198 = vld [vmem:[%s2193 + $0x20] sm:$0xff]
    %v2199 = vld [vmem:[%s2193 + $0x28] sm:$0xff]
    %v2200 = vld [vmem:[%s2193 + $0x30] sm:$0xff]
    %v2201 = vld [vmem:[%s2193 + $0x38] sm:$0xff]
    %v2202 = vld [vmem:[%s2193 + $0x40] sm:$0xff]
    %v2203 = vld [vmem:[%s2193 + $0x48] sm:$0xff]
    %v2204 = vld [vmem:[%s2193 + $0x50] sm:$0xff]
    %v2205 = vld [vmem:[%s2193 + $0x58] sm:$0xff]
    %v2206 = vld [vmem:[%s2193 + $0x60] sm:$0xff]
    %v2207 = vld [vmem:[%s2193 + $0x68] sm:$0xff]
    %v2208 = vld [vmem:[%s2193 + $0x70] sm:$0xff]
    %v2209 = vld [vmem:[%s2193 + $0x78] sm:$0xff]
    %v2210 = vld [vmem:[%s2193 + $0x80] sm:$0xff]
    %v2211 = vld [vmem:[%s2193 + $0x88] sm:$0xff]
    %v2212 = vld [vmem:[%s2193 + $0x90] sm:$0xff]
    %v2213 = vld [vmem:[%s2193 + $0x98] sm:$0xff]
    %v2214 = vld [vmem:[%s2193 + $0xa0] sm:$0xff]
    %v2215 = vld [vmem:[%s2193 + $0xa8] sm:$0xff]
    %v2216 = vld [vmem:[%s2193 + $0xb0] sm:$0xff]
    %v2217 = vld [vmem:[%s2193 + $0xb8] sm:$0xff]
    %v2218 = vld [vmem:[%s2193 + $0xc0] sm:$0xff]
    %v2219 = vld [vmem:[%s2193 + $0xc8] sm:$0xff]
    %v2220 = vld [vmem:[%s2193 + $0xd0] sm:$0xff]
    %v2221 = vld [vmem:[%s2193 + $0xd8] sm:$0xff]
    %v2222 = vld [vmem:[%s2193 + $0xe0] sm:$0xff]
    %v2223 = vld [vmem:[%s2193 + $0xe8] sm:$0xff]
    %v2224 = vld [vmem:[%s2193 + $0xf0] sm:$0xff]
    %v2225 = vld [vmem:[%s2193 + $0xf8] sm:$0xff]
    %v2226 = vunpack.c.l.s8.bf16 %v2194
    %v2227 = vunpack.c.l.s8.bf16 %v2195
    %v2228 = vunpack.c.l.s8.bf16 %v2196
    %v2229 = vunpack.c.l.s8.bf16 %v2197
    %v2230 = vunpack.c.h.s8.bf16 %v2194
    %v2231 = vunpack.c.h.s8.bf16 %v2195
    %v2232 = vunpack.c.h.s8.bf16 %v2196
    %v2233 = vunpack.c.h.s8.bf16 %v2197
    %v2234 = vunpack.c.l.s8.bf16 %v2198
    %v2235 = vunpack.c.l.s8.bf16 %v2199
    %v2236 = vunpack.c.l.s8.bf16 %v2200
    %v2237 = vunpack.c.l.s8.bf16 %v2201
    %v2238 = vunpack.c.h.s8.bf16 %v2198
    %v2239 = vunpack.c.h.s8.bf16 %v2199
    %v2240 = vunpack.c.h.s8.bf16 %v2200
    %v2241 = vunpack.c.h.s8.bf16 %v2201
    %v2242 = vunpack.c.l.s8.bf16 %v2202
    %v2243 = vunpack.c.l.s8.bf16 %v2203
    %v2244 = vunpack.c.l.s8.bf16 %v2204
    %v2245 = vunpack.c.l.s8.bf16 %v2205
    %v2246 = vunpack.c.h.s8.bf16 %v2202
    %v2247 = vunpack.c.h.s8.bf16 %v2203
    %v2248 = vunpack.c.h.s8.bf16 %v2204
    %v2249 = vunpack.c.h.s8.bf16 %v2205
    %v2250 = vunpack.c.l.s8.bf16 %v2206
    %v2251 = vunpack.c.l.s8.bf16 %v2207
    %v2252 = vunpack.c.l.s8.bf16 %v2208
    %v2253 = vunpack.c.l.s8.bf16 %v2209
    %v2254 = vunpack.c.h.s8.bf16 %v2206
    %v2255 = vunpack.c.h.s8.bf16 %v2207
    %v2256 = vunpack.c.h.s8.bf16 %v2208
    %v2257 = vunpack.c.h.s8.bf16 %v2209
    %v2258 = vunpack.c.l.s8.bf16 %v2210
    %v2259 = vunpack.c.l.s8.bf16 %v2211
    %v2260 = vunpack.c.l.s8.bf16 %v2212
    %v2261 = vunpack.c.l.s8.bf16 %v2213
    %v2262 = vunpack.c.h.s8.bf16 %v2210
    %v2263 = vunpack.c.h.s8.bf16 %v2211
    %v2264 = vunpack.c.h.s8.bf16 %v2212
    %v2265 = vunpack.c.h.s8.bf16 %v2213
    %v2266 = vunpack.c.l.s8.bf16 %v2214
    %v2267 = vunpack.c.l.s8.bf16 %v2215
    %v2268 = vunpack.c.l.s8.bf16 %v2216
    %v2269 = vunpack.c.l.s8.bf16 %v2217
    %v2270 = vunpack.c.h.s8.bf16 %v2214
    %v2271 = vunpack.c.h.s8.bf16 %v2215
    %v2272 = vunpack.c.h.s8.bf16 %v2216
    %v2273 = vunpack.c.h.s8.bf16 %v2217
    %v2274 = vunpack.c.l.s8.bf16 %v2218
    %v2275 = vunpack.c.l.s8.bf16 %v2219
    %v2276 = vunpack.c.l.s8.bf16 %v2220
    %v2277 = vunpack.c.l.s8.bf16 %v2221
    %v2278 = vunpack.c.h.s8.bf16 %v2218
    %v2279 = vunpack.c.h.s8.bf16 %v2219
    %v2280 = vunpack.c.h.s8.bf16 %v2220
    %v2281 = vunpack.c.h.s8.bf16 %v2221
    %v2282 = vunpack.c.l.s8.bf16 %v2222
    %v2283 = vunpack.c.l.s8.bf16 %v2223
    %v2284 = vunpack.c.l.s8.bf16 %v2224
    %v2285 = vunpack.c.l.s8.bf16 %v2225
    %v2286 = vunpack.c.h.s8.bf16 %v2222
    %v2287 = vunpack.c.h.s8.bf16 %v2223
    %v2288 = vunpack.c.h.s8.bf16 %v2224
    %v2289 = vunpack.c.h.s8.bf16 %v2225
    %v2290 = vrot.slane %v2008, 2
    %v2291 = vrot.slane %v2010, 1
    %v2292 = vsel %vm2013, %v2291, %v2290
    %v2293 = vrot.slane %v2009, 2
    %v2294 = vrot.slane %v2011, 1
    %v2295 = vsel %vm2013, %v2294, %v2293
    %v2296 = vpack.c.b16 %v2292, %v2292
    %v2297 = vpack.c.b16 %v2295, %v2295
    %2300 = vmatprep.subr.bf16.mxu0 %v2255
    %2301 = vmatpush1.bf16.msra.mxu0 %v2254
    %2302 = vmatprep.subr.bf16.mxu0 %v2251
    %2303 = vmatpush1.bf16.msra.mxu0 %v2250
    %2304 = vmatprep.subr.bf16.mxu0 %v2247
    %2305 = vmatpush1.bf16.msra.mxu0 %v2246
    %2306 = vmatprep.subr.bf16.mxu0 %v2243
    %2307 = vmatpush1.bf16.msra.mxu0 %v2242
    %2308 = vmatprep.subr.bf16.mxu0 %v2239
    %2309 = vmatpush1.bf16.msra.mxu0 %v2238
    %2310 = vmatprep.subr.bf16.mxu0 %v2235
    %2311 = vmatpush1.bf16.msra.mxu0 %v2234
    %2312 = vmatprep.subr.bf16.mxu0 %v2231
    %2313 = vmatpush1.bf16.msra.mxu0 %v2230
    %2314 = vmatprep.subr.bf16.mxu0 %v2227
    %2315 = vmatpush1.bf16.msra.mxu0 %v2226
    %2316 = vmatprep.subr.bf16.mxu0 %v2287
    %2317 = vmatpush2.bf16.msra.mxu0 %v2286
    %2318 = vmatprep.subr.bf16.mxu0 %v2283
    %2319 = vmatpush2.bf16.msra.mxu0 %v2282
    %2320 = vmatprep.subr.bf16.mxu0 %v2279
    %2321 = vmatpush2.bf16.msra.mxu0 %v2278
    %2322 = vmatprep.subr.bf16.mxu0 %v2275
    %2323 = vmatpush2.bf16.msra.mxu0 %v2274
    %2324 = vmatprep.subr.bf16.mxu0 %v2271
    %2325 = vmatpush2.bf16.msra.mxu0 %v2270
    %2326 = vmatprep.subr.bf16.mxu0 %v2267
    %2327 = vmatpush2.bf16.msra.mxu0 %v2266
    %2328 = vmatprep.subr.bf16.mxu0 %v2263
    %2329 = vmatpush2.bf16.msra.mxu0 %v2262
    %2330 = vmatprep.subr.bf16.mxu0 %v2259
    %2331 = vmatpush2.bf16.msra.mxu0 %v2258
    %2332 = vmatprep.mubr.bf16.mxu0 %v2297
    %2333 = vmatmul.mubr.bf16.gmra.mxu0 %v2296
    %v2334 = vpop.f32.mrf.mxu0
    %v2335 = vadd.f32 0.0, %v2334
    %v2336 = vpop.f32.mrf.mxu0
    %v2337 = vadd.f32 0.0, %v2336
    %v2338 = vpop.f32.mrf.mxu0
    %v2339 = vpop.f32.mrf.mxu0
    %2340 = vdwg.mxu0
    %2341 = vmatprep.subr.bf16.mxu0 %v2257
    %2342 = vmatpush1.bf16.msra.mxu0 %v2256
    %2343 = vmatprep.subr.bf16.mxu0 %v2253
    %2344 = vmatpush1.bf16.msra.mxu0 %v2252
    %2345 = vmatprep.subr.bf16.mxu0 %v2249
    %2346 = vmatpush1.bf16.msra.mxu0 %v2248
    %2347 = vmatprep.subr.bf16.mxu0 %v2245
    %2348 = vmatpush1.bf16.msra.mxu0 %v2244
    %2349 = vmatprep.subr.bf16.mxu0 %v2241
    %2350 = vmatpush1.bf16.msra.mxu0 %v2240
    %2351 = vmatprep.subr.bf16.mxu0 %v2237
    %2352 = vmatpush1.bf16.msra.mxu0 %v2236
    %2353 = vmatprep.subr.bf16.mxu0 %v2233
    %2354 = vmatpush1.bf16.msra.mxu0 %v2232
    %2355 = vmatprep.subr.bf16.mxu0 %v2229
    %2356 = vmatpush1.bf16.msra.mxu0 %v2228
    %2357 = vmatprep.subr.bf16.mxu0 %v2289
    %2358 = vmatpush2.bf16.msra.mxu0 %v2288
    %2359 = vmatprep.subr.bf16.mxu0 %v2285
    %2360 = vmatpush2.bf16.msra.mxu0 %v2284
    %2361 = vmatprep.subr.bf16.mxu0 %v2281
    %2362 = vmatpush2.bf16.msra.mxu0 %v2280
    %2363 = vmatprep.subr.bf16.mxu0 %v2277
    %2364 = vmatpush2.bf16.msra.mxu0 %v2276
    %2365 = vmatprep.subr.bf16.mxu0 %v2273
    %2366 = vmatpush2.bf16.msra.mxu0 %v2272
    %2367 = vmatprep.subr.bf16.mxu0 %v2269
    %2368 = vmatpush2.bf16.msra.mxu0 %v2268
    %2369 = vmatprep.subr.bf16.mxu0 %v2265
    %2370 = vmatpush2.bf16.msra.mxu0 %v2264
    %2371 = vmatprep.subr.bf16.mxu0 %v2261
    %2372 = vmatpush2.bf16.msra.mxu0 %v2260
    %2373 = vmatprep.mubr.bf16.mxu0 %v2297
    %2374 = vmatmul.mubr.bf16.gmra.mxu0 %v2296
    %v2375 = vpop.f32.mrf.mxu0
    %v2376 = vadd.f32 0.0, %v2375
    %v2377 = vpop.f32.mrf.mxu0
    %v2378 = vadd.f32 0.0, %v2377
    %v2379 = vpop.f32.mrf.mxu0
    %v2380 = vpop.f32.mrf.mxu0
    %2381 = vdwg.mxu0
    %v2382 = vadd.f32 %v2146, %v2335
    %v2383 = vadd.f32 %v2148, %v2337
    %v2384 = vadd.f32 %v2187, %v2376
    %v2385 = vadd.f32 %v2189, %v2378
    %s2386 = sshll.u32 %s1804, 4
    %2387 = dma.done %s233, %s2386
    %v2388 = vld [vmem:[%s232] sm:$0xff]
    %v2389 = vld [vmem:[%s232 + $0x8] sm:$0xff]
    %v2390 = vld [vmem:[%s232 + $0x10] sm:$0xff]
    %v2391 = vld [vmem:[%s232 + $0x18] sm:$0xff]
    %v2392 = vld [vmem:[%s232 + $0x20] sm:$0xff]
    %v2393 = vld [vmem:[%s232 + $0x28] sm:$0xff]
    %v2394 = vld [vmem:[%s232 + $0x30] sm:$0xff]
    %v2395 = vld [vmem:[%s232 + $0x38] sm:$0xff]
    %v2396 = vld [vmem:[%s232 + $0x40] sm:$0xff]
    %v2397 = vld [vmem:[%s232 + $0x48] sm:$0xff]
    %v2398 = vld [vmem:[%s232 + $0x50] sm:$0xff]
    %v2399 = vld [vmem:[%s232 + $0x58] sm:$0xff]
    %v2400 = vld [vmem:[%s232 + $0x60] sm:$0xff]
    %v2401 = vld [vmem:[%s232 + $0x68] sm:$0xff]
    %v2402 = vld [vmem:[%s232 + $0x70] sm:$0xff]
    %v2403 = vld [vmem:[%s232 + $0x78] sm:$0xff]
    %v2404 = vld [vmem:[%s232 + $0x80] sm:$0xff]
    %v2405 = vld [vmem:[%s232 + $0x88] sm:$0xff]
    %v2406 = vld [vmem:[%s232 + $0x90] sm:$0xff]
    %v2407 = vld [vmem:[%s232 + $0x98] sm:$0xff]
    %v2408 = vld [vmem:[%s232 + $0xa0] sm:$0xff]
    %v2409 = vld [vmem:[%s232 + $0xa8] sm:$0xff]
    %v2410 = vld [vmem:[%s232 + $0xb0] sm:$0xff]
    %v2411 = vld [vmem:[%s232 + $0xb8] sm:$0xff]
    %v2412 = vld [vmem:[%s232 + $0xc0] sm:$0xff]
    %v2413 = vld [vmem:[%s232 + $0xc8] sm:$0xff]
    %v2414 = vld [vmem:[%s232 + $0xd0] sm:$0xff]
    %v2415 = vld [vmem:[%s232 + $0xd8] sm:$0xff]
    %v2416 = vld [vmem:[%s232 + $0xe0] sm:$0xff]
    %v2417 = vld [vmem:[%s232 + $0xe8] sm:$0xff]
    %v2418 = vld [vmem:[%s232 + $0xf0] sm:$0xff]
    %v2419 = vld [vmem:[%s232 + $0xf8] sm:$0xff]
    %v2420 = vunpack.c.l.s8.bf16 %v2388
    %v2421 = vunpack.c.l.s8.bf16 %v2389
    %v2422 = vunpack.c.l.s8.bf16 %v2390
    %v2423 = vunpack.c.l.s8.bf16 %v2391
    %v2424 = vunpack.c.h.s8.bf16 %v2388
    %v2425 = vunpack.c.h.s8.bf16 %v2389
    %v2426 = vunpack.c.h.s8.bf16 %v2390
    %v2427 = vunpack.c.h.s8.bf16 %v2391
    %v2428 = vunpack.c.l.s8.bf16 %v2392
    %v2429 = vunpack.c.l.s8.bf16 %v2393
    %v2430 = vunpack.c.l.s8.bf16 %v2394
    %v2431 = vunpack.c.l.s8.bf16 %v2395
    %v2432 = vunpack.c.h.s8.bf16 %v2392
    %v2433 = vunpack.c.h.s8.bf16 %v2393
    %v2434 = vunpack.c.h.s8.bf16 %v2394
    %v2435 = vunpack.c.h.s8.bf16 %v2395
    %v2436 = vunpack.c.l.s8.bf16 %v2396
    %v2437 = vunpack.c.l.s8.bf16 %v2397
    %v2438 = vunpack.c.l.s8.bf16 %v2398
    %v2439 = vunpack.c.l.s8.bf16 %v2399
    %v2440 = vunpack.c.h.s8.bf16 %v2396
    %v2441 = vunpack.c.h.s8.bf16 %v2397
    %v2442 = vunpack.c.h.s8.bf16 %v2398
    %v2443 = vunpack.c.h.s8.bf16 %v2399
    %v2444 = vunpack.c.l.s8.bf16 %v2400
    %v2445 = vunpack.c.l.s8.bf16 %v2401
    %v2446 = vunpack.c.l.s8.bf16 %v2402
    %v2447 = vunpack.c.l.s8.bf16 %v2403
    %v2448 = vunpack.c.h.s8.bf16 %v2400
    %v2449 = vunpack.c.h.s8.bf16 %v2401
    %v2450 = vunpack.c.h.s8.bf16 %v2402
    %v2451 = vunpack.c.h.s8.bf16 %v2403
    %v2452 = vunpack.c.l.s8.bf16 %v2404
    %v2453 = vunpack.c.l.s8.bf16 %v2405
    %v2454 = vunpack.c.l.s8.bf16 %v2406
    %v2455 = vunpack.c.l.s8.bf16 %v2407
    %v2456 = vunpack.c.h.s8.bf16 %v2404
    %v2457 = vunpack.c.h.s8.bf16 %v2405
    %v2458 = vunpack.c.h.s8.bf16 %v2406
    %v2459 = vunpack.c.h.s8.bf16 %v2407
    %v2460 = vunpack.c.l.s8.bf16 %v2408
    %v2461 = vunpack.c.l.s8.bf16 %v2409
    %v2462 = vunpack.c.l.s8.bf16 %v2410
    %v2463 = vunpack.c.l.s8.bf16 %v2411
    %v2464 = vunpack.c.h.s8.bf16 %v2408
    %v2465 = vunpack.c.h.s8.bf16 %v2409
    %v2466 = vunpack.c.h.s8.bf16 %v2410
    %v2467 = vunpack.c.h.s8.bf16 %v2411
    %v2468 = vunpack.c.l.s8.bf16 %v2412
    %v2469 = vunpack.c.l.s8.bf16 %v2413
    %v2470 = vunpack.c.l.s8.bf16 %v2414
    %v2471 = vunpack.c.l.s8.bf16 %v2415
    %v2472 = vunpack.c.h.s8.bf16 %v2412
    %v2473 = vunpack.c.h.s8.bf16 %v2413
    %v2474 = vunpack.c.h.s8.bf16 %v2414
    %v2475 = vunpack.c.h.s8.bf16 %v2415
    %v2476 = vunpack.c.l.s8.bf16 %v2416
    %v2477 = vunpack.c.l.s8.bf16 %v2417
    %v2478 = vunpack.c.l.s8.bf16 %v2418
    %v2479 = vunpack.c.l.s8.bf16 %v2419
    %v2480 = vunpack.c.h.s8.bf16 %v2416
    %v2481 = vunpack.c.h.s8.bf16 %v2417
    %v2482 = vunpack.c.h.s8.bf16 %v2418
    %v2483 = vunpack.c.h.s8.bf16 %v2419
    %v2484 = vrot.slane %v2008, 3
    %v2485 = vrot.slane %v2010, 2
    %v2486 = vsel %vm2013, %v2485, %v2484
    %v2487 = vrot.slane %v2009, 3
    %v2488 = vrot.slane %v2011, 2
    %v2489 = vsel %vm2013, %v2488, %v2487
    %v2490 = vpack.c.b16 %v2486, %v2486
    %v2491 = vpack.c.b16 %v2489, %v2489
    %2494 = vmatprep.subr.bf16.mxu0 %v2449
    %2495 = vmatpush1.bf16.msra.mxu0 %v2448
    %2496 = vmatprep.subr.bf16.mxu0 %v2445
    %2497 = vmatpush1.bf16.msra.mxu0 %v2444
    %2498 = vmatprep.subr.bf16.mxu0 %v2441
    %2499 = vmatpush1.bf16.msra.mxu0 %v2440
    %2500 = vmatprep.subr.bf16.mxu0 %v2437
    %2501 = vmatpush1.bf16.msra.mxu0 %v2436
    %2502 = vmatprep.subr.bf16.mxu0 %v2433
    %2503 = vmatpush1.bf16.msra.mxu0 %v2432
    %2504 = vmatprep.subr.bf16.mxu0 %v2429
    %2505 = vmatpush1.bf16.msra.mxu0 %v2428
    %2506 = vmatprep.subr.bf16.mxu0 %v2425
    %2507 = vmatpush1.bf16.msra.mxu0 %v2424
    %2508 = vmatprep.subr.bf16.mxu0 %v2421
    %2509 = vmatpush1.bf16.msra.mxu0 %v2420
    %2510 = vmatprep.subr.bf16.mxu0 %v2481
    %2511 = vmatpush2.bf16.msra.mxu0 %v2480
    %2512 = vmatprep.subr.bf16.mxu0 %v2477
    %2513 = vmatpush2.bf16.msra.mxu0 %v2476
    %2514 = vmatprep.subr.bf16.mxu0 %v2473
    %2515 = vmatpush2.bf16.msra.mxu0 %v2472
    %2516 = vmatprep.subr.bf16.mxu0 %v2469
    %2517 = vmatpush2.bf16.msra.mxu0 %v2468
    %2518 = vmatprep.subr.bf16.mxu0 %v2465
    %2519 = vmatpush2.bf16.msra.mxu0 %v2464
    %2520 = vmatprep.subr.bf16.mxu0 %v2461
    %2521 = vmatpush2.bf16.msra.mxu0 %v2460
    %2522 = vmatprep.subr.bf16.mxu0 %v2457
    %2523 = vmatpush2.bf16.msra.mxu0 %v2456
    %2524 = vmatprep.subr.bf16.mxu0 %v2453
    %2525 = vmatpush2.bf16.msra.mxu0 %v2452
    %2526 = vmatprep.mubr.bf16.mxu0 %v2491
    %2527 = vmatmul.mubr.bf16.gmra.mxu0 %v2490
    %v2528 = vpop.f32.mrf.mxu0
    %v2529 = vadd.f32 0.0, %v2528
    %v2530 = vpop.f32.mrf.mxu0
    %v2531 = vadd.f32 0.0, %v2530
    %v2532 = vpop.f32.mrf.mxu0
    %v2533 = vpop.f32.mrf.mxu0
    %2534 = vdwg.mxu0
    %2535 = vmatprep.subr.bf16.mxu0 %v2451
    %2536 = vmatpush1.bf16.msra.mxu0 %v2450
    %2537 = vmatprep.subr.bf16.mxu0 %v2447
    %2538 = vmatpush1.bf16.msra.mxu0 %v2446
    %2539 = vmatprep.subr.bf16.mxu0 %v2443
    %2540 = vmatpush1.bf16.msra.mxu0 %v2442
    %2541 = vmatprep.subr.bf16.mxu0 %v2439
    %2542 = vmatpush1.bf16.msra.mxu0 %v2438
    %2543 = vmatprep.subr.bf16.mxu0 %v2435
    %2544 = vmatpush1.bf16.msra.mxu0 %v2434
    %2545 = vmatprep.subr.bf16.mxu0 %v2431
    %2546 = vmatpush1.bf16.msra.mxu0 %v2430
    %2547 = vmatprep.subr.bf16.mxu0 %v2427
    %2548 = vmatpush1.bf16.msra.mxu0 %v2426
    %2549 = vmatprep.subr.bf16.mxu0 %v2423
    %2550 = vmatpush1.bf16.msra.mxu0 %v2422
    %2551 = vmatprep.subr.bf16.mxu0 %v2483
    %2552 = vmatpush2.bf16.msra.mxu0 %v2482
    %2553 = vmatprep.subr.bf16.mxu0 %v2479
    %2554 = vmatpush2.bf16.msra.mxu0 %v2478
    %2555 = vmatprep.subr.bf16.mxu0 %v2475
    %2556 = vmatpush2.bf16.msra.mxu0 %v2474
    %2557 = vmatprep.subr.bf16.mxu0 %v2471
    %2558 = vmatpush2.bf16.msra.mxu0 %v2470
    %2559 = vmatprep.subr.bf16.mxu0 %v2467
    %2560 = vmatpush2.bf16.msra.mxu0 %v2466
    %2561 = vmatprep.subr.bf16.mxu0 %v2463
    %2562 = vmatpush2.bf16.msra.mxu0 %v2462
    %2563 = vmatprep.subr.bf16.mxu0 %v2459
    %2564 = vmatpush2.bf16.msra.mxu0 %v2458
    %2565 = vmatprep.subr.bf16.mxu0 %v2455
    %2566 = vmatpush2.bf16.msra.mxu0 %v2454
    %2567 = vmatprep.mubr.bf16.mxu0 %v2491
    %2568 = vmatmul.mubr.bf16.gmra.mxu0 %v2490
    %v2569 = vpop.f32.mrf.mxu0
    %v2570 = vadd.f32 0.0, %v2569
    %v2571 = vpop.f32.mrf.mxu0
    %v2572 = vadd.f32 0.0, %v2571
    %v2573 = vpop.f32.mrf.mxu0
    %v2574 = vpop.f32.mrf.mxu0
    %2575 = vdwg.mxu0
    %v2576 = vadd.f32 %v2382, %v2529
    %v2577 = vadd.f32 %v2383, %v2531
    %v2578 = vadd.f32 %v2384, %v2570
    %v2579 = vadd.f32 %v2385, %v2572
    %s2580 = scalar_lea.vmem [#allocation2], 1024
    %v2581 = vld [vmem:[%s2580] sm:$0xff]
    %v2582 = vld [vmem:[%s2580 + $0x8] sm:$0xff]
    %v2583 = vld [vmem:[%s2580 + $0x10] sm:$0xff]
    %v2584 = vld [vmem:[%s2580 + $0x18] sm:$0xff]
    %v2585 = vld [vmem:[%s2580 + $0x20] sm:$0xff]
    %v2586 = vld [vmem:[%s2580 + $0x28] sm:$0xff]
    %v2587 = vld [vmem:[%s2580 + $0x30] sm:$0xff]
    %v2588 = vld [vmem:[%s2580 + $0x38] sm:$0xff]
    %v2589 = vld [vmem:[%s2580 + $0x40] sm:$0xff]
    %v2590 = vld [vmem:[%s2580 + $0x48] sm:$0xff]
    %v2591 = vld [vmem:[%s2580 + $0x50] sm:$0xff]
    %v2592 = vld [vmem:[%s2580 + $0x58] sm:$0xff]
    %v2593 = vld [vmem:[%s2580 + $0x60] sm:$0xff]
    %v2594 = vld [vmem:[%s2580 + $0x68] sm:$0xff]
    %v2595 = vld [vmem:[%s2580 + $0x70] sm:$0xff]
    %v2596 = vld [vmem:[%s2580 + $0x78] sm:$0xff]
    %v2597 = vld [vmem:[%s2580 + $0x80] sm:$0xff]
    %v2598 = vld [vmem:[%s2580 + $0x88] sm:$0xff]
    %v2599 = vld [vmem:[%s2580 + $0x90] sm:$0xff]
    %v2600 = vld [vmem:[%s2580 + $0x98] sm:$0xff]
    %v2601 = vld [vmem:[%s2580 + $0xa0] sm:$0xff]
    %v2602 = vld [vmem:[%s2580 + $0xa8] sm:$0xff]
    %v2603 = vld [vmem:[%s2580 + $0xb0] sm:$0xff]
    %v2604 = vld [vmem:[%s2580 + $0xb8] sm:$0xff]
    %v2605 = vld [vmem:[%s2580 + $0xc0] sm:$0xff]
    %v2606 = vld [vmem:[%s2580 + $0xc8] sm:$0xff]
    %v2607 = vld [vmem:[%s2580 + $0xd0] sm:$0xff]
    %v2608 = vld [vmem:[%s2580 + $0xd8] sm:$0xff]
    %v2609 = vld [vmem:[%s2580 + $0xe0] sm:$0xff]
    %v2610 = vld [vmem:[%s2580 + $0xe8] sm:$0xff]
    %v2611 = vld [vmem:[%s2580 + $0xf0] sm:$0xff]
    %v2612 = vld [vmem:[%s2580 + $0xf8] sm:$0xff]
    %v2613 = vunpack.c.l.s8.bf16 %v2581
    %v2614 = vunpack.c.l.s8.bf16 %v2582
    %v2615 = vunpack.c.l.s8.bf16 %v2583
    %v2616 = vunpack.c.l.s8.bf16 %v2584
    %v2617 = vunpack.c.h.s8.bf16 %v2581
    %v2618 = vunpack.c.h.s8.bf16 %v2582
    %v2619 = vunpack.c.h.s8.bf16 %v2583
    %v2620 = vunpack.c.h.s8.bf16 %v2584
    %v2621 = vunpack.c.l.s8.bf16 %v2585
    %v2622 = vunpack.c.l.s8.bf16 %v2586
    %v2623 = vunpack.c.l.s8.bf16 %v2587
    %v2624 = vunpack.c.l.s8.bf16 %v2588
    %v2625 = vunpack.c.h.s8.bf16 %v2585
    %v2626 = vunpack.c.h.s8.bf16 %v2586
    %v2627 = vunpack.c.h.s8.bf16 %v2587
    %v2628 = vunpack.c.h.s8.bf16 %v2588
    %v2629 = vunpack.c.l.s8.bf16 %v2589
    %v2630 = vunpack.c.l.s8.bf16 %v2590
    %v2631 = vunpack.c.l.s8.bf16 %v2591
    %v2632 = vunpack.c.l.s8.bf16 %v2592
    %v2633 = vunpack.c.h.s8.bf16 %v2589
    %v2634 = vunpack.c.h.s8.bf16 %v2590
    %v2635 = vunpack.c.h.s8.bf16 %v2591
    %v2636 = vunpack.c.h.s8.bf16 %v2592
    %v2637 = vunpack.c.l.s8.bf16 %v2593
    %v2638 = vunpack.c.l.s8.bf16 %v2594
    %v2639 = vunpack.c.l.s8.bf16 %v2595
    %v2640 = vunpack.c.l.s8.bf16 %v2596
    %v2641 = vunpack.c.h.s8.bf16 %v2593
    %v2642 = vunpack.c.h.s8.bf16 %v2594
    %v2643 = vunpack.c.h.s8.bf16 %v2595
    %v2644 = vunpack.c.h.s8.bf16 %v2596
    %v2645 = vunpack.c.l.s8.bf16 %v2597
    %v2646 = vunpack.c.l.s8.bf16 %v2598
    %v2647 = vunpack.c.l.s8.bf16 %v2599
    %v2648 = vunpack.c.l.s8.bf16 %v2600
    %v2649 = vunpack.c.h.s8.bf16 %v2597
    %v2650 = vunpack.c.h.s8.bf16 %v2598
    %v2651 = vunpack.c.h.s8.bf16 %v2599
    %v2652 = vunpack.c.h.s8.bf16 %v2600
    %v2653 = vunpack.c.l.s8.bf16 %v2601
    %v2654 = vunpack.c.l.s8.bf16 %v2602
    %v2655 = vunpack.c.l.s8.bf16 %v2603
    %v2656 = vunpack.c.l.s8.bf16 %v2604
    %v2657 = vunpack.c.h.s8.bf16 %v2601
    %v2658 = vunpack.c.h.s8.bf16 %v2602
    %v2659 = vunpack.c.h.s8.bf16 %v2603
    %v2660 = vunpack.c.h.s8.bf16 %v2604
    %v2661 = vunpack.c.l.s8.bf16 %v2605
    %v2662 = vunpack.c.l.s8.bf16 %v2606
    %v2663 = vunpack.c.l.s8.bf16 %v2607
    %v2664 = vunpack.c.l.s8.bf16 %v2608
    %v2665 = vunpack.c.h.s8.bf16 %v2605
    %v2666 = vunpack.c.h.s8.bf16 %v2606
    %v2667 = vunpack.c.h.s8.bf16 %v2607
    %v2668 = vunpack.c.h.s8.bf16 %v2608
    %v2669 = vunpack.c.l.s8.bf16 %v2609
    %v2670 = vunpack.c.l.s8.bf16 %v2610
    %v2671 = vunpack.c.l.s8.bf16 %v2611
    %v2672 = vunpack.c.l.s8.bf16 %v2612
    %v2673 = vunpack.c.h.s8.bf16 %v2609
    %v2674 = vunpack.c.h.s8.bf16 %v2610
    %v2675 = vunpack.c.h.s8.bf16 %v2611
    %v2676 = vunpack.c.h.s8.bf16 %v2612
    %v2677 = vrot.slane %v2008, 4
    %v2678 = vrot.slane %v2010, 3
    %v2679 = vsel %vm2013, %v2678, %v2677
    %v2680 = vrot.slane %v2009, 4
    %v2681 = vrot.slane %v2011, 3
    %v2682 = vsel %vm2013, %v2681, %v2680
    %v2683 = vpack.c.b16 %v2679, %v2679
    %v2684 = vpack.c.b16 %v2682, %v2682
    %2687 = vmatprep.subr.bf16.mxu0 %v2642
    %2688 = vmatpush1.bf16.msra.mxu0 %v2641
    %2689 = vmatprep.subr.bf16.mxu0 %v2638
    %2690 = vmatpush1.bf16.msra.mxu0 %v2637
    %2691 = vmatprep.subr.bf16.mxu0 %v2634
    %2692 = vmatpush1.bf16.msra.mxu0 %v2633
    %2693 = vmatprep.subr.bf16.mxu0 %v2630
    %2694 = vmatpush1.bf16.msra.mxu0 %v2629
    %2695 = vmatprep.subr.bf16.mxu0 %v2626
    %2696 = vmatpush1.bf16.msra.mxu0 %v2625
    %2697 = vmatprep.subr.bf16.mxu0 %v2622
    %2698 = vmatpush1.bf16.msra.mxu0 %v2621
    %2699 = vmatprep.subr.bf16.mxu0 %v2618
    %2700 = vmatpush1.bf16.msra.mxu0 %v2617
    %2701 = vmatprep.subr.bf16.mxu0 %v2614
    %2702 = vmatpush1.bf16.msra.mxu0 %v2613
    %2703 = vmatprep.subr.bf16.mxu0 %v2674
    %2704 = vmatpush2.bf16.msra.mxu0 %v2673
    %2705 = vmatprep.subr.bf16.mxu0 %v2670
    %2706 = vmatpush2.bf16.msra.mxu0 %v2669
    %2707 = vmatprep.subr.bf16.mxu0 %v2666
    %2708 = vmatpush2.bf16.msra.mxu0 %v2665
    %2709 = vmatprep.subr.bf16.mxu0 %v2662
    %2710 = vmatpush2.bf16.msra.mxu0 %v2661
    %2711 = vmatprep.subr.bf16.mxu0 %v2658
    %2712 = vmatpush2.bf16.msra.mxu0 %v2657
    %2713 = vmatprep.subr.bf16.mxu0 %v2654
    %2714 = vmatpush2.bf16.msra.mxu0 %v2653
    %2715 = vmatprep.subr.bf16.mxu0 %v2650
    %2716 = vmatpush2.bf16.msra.mxu0 %v2649
    %2717 = vmatprep.subr.bf16.mxu0 %v2646
    %2718 = vmatpush2.bf16.msra.mxu0 %v2645
    %2719 = vmatprep.mubr.bf16.mxu0 %v2684
    %2720 = vmatmul.mubr.bf16.gmra.mxu0 %v2683
    %v2721 = vpop.f32.mrf.mxu0
    %v2722 = vadd.f32 0.0, %v2721
    %v2723 = vpop.f32.mrf.mxu0
    %v2724 = vadd.f32 0.0, %v2723
    %v2725 = vpop.f32.mrf.mxu0
    %v2726 = vpop.f32.mrf.mxu0
    %2727 = vdwg.mxu0
    %2728 = vmatprep.subr.bf16.mxu0 %v2644
    %2729 = vmatpush1.bf16.msra.mxu0 %v2643
    %2730 = vmatprep.subr.bf16.mxu0 %v2640
    %2731 = vmatpush1.bf16.msra.mxu0 %v2639
    %2732 = vmatprep.subr.bf16.mxu0 %v2636
    %2733 = vmatpush1.bf16.msra.mxu0 %v2635
    %2734 = vmatprep.subr.bf16.mxu0 %v2632
    %2735 = vmatpush1.bf16.msra.mxu0 %v2631
    %2736 = vmatprep.subr.bf16.mxu0 %v2628
    %2737 = vmatpush1.bf16.msra.mxu0 %v2627
    %2738 = vmatprep.subr.bf16.mxu0 %v2624
    %2739 = vmatpush1.bf16.msra.mxu0 %v2623
    %2740 = vmatprep.subr.bf16.mxu0 %v2620
    %2741 = vmatpush1.bf16.msra.mxu0 %v2619
    %2742 = vmatprep.subr.bf16.mxu0 %v2616
    %2743 = vmatpush1.bf16.msra.mxu0 %v2615
    %2744 = vmatprep.subr.bf16.mxu0 %v2676
    %2745 = vmatpush2.bf16.msra.mxu0 %v2675
    %2746 = vmatprep.subr.bf16.mxu0 %v2672
    %2747 = vmatpush2.bf16.msra.mxu0 %v2671
    %2748 = vmatprep.subr.bf16.mxu0 %v2668
    %2749 = vmatpush2.bf16.msra.mxu0 %v2667
    %2750 = vmatprep.subr.bf16.mxu0 %v2664
    %2751 = vmatpush2.bf16.msra.mxu0 %v2663
    %2752 = vmatprep.subr.bf16.mxu0 %v2660
    %2753 = vmatpush2.bf16.msra.mxu0 %v2659
    %2754 = vmatprep.subr.bf16.mxu0 %v2656
    %2755 = vmatpush2.bf16.msra.mxu0 %v2655
    %2756 = vmatprep.subr.bf16.mxu0 %v2652
    %2757 = vmatpush2.bf16.msra.mxu0 %v2651
    %2758 = vmatprep.subr.bf16.mxu0 %v2648
    %2759 = vmatpush2.bf16.msra.mxu0 %v2647
    %2760 = vmatprep.mubr.bf16.mxu0 %v2684
    %2761 = vmatmul.mubr.bf16.gmra.mxu0 %v2683
    %v2762 = vpop.f32.mrf.mxu0
    %v2763 = vadd.f32 0.0, %v2762
    %v2764 = vpop.f32.mrf.mxu0
    %v2765 = vadd.f32 0.0, %v2764
    %v2766 = vpop.f32.mrf.mxu0
    %v2767 = vpop.f32.mrf.mxu0
    %2768 = vdwg.mxu0
    %v2769 = vadd.f32 %v2576, %v2722
    %v2770 = vadd.f32 %v2577, %v2724
    %v2771 = vadd.f32 %v2578, %v2763
    %v2772 = vadd.f32 %v2579, %v2765
    %s2773 = scalar_lea.vmem [#allocation2], 1280
    %v2774 = vld [vmem:[%s2773] sm:$0xff]
    %v2775 = vld [vmem:[%s2773 + $0x8] sm:$0xff]
    %v2776 = vld [vmem:[%s2773 + $0x10] sm:$0xff]
    %v2777 = vld [vmem:[%s2773 + $0x18] sm:$0xff]
    %v2778 = vld [vmem:[%s2773 + $0x20] sm:$0xff]
    %v2779 = vld [vmem:[%s2773 + $0x28] sm:$0xff]
    %v2780 = vld [vmem:[%s2773 + $0x30] sm:$0xff]
    %v2781 = vld [vmem:[%s2773 + $0x38] sm:$0xff]
    %v2782 = vld [vmem:[%s2773 + $0x40] sm:$0xff]
    %v2783 = vld [vmem:[%s2773 + $0x48] sm:$0xff]
    %v2784 = vld [vmem:[%s2773 + $0x50] sm:$0xff]
    %v2785 = vld [vmem:[%s2773 + $0x58] sm:$0xff]
    %v2786 = vld [vmem:[%s2773 + $0x60] sm:$0xff]
    %v2787 = vld [vmem:[%s2773 + $0x68] sm:$0xff]
    %v2788 = vld [vmem:[%s2773 + $0x70] sm:$0xff]
    %v2789 = vld [vmem:[%s2773 + $0x78] sm:$0xff]
    %v2790 = vld [vmem:[%s2773 + $0x80] sm:$0xff]
    %v2791 = vld [vmem:[%s2773 + $0x88] sm:$0xff]
    %v2792 = vld [vmem:[%s2773 + $0x90] sm:$0xff]
    %v2793 = vld [vmem:[%s2773 + $0x98] sm:$0xff]
    %v2794 = vld [vmem:[%s2773 + $0xa0] sm:$0xff]
    %v2795 = vld [vmem:[%s2773 + $0xa8] sm:$0xff]
    %v2796 = vld [vmem:[%s2773 + $0xb0] sm:$0xff]
    %v2797 = vld [vmem:[%s2773 + $0xb8] sm:$0xff]
    %v2798 = vld [vmem:[%s2773 + $0xc0] sm:$0xff]
    %v2799 = vld [vmem:[%s2773 + $0xc8] sm:$0xff]
    %v2800 = vld [vmem:[%s2773 + $0xd0] sm:$0xff]
    %v2801 = vld [vmem:[%s2773 + $0xd8] sm:$0xff]
    %v2802 = vld [vmem:[%s2773 + $0xe0] sm:$0xff]
    %v2803 = vld [vmem:[%s2773 + $0xe8] sm:$0xff]
    %v2804 = vld [vmem:[%s2773 + $0xf0] sm:$0xff]
    %v2805 = vld [vmem:[%s2773 + $0xf8] sm:$0xff]
    %v2806 = vunpack.c.l.s8.bf16 %v2774
    %v2807 = vunpack.c.l.s8.bf16 %v2775
    %v2808 = vunpack.c.l.s8.bf16 %v2776
    %v2809 = vunpack.c.l.s8.bf16 %v2777
    %v2810 = vunpack.c.h.s8.bf16 %v2774
    %v2811 = vunpack.c.h.s8.bf16 %v2775
    %v2812 = vunpack.c.h.s8.bf16 %v2776
    %v2813 = vunpack.c.h.s8.bf16 %v2777
    %v2814 = vunpack.c.l.s8.bf16 %v2778
    %v2815 = vunpack.c.l.s8.bf16 %v2779
    %v2816 = vunpack.c.l.s8.bf16 %v2780
    %v2817 = vunpack.c.l.s8.bf16 %v2781
    %v2818 = vunpack.c.h.s8.bf16 %v2778
    %v2819 = vunpack.c.h.s8.bf16 %v2779
    %v2820 = vunpack.c.h.s8.bf16 %v2780
    %v2821 = vunpack.c.h.s8.bf16 %v2781
    %v2822 = vunpack.c.l.s8.bf16 %v2782
    %v2823 = vunpack.c.l.s8.bf16 %v2783
    %v2824 = vunpack.c.l.s8.bf16 %v2784
    %v2825 = vunpack.c.l.s8.bf16 %v2785
    %v2826 = vunpack.c.h.s8.bf16 %v2782
    %v2827 = vunpack.c.h.s8.bf16 %v2783
    %v2828 = vunpack.c.h.s8.bf16 %v2784
    %v2829 = vunpack.c.h.s8.bf16 %v2785
    %v2830 = vunpack.c.l.s8.bf16 %v2786
    %v2831 = vunpack.c.l.s8.bf16 %v2787
    %v2832 = vunpack.c.l.s8.bf16 %v2788
    %v2833 = vunpack.c.l.s8.bf16 %v2789
    %v2834 = vunpack.c.h.s8.bf16 %v2786
    %v2835 = vunpack.c.h.s8.bf16 %v2787
    %v2836 = vunpack.c.h.s8.bf16 %v2788
    %v2837 = vunpack.c.h.s8.bf16 %v2789
    %v2838 = vunpack.c.l.s8.bf16 %v2790
    %v2839 = vunpack.c.l.s8.bf16 %v2791
    %v2840 = vunpack.c.l.s8.bf16 %v2792
    %v2841 = vunpack.c.l.s8.bf16 %v2793
    %v2842 = vunpack.c.h.s8.bf16 %v2790
    %v2843 = vunpack.c.h.s8.bf16 %v2791
    %v2844 = vunpack.c.h.s8.bf16 %v2792
    %v2845 = vunpack.c.h.s8.bf16 %v2793
    %v2846 = vunpack.c.l.s8.bf16 %v2794
    %v2847 = vunpack.c.l.s8.bf16 %v2795
    %v2848 = vunpack.c.l.s8.bf16 %v2796
    %v2849 = vunpack.c.l.s8.bf16 %v2797
    %v2850 = vunpack.c.h.s8.bf16 %v2794
    %v2851 = vunpack.c.h.s8.bf16 %v2795
    %v2852 = vunpack.c.h.s8.bf16 %v2796
    %v2853 = vunpack.c.h.s8.bf16 %v2797
    %v2854 = vunpack.c.l.s8.bf16 %v2798
    %v2855 = vunpack.c.l.s8.bf16 %v2799
    %v2856 = vunpack.c.l.s8.bf16 %v2800
    %v2857 = vunpack.c.l.s8.bf16 %v2801
    %v2858 = vunpack.c.h.s8.bf16 %v2798
    %v2859 = vunpack.c.h.s8.bf16 %v2799
    %v2860 = vunpack.c.h.s8.bf16 %v2800
    %v2861 = vunpack.c.h.s8.bf16 %v2801
    %v2862 = vunpack.c.l.s8.bf16 %v2802
    %v2863 = vunpack.c.l.s8.bf16 %v2803
    %v2864 = vunpack.c.l.s8.bf16 %v2804
    %v2865 = vunpack.c.l.s8.bf16 %v2805
    %v2866 = vunpack.c.h.s8.bf16 %v2802
    %v2867 = vunpack.c.h.s8.bf16 %v2803
    %v2868 = vunpack.c.h.s8.bf16 %v2804
    %v2869 = vunpack.c.h.s8.bf16 %v2805
    %v2870 = vrot.slane %v2008, 5
    %v2871 = vrot.slane %v2010, 4
    %v2872 = vsel %vm2013, %v2871, %v2870
    %v2873 = vrot.slane %v2009, 5
    %v2874 = vrot.slane %v2011, 4
    %v2875 = vsel %vm2013, %v2874, %v2873
    %v2876 = vpack.c.b16 %v2872, %v2872
    %v2877 = vpack.c.b16 %v2875, %v2875
    %2880 = vmatprep.subr.bf16.mxu0 %v2835
    %2881 = vmatpush1.bf16.msra.mxu0 %v2834
    %2882 = vmatprep.subr.bf16.mxu0 %v2831
    %2883 = vmatpush1.bf16.msra.mxu0 %v2830
    %2884 = vmatprep.subr.bf16.mxu0 %v2827
    %2885 = vmatpush1.bf16.msra.mxu0 %v2826
    %2886 = vmatprep.subr.bf16.mxu0 %v2823
    %2887 = vmatpush1.bf16.msra.mxu0 %v2822
    %2888 = vmatprep.subr.bf16.mxu0 %v2819
    %2889 = vmatpush1.bf16.msra.mxu0 %v2818
    %2890 = vmatprep.subr.bf16.mxu0 %v2815
    %2891 = vmatpush1.bf16.msra.mxu0 %v2814
    %2892 = vmatprep.subr.bf16.mxu0 %v2811
    %2893 = vmatpush1.bf16.msra.mxu0 %v2810
    %2894 = vmatprep.subr.bf16.mxu0 %v2807
    %2895 = vmatpush1.bf16.msra.mxu0 %v2806
    %2896 = vmatprep.subr.bf16.mxu0 %v2867
    %2897 = vmatpush2.bf16.msra.mxu0 %v2866
    %2898 = vmatprep.subr.bf16.mxu0 %v2863
    %2899 = vmatpush2.bf16.msra.mxu0 %v2862
    %2900 = vmatprep.subr.bf16.mxu0 %v2859
    %2901 = vmatpush2.bf16.msra.mxu0 %v2858
    %2902 = vmatprep.subr.bf16.mxu0 %v2855
    %2903 = vmatpush2.bf16.msra.mxu0 %v2854
    %2904 = vmatprep.subr.bf16.mxu0 %v2851
    %2905 = vmatpush2.bf16.msra.mxu0 %v2850
    %2906 = vmatprep.subr.bf16.mxu0 %v2847
    %2907 = vmatpush2.bf16.msra.mxu0 %v2846
    %2908 = vmatprep.subr.bf16.mxu0 %v2843
    %2909 = vmatpush2.bf16.msra.mxu0 %v2842
    %2910 = vmatprep.subr.bf16.mxu0 %v2839
    %2911 = vmatpush2.bf16.msra.mxu0 %v2838
    %2912 = vmatprep.mubr.bf16.mxu0 %v2877
    %2913 = vmatmul.mubr.bf16.gmra.mxu0 %v2876
    %v2914 = vpop.f32.mrf.mxu0
    %v2915 = vadd.f32 0.0, %v2914
    %v2916 = vpop.f32.mrf.mxu0
    %v2917 = vadd.f32 0.0, %v2916
    %v2918 = vpop.f32.mrf.mxu0
    %v2919 = vpop.f32.mrf.mxu0
    %2920 = vdwg.mxu0
    %2921 = vmatprep.subr.bf16.mxu0 %v2837
    %2922 = vmatpush1.bf16.msra.mxu0 %v2836
    %2923 = vmatprep.subr.bf16.mxu0 %v2833
    %2924 = vmatpush1.bf16.msra.mxu0 %v2832
    %2925 = vmatprep.subr.bf16.mxu0 %v2829
    %2926 = vmatpush1.bf16.msra.mxu0 %v2828
    %2927 = vmatprep.subr.bf16.mxu0 %v2825
    %2928 = vmatpush1.bf16.msra.mxu0 %v2824
    %2929 = vmatprep.subr.bf16.mxu0 %v2821
    %2930 = vmatpush1.bf16.msra.mxu0 %v2820
    %2931 = vmatprep.subr.bf16.mxu0 %v2817
    %2932 = vmatpush1.bf16.msra.mxu0 %v2816
    %2933 = vmatprep.subr.bf16.mxu0 %v2813
    %2934 = vmatpush1.bf16.msra.mxu0 %v2812
    %2935 = vmatprep.subr.bf16.mxu0 %v2809
    %2936 = vmatpush1.bf16.msra.mxu0 %v2808
    %2937 = vmatprep.subr.bf16.mxu0 %v2869
    %2938 = vmatpush2.bf16.msra.mxu0 %v2868
    %2939 = vmatprep.subr.bf16.mxu0 %v2865
    %2940 = vmatpush2.bf16.msra.mxu0 %v2864
    %2941 = vmatprep.subr.bf16.mxu0 %v2861
    %2942 = vmatpush2.bf16.msra.mxu0 %v2860
    %2943 = vmatprep.subr.bf16.mxu0 %v2857
    %2944 = vmatpush2.bf16.msra.mxu0 %v2856
    %2945 = vmatprep.subr.bf16.mxu0 %v2853
    %2946 = vmatpush2.bf16.msra.mxu0 %v2852
    %2947 = vmatprep.subr.bf16.mxu0 %v2849
    %2948 = vmatpush2.bf16.msra.mxu0 %v2848
    %2949 = vmatprep.subr.bf16.mxu0 %v2845
    %2950 = vmatpush2.bf16.msra.mxu0 %v2844
    %2951 = vmatprep.subr.bf16.mxu0 %v2841
    %2952 = vmatpush2.bf16.msra.mxu0 %v2840
    %2953 = vmatprep.mubr.bf16.mxu0 %v2877
    %2954 = vmatmul.mubr.bf16.gmra.mxu0 %v2876
    %v2955 = vpop.f32.mrf.mxu0
    %v2956 = vadd.f32 0.0, %v2955
    %v2957 = vpop.f32.mrf.mxu0
    %v2958 = vadd.f32 0.0, %v2957
    %v2959 = vpop.f32.mrf.mxu0
    %v2960 = vpop.f32.mrf.mxu0
    %2961 = vdwg.mxu0
    %v2962 = vadd.f32 %v2769, %v2915
    %v2963 = vadd.f32 %v2770, %v2917
    %v2964 = vadd.f32 %v2771, %v2956
    %v2965 = vadd.f32 %v2772, %v2958
    %s2966 = sshll.u32 %s1804, 4
    %2967 = dma.done %s247, %s2966
    %v2968 = vld [vmem:[%s246] sm:$0xff]
    %v2969 = vld [vmem:[%s246 + $0x8] sm:$0xff]
    %v2970 = vld [vmem:[%s246 + $0x10] sm:$0xff]
    %v2971 = vld [vmem:[%s246 + $0x18] sm:$0xff]
    %v2972 = vld [vmem:[%s246 + $0x20] sm:$0xff]
    %v2973 = vld [vmem:[%s246 + $0x28] sm:$0xff]
    %v2974 = vld [vmem:[%s246 + $0x30] sm:$0xff]
    %v2975 = vld [vmem:[%s246 + $0x38] sm:$0xff]
    %v2976 = vld [vmem:[%s246 + $0x40] sm:$0xff]
    %v2977 = vld [vmem:[%s246 + $0x48] sm:$0xff]
    %v2978 = vld [vmem:[%s246 + $0x50] sm:$0xff]
    %v2979 = vld [vmem:[%s246 + $0x58] sm:$0xff]
    %v2980 = vld [vmem:[%s246 + $0x60] sm:$0xff]
    %v2981 = vld [vmem:[%s246 + $0x68] sm:$0xff]
    %v2982 = vld [vmem:[%s246 + $0x70] sm:$0xff]
    %v2983 = vld [vmem:[%s246 + $0x78] sm:$0xff]
    %v2984 = vld [vmem:[%s246 + $0x80] sm:$0xff]
    %v2985 = vld [vmem:[%s246 + $0x88] sm:$0xff]
    %v2986 = vld [vmem:[%s246 + $0x90] sm:$0xff]
    %v2987 = vld [vmem:[%s246 + $0x98] sm:$0xff]
    %v2988 = vld [vmem:[%s246 + $0xa0] sm:$0xff]
    %v2989 = vld [vmem:[%s246 + $0xa8] sm:$0xff]
    %v2990 = vld [vmem:[%s246 + $0xb0] sm:$0xff]
    %v2991 = vld [vmem:[%s246 + $0xb8] sm:$0xff]
    %v2992 = vld [vmem:[%s246 + $0xc0] sm:$0xff]
    %v2993 = vld [vmem:[%s246 + $0xc8] sm:$0xff]
    %v2994 = vld [vmem:[%s246 + $0xd0] sm:$0xff]
    %v2995 = vld [vmem:[%s246 + $0xd8] sm:$0xff]
    %v2996 = vld [vmem:[%s246 + $0xe0] sm:$0xff]
    %v2997 = vld [vmem:[%s246 + $0xe8] sm:$0xff]
    %v2998 = vld [vmem:[%s246 + $0xf0] sm:$0xff]
    %v2999 = vld [vmem:[%s246 + $0xf8] sm:$0xff]
    %v3000 = vunpack.c.l.s8.bf16 %v2968
    %v3001 = vunpack.c.l.s8.bf16 %v2969
    %v3002 = vunpack.c.l.s8.bf16 %v2970
    %v3003 = vunpack.c.l.s8.bf16 %v2971
    %v3004 = vunpack.c.h.s8.bf16 %v2968
    %v3005 = vunpack.c.h.s8.bf16 %v2969
    %v3006 = vunpack.c.h.s8.bf16 %v2970
    %v3007 = vunpack.c.h.s8.bf16 %v2971
    %v3008 = vunpack.c.l.s8.bf16 %v2972
    %v3009 = vunpack.c.l.s8.bf16 %v2973
    %v3010 = vunpack.c.l.s8.bf16 %v2974
    %v3011 = vunpack.c.l.s8.bf16 %v2975
    %v3012 = vunpack.c.h.s8.bf16 %v2972
    %v3013 = vunpack.c.h.s8.bf16 %v2973
    %v3014 = vunpack.c.h.s8.bf16 %v2974
    %v3015 = vunpack.c.h.s8.bf16 %v2975
    %v3016 = vunpack.c.l.s8.bf16 %v2976
    %v3017 = vunpack.c.l.s8.bf16 %v2977
    %v3018 = vunpack.c.l.s8.bf16 %v2978
    %v3019 = vunpack.c.l.s8.bf16 %v2979
    %v3020 = vunpack.c.h.s8.bf16 %v2976
    %v3021 = vunpack.c.h.s8.bf16 %v2977
    %v3022 = vunpack.c.h.s8.bf16 %v2978
    %v3023 = vunpack.c.h.s8.bf16 %v2979
    %v3024 = vunpack.c.l.s8.bf16 %v2980
    %v3025 = vunpack.c.l.s8.bf16 %v2981
    %v3026 = vunpack.c.l.s8.bf16 %v2982
    %v3027 = vunpack.c.l.s8.bf16 %v2983
    %v3028 = vunpack.c.h.s8.bf16 %v2980
    %v3029 = vunpack.c.h.s8.bf16 %v2981
    %v3030 = vunpack.c.h.s8.bf16 %v2982
    %v3031 = vunpack.c.h.s8.bf16 %v2983
    %v3032 = vunpack.c.l.s8.bf16 %v2984
    %v3033 = vunpack.c.l.s8.bf16 %v2985
    %v3034 = vunpack.c.l.s8.bf16 %v2986
    %v3035 = vunpack.c.l.s8.bf16 %v2987
    %v3036 = vunpack.c.h.s8.bf16 %v2984
    %v3037 = vunpack.c.h.s8.bf16 %v2985
    %v3038 = vunpack.c.h.s8.bf16 %v2986
    %v3039 = vunpack.c.h.s8.bf16 %v2987
    %v3040 = vunpack.c.l.s8.bf16 %v2988
    %v3041 = vunpack.c.l.s8.bf16 %v2989
    %v3042 = vunpack.c.l.s8.bf16 %v2990
    %v3043 = vunpack.c.l.s8.bf16 %v2991
    %v3044 = vunpack.c.h.s8.bf16 %v2988
    %v3045 = vunpack.c.h.s8.bf16 %v2989
    %v3046 = vunpack.c.h.s8.bf16 %v2990
    %v3047 = vunpack.c.h.s8.bf16 %v2991
    %v3048 = vunpack.c.l.s8.bf16 %v2992
    %v3049 = vunpack.c.l.s8.bf16 %v2993
    %v3050 = vunpack.c.l.s8.bf16 %v2994
    %v3051 = vunpack.c.l.s8.bf16 %v2995
    %v3052 = vunpack.c.h.s8.bf16 %v2992
    %v3053 = vunpack.c.h.s8.bf16 %v2993
    %v3054 = vunpack.c.h.s8.bf16 %v2994
    %v3055 = vunpack.c.h.s8.bf16 %v2995
    %v3056 = vunpack.c.l.s8.bf16 %v2996
    %v3057 = vunpack.c.l.s8.bf16 %v2997
    %v3058 = vunpack.c.l.s8.bf16 %v2998
    %v3059 = vunpack.c.l.s8.bf16 %v2999
    %v3060 = vunpack.c.h.s8.bf16 %v2996
    %v3061 = vunpack.c.h.s8.bf16 %v2997
    %v3062 = vunpack.c.h.s8.bf16 %v2998
    %v3063 = vunpack.c.h.s8.bf16 %v2999
    %v3064 = vrot.slane %v2008, 6
    %v3065 = vrot.slane %v2010, 5
    %v3066 = vsel %vm2013, %v3065, %v3064
    %v3067 = vrot.slane %v2009, 6
    %v3068 = vrot.slane %v2011, 5
    %v3069 = vsel %vm2013, %v3068, %v3067
    %v3070 = vpack.c.b16 %v3066, %v3066
    %v3071 = vpack.c.b16 %v3069, %v3069
    %3074 = vmatprep.subr.bf16.mxu0 %v3029
    %3075 = vmatpush1.bf16.msra.mxu0 %v3028
    %3076 = vmatprep.subr.bf16.mxu0 %v3025
    %3077 = vmatpush1.bf16.msra.mxu0 %v3024
    %3078 = vmatprep.subr.bf16.mxu0 %v3021
    %3079 = vmatpush1.bf16.msra.mxu0 %v3020
    %3080 = vmatprep.subr.bf16.mxu0 %v3017
    %3081 = vmatpush1.bf16.msra.mxu0 %v3016
    %3082 = vmatprep.subr.bf16.mxu0 %v3013
    %3083 = vmatpush1.bf16.msra.mxu0 %v3012
    %3084 = vmatprep.subr.bf16.mxu0 %v3009
    %3085 = vmatpush1.bf16.msra.mxu0 %v3008
    %3086 = vmatprep.subr.bf16.mxu0 %v3005
    %3087 = vmatpush1.bf16.msra.mxu0 %v3004
    %3088 = vmatprep.subr.bf16.mxu0 %v3001
    %3089 = vmatpush1.bf16.msra.mxu0 %v3000
    %3090 = vmatprep.subr.bf16.mxu0 %v3061
    %3091 = vmatpush2.bf16.msra.mxu0 %v3060
    %3092 = vmatprep.subr.bf16.mxu0 %v3057
    %3093 = vmatpush2.bf16.msra.mxu0 %v3056
    %3094 = vmatprep.subr.bf16.mxu0 %v3053
    %3095 = vmatpush2.bf16.msra.mxu0 %v3052
    %3096 = vmatprep.subr.bf16.mxu0 %v3049
    %3097 = vmatpush2.bf16.msra.mxu0 %v3048
    %3098 = vmatprep.subr.bf16.mxu0 %v3045
    %3099 = vmatpush2.bf16.msra.mxu0 %v3044
    %3100 = vmatprep.subr.bf16.mxu0 %v3041
    %3101 = vmatpush2.bf16.msra.mxu0 %v3040
    %3102 = vmatprep.subr.bf16.mxu0 %v3037
    %3103 = vmatpush2.bf16.msra.mxu0 %v3036
    %3104 = vmatprep.subr.bf16.mxu0 %v3033
    %3105 = vmatpush2.bf16.msra.mxu0 %v3032
    %3106 = vmatprep.mubr.bf16.mxu0 %v3071
    %3107 = vmatmul.mubr.bf16.gmra.mxu0 %v3070
    %v3108 = vpop.f32.mrf.mxu0
    %v3109 = vadd.f32 0.0, %v3108
    %v3110 = vpop.f32.mrf.mxu0
    %v3111 = vadd.f32 0.0, %v3110
    %v3112 = vpop.f32.mrf.mxu0
    %v3113 = vpop.f32.mrf.mxu0
    %3114 = vdwg.mxu0
    %3115 = vmatprep.subr.bf16.mxu0 %v3031
    %3116 = vmatpush1.bf16.msra.mxu0 %v3030
    %3117 = vmatprep.subr.bf16.mxu0 %v3027
    %3118 = vmatpush1.bf16.msra.mxu0 %v3026
    %3119 = vmatprep.subr.bf16.mxu0 %v3023
    %3120 = vmatpush1.bf16.msra.mxu0 %v3022
    %3121 = vmatprep.subr.bf16.mxu0 %v3019
    %3122 = vmatpush1.bf16.msra.mxu0 %v3018
    %3123 = vmatprep.subr.bf16.mxu0 %v3015
    %3124 = vmatpush1.bf16.msra.mxu0 %v3014
    %3125 = vmatprep.subr.bf16.mxu0 %v3011
    %3126 = vmatpush1.bf16.msra.mxu0 %v3010
    %3127 = vmatprep.subr.bf16.mxu0 %v3007
    %3128 = vmatpush1.bf16.msra.mxu0 %v3006
    %3129 = vmatprep.subr.bf16.mxu0 %v3003
    %3130 = vmatpush1.bf16.msra.mxu0 %v3002
    %3131 = vmatprep.subr.bf16.mxu0 %v3063
    %3132 = vmatpush2.bf16.msra.mxu0 %v3062
    %3133 = vmatprep.subr.bf16.mxu0 %v3059
    %3134 = vmatpush2.bf16.msra.mxu0 %v3058
    %3135 = vmatprep.subr.bf16.mxu0 %v3055
    %3136 = vmatpush2.bf16.msra.mxu0 %v3054
    %3137 = vmatprep.subr.bf16.mxu0 %v3051
    %3138 = vmatpush2.bf16.msra.mxu0 %v3050
    %3139 = vmatprep.subr.bf16.mxu0 %v3047
    %3140 = vmatpush2.bf16.msra.mxu0 %v3046
    %3141 = vmatprep.subr.bf16.mxu0 %v3043
    %3142 = vmatpush2.bf16.msra.mxu0 %v3042
    %3143 = vmatprep.subr.bf16.mxu0 %v3039
    %3144 = vmatpush2.bf16.msra.mxu0 %v3038
    %3145 = vmatprep.subr.bf16.mxu0 %v3035
    %3146 = vmatpush2.bf16.msra.mxu0 %v3034
    %3147 = vmatprep.mubr.bf16.mxu0 %v3071
    %3148 = vmatmul.mubr.bf16.gmra.mxu0 %v3070
    %v3149 = vpop.f32.mrf.mxu0
    %v3150 = vadd.f32 0.0, %v3149
    %v3151 = vpop.f32.mrf.mxu0
    %v3152 = vadd.f32 0.0, %v3151
    %v3153 = vpop.f32.mrf.mxu0
    %v3154 = vpop.f32.mrf.mxu0
    %3155 = vdwg.mxu0
    %v3156 = vadd.f32 %v2962, %v3109
    %v3157 = vadd.f32 %v2963, %v3111
    %v3158 = vadd.f32 %v2964, %v3150
    %v3159 = vadd.f32 %v2965, %v3152
    %s3160 = scalar_lea.vmem [#allocation2], 1792
    %v3161 = vld [vmem:[%s3160] sm:$0xff]
    %v3162 = vld [vmem:[%s3160 + $0x8] sm:$0xff]
    %v3163 = vld [vmem:[%s3160 + $0x10] sm:$0xff]
    %v3164 = vld [vmem:[%s3160 + $0x18] sm:$0xff]
    %v3165 = vld [vmem:[%s3160 + $0x20] sm:$0xff]
    %v3166 = vld [vmem:[%s3160 + $0x28] sm:$0xff]
    %v3167 = vld [vmem:[%s3160 + $0x30] sm:$0xff]
    %v3168 = vld [vmem:[%s3160 + $0x38] sm:$0xff]
    %v3169 = vld [vmem:[%s3160 + $0x40] sm:$0xff]
    %v3170 = vld [vmem:[%s3160 + $0x48] sm:$0xff]
    %v3171 = vld [vmem:[%s3160 + $0x50] sm:$0xff]
    %v3172 = vld [vmem:[%s3160 + $0x58] sm:$0xff]
    %v3173 = vld [vmem:[%s3160 + $0x60] sm:$0xff]
    %v3174 = vld [vmem:[%s3160 + $0x68] sm:$0xff]
    %v3175 = vld [vmem:[%s3160 + $0x70] sm:$0xff]
    %v3176 = vld [vmem:[%s3160 + $0x78] sm:$0xff]
    %v3177 = vld [vmem:[%s3160 + $0x80] sm:$0xff]
    %v3178 = vld [vmem:[%s3160 + $0x88] sm:$0xff]
    %v3179 = vld [vmem:[%s3160 + $0x90] sm:$0xff]
    %v3180 = vld [vmem:[%s3160 + $0x98] sm:$0xff]
    %v3181 = vld [vmem:[%s3160 + $0xa0] sm:$0xff]
    %v3182 = vld [vmem:[%s3160 + $0xa8] sm:$0xff]
    %v3183 = vld [vmem:[%s3160 + $0xb0] sm:$0xff]
    %v3184 = vld [vmem:[%s3160 + $0xb8] sm:$0xff]
    %v3185 = vld [vmem:[%s3160 + $0xc0] sm:$0xff]
    %v3186 = vld [vmem:[%s3160 + $0xc8] sm:$0xff]
    %v3187 = vld [vmem:[%s3160 + $0xd0] sm:$0xff]
    %v3188 = vld [vmem:[%s3160 + $0xd8] sm:$0xff]
    %v3189 = vld [vmem:[%s3160 + $0xe0] sm:$0xff]
    %v3190 = vld [vmem:[%s3160 + $0xe8] sm:$0xff]
    %v3191 = vld [vmem:[%s3160 + $0xf0] sm:$0xff]
    %v3192 = vld [vmem:[%s3160 + $0xf8] sm:$0xff]
    %v3193 = vunpack.c.l.s8.bf16 %v3161
    %v3194 = vunpack.c.l.s8.bf16 %v3162
    %v3195 = vunpack.c.l.s8.bf16 %v3163
    %v3196 = vunpack.c.l.s8.bf16 %v3164
    %v3197 = vunpack.c.h.s8.bf16 %v3161
    %v3198 = vunpack.c.h.s8.bf16 %v3162
    %v3199 = vunpack.c.h.s8.bf16 %v3163
    %v3200 = vunpack.c.h.s8.bf16 %v3164
    %v3201 = vunpack.c.l.s8.bf16 %v3165
    %v3202 = vunpack.c.l.s8.bf16 %v3166
    %v3203 = vunpack.c.l.s8.bf16 %v3167
    %v3204 = vunpack.c.l.s8.bf16 %v3168
    %v3205 = vunpack.c.h.s8.bf16 %v3165
    %v3206 = vunpack.c.h.s8.bf16 %v3166
    %v3207 = vunpack.c.h.s8.bf16 %v3167
    %v3208 = vunpack.c.h.s8.bf16 %v3168
    %v3209 = vunpack.c.l.s8.bf16 %v3169
    %v3210 = vunpack.c.l.s8.bf16 %v3170
    %v3211 = vunpack.c.l.s8.bf16 %v3171
    %v3212 = vunpack.c.l.s8.bf16 %v3172
    %v3213 = vunpack.c.h.s8.bf16 %v3169
    %v3214 = vunpack.c.h.s8.bf16 %v3170
    %v3215 = vunpack.c.h.s8.bf16 %v3171
    %v3216 = vunpack.c.h.s8.bf16 %v3172
    %v3217 = vunpack.c.l.s8.bf16 %v3173
    %v3218 = vunpack.c.l.s8.bf16 %v3174
    %v3219 = vunpack.c.l.s8.bf16 %v3175
    %v3220 = vunpack.c.l.s8.bf16 %v3176
    %v3221 = vunpack.c.h.s8.bf16 %v3173
    %v3222 = vunpack.c.h.s8.bf16 %v3174
    %v3223 = vunpack.c.h.s8.bf16 %v3175
    %v3224 = vunpack.c.h.s8.bf16 %v3176
    %v3225 = vunpack.c.l.s8.bf16 %v3177
    %v3226 = vunpack.c.l.s8.bf16 %v3178
    %v3227 = vunpack.c.l.s8.bf16 %v3179
    %v3228 = vunpack.c.l.s8.bf16 %v3180
    %v3229 = vunpack.c.h.s8.bf16 %v3177
    %v3230 = vunpack.c.h.s8.bf16 %v3178
    %v3231 = vunpack.c.h.s8.bf16 %v3179
    %v3232 = vunpack.c.h.s8.bf16 %v3180
    %v3233 = vunpack.c.l.s8.bf16 %v3181
    %v3234 = vunpack.c.l.s8.bf16 %v3182
    %v3235 = vunpack.c.l.s8.bf16 %v3183
    %v3236 = vunpack.c.l.s8.bf16 %v3184
    %v3237 = vunpack.c.h.s8.bf16 %v3181
    %v3238 = vunpack.c.h.s8.bf16 %v3182
    %v3239 = vunpack.c.h.s8.bf16 %v3183
    %v3240 = vunpack.c.h.s8.bf16 %v3184
    %v3241 = vunpack.c.l.s8.bf16 %v3185
    %v3242 = vunpack.c.l.s8.bf16 %v3186
    %v3243 = vunpack.c.l.s8.bf16 %v3187
    %v3244 = vunpack.c.l.s8.bf16 %v3188
    %v3245 = vunpack.c.h.s8.bf16 %v3185
    %v3246 = vunpack.c.h.s8.bf16 %v3186
    %v3247 = vunpack.c.h.s8.bf16 %v3187
    %v3248 = vunpack.c.h.s8.bf16 %v3188
    %v3249 = vunpack.c.l.s8.bf16 %v3189
    %v3250 = vunpack.c.l.s8.bf16 %v3190
    %v3251 = vunpack.c.l.s8.bf16 %v3191
    %v3252 = vunpack.c.l.s8.bf16 %v3192
    %v3253 = vunpack.c.h.s8.bf16 %v3189
    %v3254 = vunpack.c.h.s8.bf16 %v3190
    %v3255 = vunpack.c.h.s8.bf16 %v3191
    %v3256 = vunpack.c.h.s8.bf16 %v3192
    %v3257 = vrot.slane %v2008, 7
    %v3258 = vrot.slane %v2010, 6
    %v3259 = vsel %vm2013, %v3258, %v3257
    %v3260 = vrot.slane %v2009, 7
    %v3261 = vrot.slane %v2011, 6
    %v3262 = vsel %vm2013, %v3261, %v3260
    %v3263 = vpack.c.b16 %v3259, %v3259
    %v3264 = vpack.c.b16 %v3262, %v3262
    %3267 = vmatprep.subr.bf16.mxu0 %v3222
    %3268 = vmatpush1.bf16.msra.mxu0 %v3221
    %3269 = vmatprep.subr.bf16.mxu0 %v3218
    %3270 = vmatpush1.bf16.msra.mxu0 %v3217
    %3271 = vmatprep.subr.bf16.mxu0 %v3214
    %3272 = vmatpush1.bf16.msra.mxu0 %v3213
    %3273 = vmatprep.subr.bf16.mxu0 %v3210
    %3274 = vmatpush1.bf16.msra.mxu0 %v3209
    %3275 = vmatprep.subr.bf16.mxu0 %v3206
    %3276 = vmatpush1.bf16.msra.mxu0 %v3205
    %3277 = vmatprep.subr.bf16.mxu0 %v3202
    %3278 = vmatpush1.bf16.msra.mxu0 %v3201
    %3279 = vmatprep.subr.bf16.mxu0 %v3198
    %3280 = vmatpush1.bf16.msra.mxu0 %v3197
    %3281 = vmatprep.subr.bf16.mxu0 %v3194
    %3282 = vmatpush1.bf16.msra.mxu0 %v3193
    %3283 = vmatprep.subr.bf16.mxu0 %v3254
    %3284 = vmatpush2.bf16.msra.mxu0 %v3253
    %3285 = vmatprep.subr.bf16.mxu0 %v3250
    %3286 = vmatpush2.bf16.msra.mxu0 %v3249
    %3287 = vmatprep.subr.bf16.mxu0 %v3246
    %3288 = vmatpush2.bf16.msra.mxu0 %v3245
    %3289 = vmatprep.subr.bf16.mxu0 %v3242
    %3290 = vmatpush2.bf16.msra.mxu0 %v3241
    %3291 = vmatprep.subr.bf16.mxu0 %v3238
    %3292 = vmatpush2.bf16.msra.mxu0 %v3237
    %3293 = vmatprep.subr.bf16.mxu0 %v3234
    %3294 = vmatpush2.bf16.msra.mxu0 %v3233
    %3295 = vmatprep.subr.bf16.mxu0 %v3230
    %3296 = vmatpush2.bf16.msra.mxu0 %v3229
    %3297 = vmatprep.subr.bf16.mxu0 %v3226
    %3298 = vmatpush2.bf16.msra.mxu0 %v3225
    %3299 = vmatprep.mubr.bf16.mxu0 %v3264
    %3300 = vmatmul.mubr.bf16.gmra.mxu0 %v3263
    %v3301 = vpop.f32.mrf.mxu0
    %v3302 = vadd.f32 0.0, %v3301
    %v3303 = vpop.f32.mrf.mxu0
    %v3304 = vadd.f32 0.0, %v3303
    %v3305 = vpop.f32.mrf.mxu0
    %v3306 = vpop.f32.mrf.mxu0
    %3307 = vdwg.mxu0
    %3308 = vmatprep.subr.bf16.mxu0 %v3224
    %3309 = vmatpush1.bf16.msra.mxu0 %v3223
    %3310 = vmatprep.subr.bf16.mxu0 %v3220
    %3311 = vmatpush1.bf16.msra.mxu0 %v3219
    %3312 = vmatprep.subr.bf16.mxu0 %v3216
    %3313 = vmatpush1.bf16.msra.mxu0 %v3215
    %3314 = vmatprep.subr.bf16.mxu0 %v3212
    %3315 = vmatpush1.bf16.msra.mxu0 %v3211
    %3316 = vmatprep.subr.bf16.mxu0 %v3208
    %3317 = vmatpush1.bf16.msra.mxu0 %v3207
    %3318 = vmatprep.subr.bf16.mxu0 %v3204
    %3319 = vmatpush1.bf16.msra.mxu0 %v3203
    %3320 = vmatprep.subr.bf16.mxu0 %v3200
    %3321 = vmatpush1.bf16.msra.mxu0 %v3199
    %3322 = vmatprep.subr.bf16.mxu0 %v3196
    %3323 = vmatpush1.bf16.msra.mxu0 %v3195
    %3324 = vmatprep.subr.bf16.mxu0 %v3256
    %3325 = vmatpush2.bf16.msra.mxu0 %v3255
    %3326 = vmatprep.subr.bf16.mxu0 %v3252
    %3327 = vmatpush2.bf16.msra.mxu0 %v3251
    %3328 = vmatprep.subr.bf16.mxu0 %v3248
    %3329 = vmatpush2.bf16.msra.mxu0 %v3247
    %3330 = vmatprep.subr.bf16.mxu0 %v3244
    %3331 = vmatpush2.bf16.msra.mxu0 %v3243
    %3332 = vmatprep.subr.bf16.mxu0 %v3240
    %3333 = vmatpush2.bf16.msra.mxu0 %v3239
    %3334 = vmatprep.subr.bf16.mxu0 %v3236
    %3335 = vmatpush2.bf16.msra.mxu0 %v3235
    %3336 = vmatprep.subr.bf16.mxu0 %v3232
    %3337 = vmatpush2.bf16.msra.mxu0 %v3231
    %3338 = vmatprep.subr.bf16.mxu0 %v3228
    %3339 = vmatpush2.bf16.msra.mxu0 %v3227
    %3340 = vmatprep.mubr.bf16.mxu0 %v3264
    %3341 = vmatmul.mubr.bf16.gmra.mxu0 %v3263
    %v3342 = vpop.f32.mrf.mxu0
    %v3343 = vadd.f32 0.0, %v3342
    %v3344 = vpop.f32.mrf.mxu0
    %v3345 = vadd.f32 0.0, %v3344
    %v3346 = vpop.f32.mrf.mxu0
    %v3347 = vpop.f32.mrf.mxu0
    %3348 = vdwg.mxu0
    %v3349 = vadd.f32 %v3156, %v3302
    %v3350 = vadd.f32 %v3157, %v3304
    %v3351 = vadd.f32 %v3158, %v3343
    %v3352 = vadd.f32 %v3159, %v3345
    %s3353 = scalar_lea.vmem [#allocation2], 2048
    %v3354 = vld [vmem:[%s3353] sm:$0xff]
    %v3355 = vld [vmem:[%s3353 + $0x8] sm:$0xff]
    %v3356 = vld [vmem:[%s3353 + $0x10] sm:$0xff]
    %v3357 = vld [vmem:[%s3353 + $0x18] sm:$0xff]
    %v3358 = vld [vmem:[%s3353 + $0x20] sm:$0xff]
    %v3359 = vld [vmem:[%s3353 + $0x28] sm:$0xff]
    %v3360 = vld [vmem:[%s3353 + $0x30] sm:$0xff]
    %v3361 = vld [vmem:[%s3353 + $0x38] sm:$0xff]
    %v3362 = vld [vmem:[%s3353 + $0x40] sm:$0xff]
    %v3363 = vld [vmem:[%s3353 + $0x48] sm:$0xff]
    %v3364 = vld [vmem:[%s3353 + $0x50] sm:$0xff]
    %v3365 = vld [vmem:[%s3353 + $0x58] sm:$0xff]
    %v3366 = vld [vmem:[%s3353 + $0x60] sm:$0xff]
    %v3367 = vld [vmem:[%s3353 + $0x68] sm:$0xff]
    %v3368 = vld [vmem:[%s3353 + $0x70] sm:$0xff]
    %v3369 = vld [vmem:[%s3353 + $0x78] sm:$0xff]
    %v3370 = vld [vmem:[%s3353 + $0x80] sm:$0xff]
    %v3371 = vld [vmem:[%s3353 + $0x88] sm:$0xff]
    %v3372 = vld [vmem:[%s3353 + $0x90] sm:$0xff]
    %v3373 = vld [vmem:[%s3353 + $0x98] sm:$0xff]
    %v3374 = vld [vmem:[%s3353 + $0xa0] sm:$0xff]
    %v3375 = vld [vmem:[%s3353 + $0xa8] sm:$0xff]
    %v3376 = vld [vmem:[%s3353 + $0xb0] sm:$0xff]
    %v3377 = vld [vmem:[%s3353 + $0xb8] sm:$0xff]
    %v3378 = vld [vmem:[%s3353 + $0xc0] sm:$0xff]
    %v3379 = vld [vmem:[%s3353 + $0xc8] sm:$0xff]
    %v3380 = vld [vmem:[%s3353 + $0xd0] sm:$0xff]
    %v3381 = vld [vmem:[%s3353 + $0xd8] sm:$0xff]
    %v3382 = vld [vmem:[%s3353 + $0xe0] sm:$0xff]
    %v3383 = vld [vmem:[%s3353 + $0xe8] sm:$0xff]
    %v3384 = vld [vmem:[%s3353 + $0xf0] sm:$0xff]
    %v3385 = vld [vmem:[%s3353 + $0xf8] sm:$0xff]
    %v3386 = vunpack.c.l.s8.bf16 %v3354
    %v3387 = vunpack.c.l.s8.bf16 %v3355
    %v3388 = vunpack.c.l.s8.bf16 %v3356
    %v3389 = vunpack.c.l.s8.bf16 %v3357
    %v3390 = vunpack.c.h.s8.bf16 %v3354
    %v3391 = vunpack.c.h.s8.bf16 %v3355
    %v3392 = vunpack.c.h.s8.bf16 %v3356
    %v3393 = vunpack.c.h.s8.bf16 %v3357
    %v3394 = vunpack.c.l.s8.bf16 %v3358
    %v3395 = vunpack.c.l.s8.bf16 %v3359
    %v3396 = vunpack.c.l.s8.bf16 %v3360
    %v3397 = vunpack.c.l.s8.bf16 %v3361
    %v3398 = vunpack.c.h.s8.bf16 %v3358
    %v3399 = vunpack.c.h.s8.bf16 %v3359
    %v3400 = vunpack.c.h.s8.bf16 %v3360
    %v3401 = vunpack.c.h.s8.bf16 %v3361
    %v3402 = vunpack.c.l.s8.bf16 %v3362
    %v3403 = vunpack.c.l.s8.bf16 %v3363
    %v3404 = vunpack.c.l.s8.bf16 %v3364
    %v3405 = vunpack.c.l.s8.bf16 %v3365
    %v3406 = vunpack.c.h.s8.bf16 %v3362
    %v3407 = vunpack.c.h.s8.bf16 %v3363
    %v3408 = vunpack.c.h.s8.bf16 %v3364
    %v3409 = vunpack.c.h.s8.bf16 %v3365
    %v3410 = vunpack.c.l.s8.bf16 %v3366
    %v3411 = vunpack.c.l.s8.bf16 %v3367
    %v3412 = vunpack.c.l.s8.bf16 %v3368
    %v3413 = vunpack.c.l.s8.bf16 %v3369
    %v3414 = vunpack.c.h.s8.bf16 %v3366
    %v3415 = vunpack.c.h.s8.bf16 %v3367
    %v3416 = vunpack.c.h.s8.bf16 %v3368
    %v3417 = vunpack.c.h.s8.bf16 %v3369
    %v3418 = vunpack.c.l.s8.bf16 %v3370
    %v3419 = vunpack.c.l.s8.bf16 %v3371
    %v3420 = vunpack.c.l.s8.bf16 %v3372
    %v3421 = vunpack.c.l.s8.bf16 %v3373
    %v3422 = vunpack.c.h.s8.bf16 %v3370
    %v3423 = vunpack.c.h.s8.bf16 %v3371
    %v3424 = vunpack.c.h.s8.bf16 %v3372
    %v3425 = vunpack.c.h.s8.bf16 %v3373
    %v3426 = vunpack.c.l.s8.bf16 %v3374
    %v3427 = vunpack.c.l.s8.bf16 %v3375
    %v3428 = vunpack.c.l.s8.bf16 %v3376
    %v3429 = vunpack.c.l.s8.bf16 %v3377
    %v3430 = vunpack.c.h.s8.bf16 %v3374
    %v3431 = vunpack.c.h.s8.bf16 %v3375
    %v3432 = vunpack.c.h.s8.bf16 %v3376
    %v3433 = vunpack.c.h.s8.bf16 %v3377
    %v3434 = vunpack.c.l.s8.bf16 %v3378
    %v3435 = vunpack.c.l.s8.bf16 %v3379
    %v3436 = vunpack.c.l.s8.bf16 %v3380
    %v3437 = vunpack.c.l.s8.bf16 %v3381
    %v3438 = vunpack.c.h.s8.bf16 %v3378
    %v3439 = vunpack.c.h.s8.bf16 %v3379
    %v3440 = vunpack.c.h.s8.bf16 %v3380
    %v3441 = vunpack.c.h.s8.bf16 %v3381
    %v3442 = vunpack.c.l.s8.bf16 %v3382
    %v3443 = vunpack.c.l.s8.bf16 %v3383
    %v3444 = vunpack.c.l.s8.bf16 %v3384
    %v3445 = vunpack.c.l.s8.bf16 %v3385
    %v3446 = vunpack.c.h.s8.bf16 %v3382
    %v3447 = vunpack.c.h.s8.bf16 %v3383
    %v3448 = vunpack.c.h.s8.bf16 %v3384
    %v3449 = vunpack.c.h.s8.bf16 %v3385
    %v3450 = vpack.c.bf16 %v1796, %v1796
    %v3451 = vpack.c.bf16 %v1797, %v1797
    %v3452 = vpack.c.bf16 %v1800, %v1800
    %v3453 = vpack.c.bf16 %v1801, %v1801
    %v3458 = vunpack.c.l.b16 %v3450
    %v3459 = vunpack.c.l.b16 %v3451
    %v3460 = vunpack.c.l.b16 %v3452
    %v3461 = vunpack.c.l.b16 %v3453
    %v3462 = vrot.slane %v3460, 7
    %v3463 = vsel %vm2013, %v3462, %v3458
    %v3464 = vrot.slane %v3461, 7
    %v3465 = vsel %vm2013, %v3464, %v3459
    %v3466 = vpack.c.b16 %v3463, %v3463
    %v3467 = vpack.c.b16 %v3465, %v3465
    %3470 = vmatprep.subr.bf16.mxu0 %v3415
    %3471 = vmatpush1.bf16.msra.mxu0 %v3414
    %3472 = vmatprep.subr.bf16.mxu0 %v3411
    %3473 = vmatpush1.bf16.msra.mxu0 %v3410
    %3474 = vmatprep.subr.bf16.mxu0 %v3407
    %3475 = vmatpush1.bf16.msra.mxu0 %v3406
    %3476 = vmatprep.subr.bf16.mxu0 %v3403
    %3477 = vmatpush1.bf16.msra.mxu0 %v3402
    %3478 = vmatprep.subr.bf16.mxu0 %v3399
    %3479 = vmatpush1.bf16.msra.mxu0 %v3398
    %3480 = vmatprep.subr.bf16.mxu0 %v3395
    %3481 = vmatpush1.bf16.msra.mxu0 %v3394
    %3482 = vmatprep.subr.bf16.mxu0 %v3391
    %3483 = vmatpush1.bf16.msra.mxu0 %v3390
    %3484 = vmatprep.subr.bf16.mxu0 %v3387
    %3485 = vmatpush1.bf16.msra.mxu0 %v3386
    %3486 = vmatprep.subr.bf16.mxu0 %v3447
    %3487 = vmatpush2.bf16.msra.mxu0 %v3446
    %3488 = vmatprep.subr.bf16.mxu0 %v3443
    %3489 = vmatpush2.bf16.msra.mxu0 %v3442
    %3490 = vmatprep.subr.bf16.mxu0 %v3439
    %3491 = vmatpush2.bf16.msra.mxu0 %v3438
    %3492 = vmatprep.subr.bf16.mxu0 %v3435
    %3493 = vmatpush2.bf16.msra.mxu0 %v3434
    %3494 = vmatprep.subr.bf16.mxu0 %v3431
    %3495 = vmatpush2.bf16.msra.mxu0 %v3430
    %3496 = vmatprep.subr.bf16.mxu0 %v3427
    %3497 = vmatpush2.bf16.msra.mxu0 %v3426
    %3498 = vmatprep.subr.bf16.mxu0 %v3423
    %3499 = vmatpush2.bf16.msra.mxu0 %v3422
    %3500 = vmatprep.subr.bf16.mxu0 %v3419
    %3501 = vmatpush2.bf16.msra.mxu0 %v3418
    %3502 = vmatprep.mubr.bf16.mxu0 %v3467
    %3503 = vmatmul.mubr.bf16.gmra.mxu0 %v3466
    %v3504 = vpop.f32.mrf.mxu0
    %v3505 = vadd.f32 0.0, %v3504
    %v3506 = vpop.f32.mrf.mxu0
    %v3507 = vadd.f32 0.0, %v3506
    %v3508 = vpop.f32.mrf.mxu0
    %v3509 = vpop.f32.mrf.mxu0
    %3510 = vdwg.mxu0
    %3511 = vmatprep.subr.bf16.mxu0 %v3417
    %3512 = vmatpush1.bf16.msra.mxu0 %v3416
    %3513 = vmatprep.subr.bf16.mxu0 %v3413
    %3514 = vmatpush1.bf16.msra.mxu0 %v3412
    %3515 = vmatprep.subr.bf16.mxu0 %v3409
    %3516 = vmatpush1.bf16.msra.mxu0 %v3408
    %3517 = vmatprep.subr.bf16.mxu0 %v3405
    %3518 = vmatpush1.bf16.msra.mxu0 %v3404
    %3519 = vmatprep.subr.bf16.mxu0 %v3401
    %3520 = vmatpush1.bf16.msra.mxu0 %v3400
    %3521 = vmatprep.subr.bf16.mxu0 %v3397
    %3522 = vmatpush1.bf16.msra.mxu0 %v3396
    %3523 = vmatprep.subr.bf16.mxu0 %v3393
    %3524 = vmatpush1.bf16.msra.mxu0 %v3392
    %3525 = vmatprep.subr.bf16.mxu0 %v3389
    %3526 = vmatpush1.bf16.msra.mxu0 %v3388
    %3527 = vmatprep.subr.bf16.mxu0 %v3449
    %3528 = vmatpush2.bf16.msra.mxu0 %v3448
    %3529 = vmatprep.subr.bf16.mxu0 %v3445
    %3530 = vmatpush2.bf16.msra.mxu0 %v3444
    %3531 = vmatprep.subr.bf16.mxu0 %v3441
    %3532 = vmatpush2.bf16.msra.mxu0 %v3440
    %3533 = vmatprep.subr.bf16.mxu0 %v3437
    %3534 = vmatpush2.bf16.msra.mxu0 %v3436
    %3535 = vmatprep.subr.bf16.mxu0 %v3433
    %3536 = vmatpush2.bf16.msra.mxu0 %v3432
    %3537 = vmatprep.subr.bf16.mxu0 %v3429
    %3538 = vmatpush2.bf16.msra.mxu0 %v3428
    %3539 = vmatprep.subr.bf16.mxu0 %v3425
    %3540 = vmatpush2.bf16.msra.mxu0 %v3424
    %3541 = vmatprep.subr.bf16.mxu0 %v3421
    %3542 = vmatpush2.bf16.msra.mxu0 %v3420
    %3543 = vmatprep.mubr.bf16.mxu0 %v3467
    %3544 = vmatmul.mubr.bf16.gmra.mxu0 %v3466
    %v3545 = vpop.f32.mrf.mxu0
    %v3546 = vadd.f32 0.0, %v3545
    %v3547 = vpop.f32.mrf.mxu0
    %v3548 = vadd.f32 0.0, %v3547
    %v3549 = vpop.f32.mrf.mxu0
    %v3550 = vpop.f32.mrf.mxu0
    %3551 = vdwg.mxu0
    %v3552 = vadd.f32 %v3349, %v3505
    %v3553 = vadd.f32 %v3350, %v3507
    %v3554 = vadd.f32 %v3351, %v3546
    %v3555 = vadd.f32 %v3352, %v3548
    %s3556 = sshll.u32 %s1804, 4
    %3557 = dma.done %s261, %s3556
    %v3558 = vld [vmem:[%s260] sm:$0xff]
    %v3559 = vld [vmem:[%s260 + $0x8] sm:$0xff]
    %v3560 = vld [vmem:[%s260 + $0x10] sm:$0xff]
    %v3561 = vld [vmem:[%s260 + $0x18] sm:$0xff]
    %v3562 = vld [vmem:[%s260 + $0x20] sm:$0xff]
    %v3563 = vld [vmem:[%s260 + $0x28] sm:$0xff]
    %v3564 = vld [vmem:[%s260 + $0x30] sm:$0xff]
    %v3565 = vld [vmem:[%s260 + $0x38] sm:$0xff]
    %v3566 = vld [vmem:[%s260 + $0x40] sm:$0xff]
    %v3567 = vld [vmem:[%s260 + $0x48] sm:$0xff]
    %v3568 = vld [vmem:[%s260 + $0x50] sm:$0xff]
    %v3569 = vld [vmem:[%s260 + $0x58] sm:$0xff]
    %v3570 = vld [vmem:[%s260 + $0x60] sm:$0xff]
    %v3571 = vld [vmem:[%s260 + $0x68] sm:$0xff]
    %v3572 = vld [vmem:[%s260 + $0x70] sm:$0xff]
    %v3573 = vld [vmem:[%s260 + $0x78] sm:$0xff]
    %v3574 = vld [vmem:[%s260 + $0x80] sm:$0xff]
    %v3575 = vld [vmem:[%s260 + $0x88] sm:$0xff]
    %v3576 = vld [vmem:[%s260 + $0x90] sm:$0xff]
    %v3577 = vld [vmem:[%s260 + $0x98] sm:$0xff]
    %v3578 = vld [vmem:[%s260 + $0xa0] sm:$0xff]
    %v3579 = vld [vmem:[%s260 + $0xa8] sm:$0xff]
    %v3580 = vld [vmem:[%s260 + $0xb0] sm:$0xff]
    %v3581 = vld [vmem:[%s260 + $0xb8] sm:$0xff]
    %v3582 = vld [vmem:[%s260 + $0xc0] sm:$0xff]
    %v3583 = vld [vmem:[%s260 + $0xc8] sm:$0xff]
    %v3584 = vld [vmem:[%s260 + $0xd0] sm:$0xff]
    %v3585 = vld [vmem:[%s260 + $0xd8] sm:$0xff]
    %v3586 = vld [vmem:[%s260 + $0xe0] sm:$0xff]
    %v3587 = vld [vmem:[%s260 + $0xe8] sm:$0xff]
    %v3588 = vld [vmem:[%s260 + $0xf0] sm:$0xff]
    %v3589 = vld [vmem:[%s260 + $0xf8] sm:$0xff]
    %v3590 = vunpack.c.l.s8.bf16 %v3558
    %v3591 = vunpack.c.l.s8.bf16 %v3559
    %v3592 = vunpack.c.l.s8.bf16 %v3560
    %v3593 = vunpack.c.l.s8.bf16 %v3561
    %v3594 = vunpack.c.h.s8.bf16 %v3558
    %v3595 = vunpack.c.h.s8.bf16 %v3559
    %v3596 = vunpack.c.h.s8.bf16 %v3560
    %v3597 = vunpack.c.h.s8.bf16 %v3561
    %v3598 = vunpack.c.l.s8.bf16 %v3562
    %v3599 = vunpack.c.l.s8.bf16 %v3563
    %v3600 = vunpack.c.l.s8.bf16 %v3564
    %v3601 = vunpack.c.l.s8.bf16 %v3565
    %v3602 = vunpack.c.h.s8.bf16 %v3562
    %v3603 = vunpack.c.h.s8.bf16 %v3563
    %v3604 = vunpack.c.h.s8.bf16 %v3564
    %v3605 = vunpack.c.h.s8.bf16 %v3565
    %v3606 = vunpack.c.l.s8.bf16 %v3566
    %v3607 = vunpack.c.l.s8.bf16 %v3567
    %v3608 = vunpack.c.l.s8.bf16 %v3568
    %v3609 = vunpack.c.l.s8.bf16 %v3569
    %v3610 = vunpack.c.h.s8.bf16 %v3566
    %v3611 = vunpack.c.h.s8.bf16 %v3567
    %v3612 = vunpack.c.h.s8.bf16 %v3568
    %v3613 = vunpack.c.h.s8.bf16 %v3569
    %v3614 = vunpack.c.l.s8.bf16 %v3570
    %v3615 = vunpack.c.l.s8.bf16 %v3571
    %v3616 = vunpack.c.l.s8.bf16 %v3572
    %v3617 = vunpack.c.l.s8.bf16 %v3573
    %v3618 = vunpack.c.h.s8.bf16 %v3570
    %v3619 = vunpack.c.h.s8.bf16 %v3571
    %v3620 = vunpack.c.h.s8.bf16 %v3572
    %v3621 = vunpack.c.h.s8.bf16 %v3573
    %v3622 = vunpack.c.l.s8.bf16 %v3574
    %v3623 = vunpack.c.l.s8.bf16 %v3575
    %v3624 = vunpack.c.l.s8.bf16 %v3576
    %v3625 = vunpack.c.l.s8.bf16 %v3577
    %v3626 = vunpack.c.h.s8.bf16 %v3574
    %v3627 = vunpack.c.h.s8.bf16 %v3575
    %v3628 = vunpack.c.h.s8.bf16 %v3576
    %v3629 = vunpack.c.h.s8.bf16 %v3577
    %v3630 = vunpack.c.l.s8.bf16 %v3578
    %v3631 = vunpack.c.l.s8.bf16 %v3579
    %v3632 = vunpack.c.l.s8.bf16 %v3580
    %v3633 = vunpack.c.l.s8.bf16 %v3581
    %v3634 = vunpack.c.h.s8.bf16 %v3578
    %v3635 = vunpack.c.h.s8.bf16 %v3579
    %v3636 = vunpack.c.h.s8.bf16 %v3580
    %v3637 = vunpack.c.h.s8.bf16 %v3581
    %v3638 = vunpack.c.l.s8.bf16 %v3582
    %v3639 = vunpack.c.l.s8.bf16 %v3583
    %v3640 = vunpack.c.l.s8.bf16 %v3584
    %v3641 = vunpack.c.l.s8.bf16 %v3585
    %v3642 = vunpack.c.h.s8.bf16 %v3582
    %v3643 = vunpack.c.h.s8.bf16 %v3583
    %v3644 = vunpack.c.h.s8.bf16 %v3584
    %v3645 = vunpack.c.h.s8.bf16 %v3585
    %v3646 = vunpack.c.l.s8.bf16 %v3586
    %v3647 = vunpack.c.l.s8.bf16 %v3587
    %v3648 = vunpack.c.l.s8.bf16 %v3588
    %v3649 = vunpack.c.l.s8.bf16 %v3589
    %v3650 = vunpack.c.h.s8.bf16 %v3586
    %v3651 = vunpack.c.h.s8.bf16 %v3587
    %v3652 = vunpack.c.h.s8.bf16 %v3588
    %v3653 = vunpack.c.h.s8.bf16 %v3589
    %v3654 = vrot.slane %v3458, 1
    %v3655 = vsel %vm2013, %v3460, %v3654
    %v3656 = vrot.slane %v3459, 1
    %v3657 = vsel %vm2013, %v3461, %v3656
    %v3658 = vpack.c.b16 %v3655, %v3655
    %v3659 = vpack.c.b16 %v3657, %v3657
    %3662 = vmatprep.subr.bf16.mxu0 %v3619
    %3663 = vmatpush1.bf16.msra.mxu0 %v3618
    %3664 = vmatprep.subr.bf16.mxu0 %v3615
    %3665 = vmatpush1.bf16.msra.mxu0 %v3614
    %3666 = vmatprep.subr.bf16.mxu0 %v3611
    %3667 = vmatpush1.bf16.msra.mxu0 %v3610
    %3668 = vmatprep.subr.bf16.mxu0 %v3607
    %3669 = vmatpush1.bf16.msra.mxu0 %v3606
    %3670 = vmatprep.subr.bf16.mxu0 %v3603
    %3671 = vmatpush1.bf16.msra.mxu0 %v3602
    %3672 = vmatprep.subr.bf16.mxu0 %v3599
    %3673 = vmatpush1.bf16.msra.mxu0 %v3598
    %3674 = vmatprep.subr.bf16.mxu0 %v3595
    %3675 = vmatpush1.bf16.msra.mxu0 %v3594
    %3676 = vmatprep.subr.bf16.mxu0 %v3591
    %3677 = vmatpush1.bf16.msra.mxu0 %v3590
    %3678 = vmatprep.subr.bf16.mxu0 %v3651
    %3679 = vmatpush2.bf16.msra.mxu0 %v3650
    %3680 = vmatprep.subr.bf16.mxu0 %v3647
    %3681 = vmatpush2.bf16.msra.mxu0 %v3646
    %3682 = vmatprep.subr.bf16.mxu0 %v3643
    %3683 = vmatpush2.bf16.msra.mxu0 %v3642
    %3684 = vmatprep.subr.bf16.mxu0 %v3639
    %3685 = vmatpush2.bf16.msra.mxu0 %v3638
    %3686 = vmatprep.subr.bf16.mxu0 %v3635
    %3687 = vmatpush2.bf16.msra.mxu0 %v3634
    %3688 = vmatprep.subr.bf16.mxu0 %v3631
    %3689 = vmatpush2.bf16.msra.mxu0 %v3630
    %3690 = vmatprep.subr.bf16.mxu0 %v3627
    %3691 = vmatpush2.bf16.msra.mxu0 %v3626
    %3692 = vmatprep.subr.bf16.mxu0 %v3623
    %3693 = vmatpush2.bf16.msra.mxu0 %v3622
    %3694 = vmatprep.mubr.bf16.mxu0 %v3659
    %3695 = vmatmul.mubr.bf16.gmra.mxu0 %v3658
    %v3696 = vpop.f32.mrf.mxu0
    %v3697 = vadd.f32 0.0, %v3696
    %v3698 = vpop.f32.mrf.mxu0
    %v3699 = vadd.f32 0.0, %v3698
    %v3700 = vpop.f32.mrf.mxu0
    %v3701 = vpop.f32.mrf.mxu0
    %3702 = vdwg.mxu0
    %3703 = vmatprep.subr.bf16.mxu0 %v3621
    %3704 = vmatpush1.bf16.msra.mxu0 %v3620
    %3705 = vmatprep.subr.bf16.mxu0 %v3617
    %3706 = vmatpush1.bf16.msra.mxu0 %v3616
    %3707 = vmatprep.subr.bf16.mxu0 %v3613
    %3708 = vmatpush1.bf16.msra.mxu0 %v3612
    %3709 = vmatprep.subr.bf16.mxu0 %v3609
    %3710 = vmatpush1.bf16.msra.mxu0 %v3608
    %3711 = vmatprep.subr.bf16.mxu0 %v3605
    %3712 = vmatpush1.bf16.msra.mxu0 %v3604
    %3713 = vmatprep.subr.bf16.mxu0 %v3601
    %3714 = vmatpush1.bf16.msra.mxu0 %v3600
    %3715 = vmatprep.subr.bf16.mxu0 %v3597
    %3716 = vmatpush1.bf16.msra.mxu0 %v3596
    %3717 = vmatprep.subr.bf16.mxu0 %v3593
    %3718 = vmatpush1.bf16.msra.mxu0 %v3592
    %3719 = vmatprep.subr.bf16.mxu0 %v3653
    %3720 = vmatpush2.bf16.msra.mxu0 %v3652
    %3721 = vmatprep.subr.bf16.mxu0 %v3649
    %3722 = vmatpush2.bf16.msra.mxu0 %v3648
    %3723 = vmatprep.subr.bf16.mxu0 %v3645
    %3724 = vmatpush2.bf16.msra.mxu0 %v3644
    %3725 = vmatprep.subr.bf16.mxu0 %v3641
    %3726 = vmatpush2.bf16.msra.mxu0 %v3640
    %3727 = vmatprep.subr.bf16.mxu0 %v3637
    %3728 = vmatpush2.bf16.msra.mxu0 %v3636
    %3729 = vmatprep.subr.bf16.mxu0 %v3633
    %3730 = vmatpush2.bf16.msra.mxu0 %v3632
    %3731 = vmatprep.subr.bf16.mxu0 %v3629
    %3732 = vmatpush2.bf16.msra.mxu0 %v3628
    %3733 = vmatprep.subr.bf16.mxu0 %v3625
    %3734 = vmatpush2.bf16.msra.mxu0 %v3624
    %3735 = vmatprep.mubr.bf16.mxu0 %v3659
    %3736 = vmatmul.mubr.bf16.gmra.mxu0 %v3658
    %v3737 = vpop.f32.mrf.mxu0
    %v3738 = vadd.f32 0.0, %v3737
    %v3739 = vpop.f32.mrf.mxu0
    %v3740 = vadd.f32 0.0, %v3739
    %v3741 = vpop.f32.mrf.mxu0
    %v3742 = vpop.f32.mrf.mxu0
    %3743 = vdwg.mxu0
    %v3744 = vadd.f32 %v3552, %v3697
    %v3745 = vadd.f32 %v3553, %v3699
    %v3746 = vadd.f32 %v3554, %v3738
    %v3747 = vadd.f32 %v3555, %v3740
    %s3748 = scalar_lea.vmem [#allocation2], 2560
    %v3749 = vld [vmem:[%s3748] sm:$0xff]
    %v3750 = vld [vmem:[%s3748 + $0x8] sm:$0xff]
    %v3751 = vld [vmem:[%s3748 + $0x10] sm:$0xff]
    %v3752 = vld [vmem:[%s3748 + $0x18] sm:$0xff]
    %v3753 = vld [vmem:[%s3748 + $0x20] sm:$0xff]
    %v3754 = vld [vmem:[%s3748 + $0x28] sm:$0xff]
    %v3755 = vld [vmem:[%s3748 + $0x30] sm:$0xff]
    %v3756 = vld [vmem:[%s3748 + $0x38] sm:$0xff]
    %v3757 = vld [vmem:[%s3748 + $0x40] sm:$0xff]
    %v3758 = vld [vmem:[%s3748 + $0x48] sm:$0xff]
    %v3759 = vld [vmem:[%s3748 + $0x50] sm:$0xff]
    %v3760 = vld [vmem:[%s3748 + $0x58] sm:$0xff]
    %v3761 = vld [vmem:[%s3748 + $0x60] sm:$0xff]
    %v3762 = vld [vmem:[%s3748 + $0x68] sm:$0xff]
    %v3763 = vld [vmem:[%s3748 + $0x70] sm:$0xff]
    %v3764 = vld [vmem:[%s3748 + $0x78] sm:$0xff]
    %v3765 = vld [vmem:[%s3748 + $0x80] sm:$0xff]
    %v3766 = vld [vmem:[%s3748 + $0x88] sm:$0xff]
    %v3767 = vld [vmem:[%s3748 + $0x90] sm:$0xff]
    %v3768 = vld [vmem:[%s3748 + $0x98] sm:$0xff]
    %v3769 = vld [vmem:[%s3748 + $0xa0] sm:$0xff]
    %v3770 = vld [vmem:[%s3748 + $0xa8] sm:$0xff]
    %v3771 = vld [vmem:[%s3748 + $0xb0] sm:$0xff]
    %v3772 = vld [vmem:[%s3748 + $0xb8] sm:$0xff]
    %v3773 = vld [vmem:[%s3748 + $0xc0] sm:$0xff]
    %v3774 = vld [vmem:[%s3748 + $0xc8] sm:$0xff]
    %v3775 = vld [vmem:[%s3748 + $0xd0] sm:$0xff]
    %v3776 = vld [vmem:[%s3748 + $0xd8] sm:$0xff]
    %v3777 = vld [vmem:[%s3748 + $0xe0] sm:$0xff]
    %v3778 = vld [vmem:[%s3748 + $0xe8] sm:$0xff]
    %v3779 = vld [vmem:[%s3748 + $0xf0] sm:$0xff]
    %v3780 = vld [vmem:[%s3748 + $0xf8] sm:$0xff]
    %v3781 = vunpack.c.l.s8.bf16 %v3749
    %v3782 = vunpack.c.l.s8.bf16 %v3750
    %v3783 = vunpack.c.l.s8.bf16 %v3751
    %v3784 = vunpack.c.l.s8.bf16 %v3752
    %v3785 = vunpack.c.h.s8.bf16 %v3749
    %v3786 = vunpack.c.h.s8.bf16 %v3750
    %v3787 = vunpack.c.h.s8.bf16 %v3751
    %v3788 = vunpack.c.h.s8.bf16 %v3752
    %v3789 = vunpack.c.l.s8.bf16 %v3753
    %v3790 = vunpack.c.l.s8.bf16 %v3754
    %v3791 = vunpack.c.l.s8.bf16 %v3755
    %v3792 = vunpack.c.l.s8.bf16 %v3756
    %v3793 = vunpack.c.h.s8.bf16 %v3753
    %v3794 = vunpack.c.h.s8.bf16 %v3754
    %v3795 = vunpack.c.h.s8.bf16 %v3755
    %v3796 = vunpack.c.h.s8.bf16 %v3756
    %v3797 = vunpack.c.l.s8.bf16 %v3757
    %v3798 = vunpack.c.l.s8.bf16 %v3758
    %v3799 = vunpack.c.l.s8.bf16 %v3759
    %v3800 = vunpack.c.l.s8.bf16 %v3760
    %v3801 = vunpack.c.h.s8.bf16 %v3757
    %v3802 = vunpack.c.h.s8.bf16 %v3758
    %v3803 = vunpack.c.h.s8.bf16 %v3759
    %v3804 = vunpack.c.h.s8.bf16 %v3760
    %v3805 = vunpack.c.l.s8.bf16 %v3761
    %v3806 = vunpack.c.l.s8.bf16 %v3762
    %v3807 = vunpack.c.l.s8.bf16 %v3763
    %v3808 = vunpack.c.l.s8.bf16 %v3764
    %v3809 = vunpack.c.h.s8.bf16 %v3761
    %v3810 = vunpack.c.h.s8.bf16 %v3762
    %v3811 = vunpack.c.h.s8.bf16 %v3763
    %v3812 = vunpack.c.h.s8.bf16 %v3764
    %v3813 = vunpack.c.l.s8.bf16 %v3765
    %v3814 = vunpack.c.l.s8.bf16 %v3766
    %v3815 = vunpack.c.l.s8.bf16 %v3767
    %v3816 = vunpack.c.l.s8.bf16 %v3768
    %v3817 = vunpack.c.h.s8.bf16 %v3765
    %v3818 = vunpack.c.h.s8.bf16 %v3766
    %v3819 = vunpack.c.h.s8.bf16 %v3767
    %v3820 = vunpack.c.h.s8.bf16 %v3768
    %v3821 = vunpack.c.l.s8.bf16 %v3769
    %v3822 = vunpack.c.l.s8.bf16 %v3770
    %v3823 = vunpack.c.l.s8.bf16 %v3771
    %v3824 = vunpack.c.l.s8.bf16 %v3772
    %v3825 = vunpack.c.h.s8.bf16 %v3769
    %v3826 = vunpack.c.h.s8.bf16 %v3770
    %v3827 = vunpack.c.h.s8.bf16 %v3771
    %v3828 = vunpack.c.h.s8.bf16 %v3772
    %v3829 = vunpack.c.l.s8.bf16 %v3773
    %v3830 = vunpack.c.l.s8.bf16 %v3774
    %v3831 = vunpack.c.l.s8.bf16 %v3775
    %v3832 = vunpack.c.l.s8.bf16 %v3776
    %v3833 = vunpack.c.h.s8.bf16 %v3773
    %v3834 = vunpack.c.h.s8.bf16 %v3774
    %v3835 = vunpack.c.h.s8.bf16 %v3775
    %v3836 = vunpack.c.h.s8.bf16 %v3776
    %v3837 = vunpack.c.l.s8.bf16 %v3777
    %v3838 = vunpack.c.l.s8.bf16 %v3778
    %v3839 = vunpack.c.l.s8.bf16 %v3779
    %v3840 = vunpack.c.l.s8.bf16 %v3780
    %v3841 = vunpack.c.h.s8.bf16 %v3777
    %v3842 = vunpack.c.h.s8.bf16 %v3778
    %v3843 = vunpack.c.h.s8.bf16 %v3779
    %v3844 = vunpack.c.h.s8.bf16 %v3780
    %v3845 = vrot.slane %v3458, 2
    %v3846 = vrot.slane %v3460, 1
    %v3847 = vsel %vm2013, %v3846, %v3845
    %v3848 = vrot.slane %v3459, 2
    %v3849 = vrot.slane %v3461, 1
    %v3850 = vsel %vm2013, %v3849, %v3848
    %v3851 = vpack.c.b16 %v3847, %v3847
    %v3852 = vpack.c.b16 %v3850, %v3850
    %3855 = vmatprep.subr.bf16.mxu0 %v3810
    %3856 = vmatpush1.bf16.msra.mxu0 %v3809
    %3857 = vmatprep.subr.bf16.mxu0 %v3806
    %3858 = vmatpush1.bf16.msra.mxu0 %v3805
    %3859 = vmatprep.subr.bf16.mxu0 %v3802
    %3860 = vmatpush1.bf16.msra.mxu0 %v3801
    %3861 = vmatprep.subr.bf16.mxu0 %v3798
    %3862 = vmatpush1.bf16.msra.mxu0 %v3797
    %3863 = vmatprep.subr.bf16.mxu0 %v3794
    %3864 = vmatpush1.bf16.msra.mxu0 %v3793
    %3865 = vmatprep.subr.bf16.mxu0 %v3790
    %3866 = vmatpush1.bf16.msra.mxu0 %v3789
    %3867 = vmatprep.subr.bf16.mxu0 %v3786
    %3868 = vmatpush1.bf16.msra.mxu0 %v3785
    %3869 = vmatprep.subr.bf16.mxu0 %v3782
    %3870 = vmatpush1.bf16.msra.mxu0 %v3781
    %3871 = vmatprep.subr.bf16.mxu0 %v3842
    %3872 = vmatpush2.bf16.msra.mxu0 %v3841
    %3873 = vmatprep.subr.bf16.mxu0 %v3838
    %3874 = vmatpush2.bf16.msra.mxu0 %v3837
    %3875 = vmatprep.subr.bf16.mxu0 %v3834
    %3876 = vmatpush2.bf16.msra.mxu0 %v3833
    %3877 = vmatprep.subr.bf16.mxu0 %v3830
    %3878 = vmatpush2.bf16.msra.mxu0 %v3829
    %3879 = vmatprep.subr.bf16.mxu0 %v3826
    %3880 = vmatpush2.bf16.msra.mxu0 %v3825
    %3881 = vmatprep.subr.bf16.mxu0 %v3822
    %3882 = vmatpush2.bf16.msra.mxu0 %v3821
    %3883 = vmatprep.subr.bf16.mxu0 %v3818
    %3884 = vmatpush2.bf16.msra.mxu0 %v3817
    %3885 = vmatprep.subr.bf16.mxu0 %v3814
    %3886 = vmatpush2.bf16.msra.mxu0 %v3813
    %3887 = vmatprep.mubr.bf16.mxu0 %v3852
    %3888 = vmatmul.mubr.bf16.gmra.mxu0 %v3851
    %v3889 = vpop.f32.mrf.mxu0
    %v3890 = vadd.f32 0.0, %v3889
    %v3891 = vpop.f32.mrf.mxu0
    %v3892 = vadd.f32 0.0, %v3891
    %v3893 = vpop.f32.mrf.mxu0
    %v3894 = vpop.f32.mrf.mxu0
    %3895 = vdwg.mxu0
    %3896 = vmatprep.subr.bf16.mxu0 %v3812
    %3897 = vmatpush1.bf16.msra.mxu0 %v3811
    %3898 = vmatprep.subr.bf16.mxu0 %v3808
    %3899 = vmatpush1.bf16.msra.mxu0 %v3807
    %3900 = vmatprep.subr.bf16.mxu0 %v3804
    %3901 = vmatpush1.bf16.msra.mxu0 %v3803
    %3902 = vmatprep.subr.bf16.mxu0 %v3800
    %3903 = vmatpush1.bf16.msra.mxu0 %v3799
    %3904 = vmatprep.subr.bf16.mxu0 %v3796
    %3905 = vmatpush1.bf16.msra.mxu0 %v3795
    %3906 = vmatprep.subr.bf16.mxu0 %v3792
    %3907 = vmatpush1.bf16.msra.mxu0 %v3791
    %3908 = vmatprep.subr.bf16.mxu0 %v3788
    %3909 = vmatpush1.bf16.msra.mxu0 %v3787
    %3910 = vmatprep.subr.bf16.mxu0 %v3784
    %3911 = vmatpush1.bf16.msra.mxu0 %v3783
    %3912 = vmatprep.subr.bf16.mxu0 %v3844
    %3913 = vmatpush2.bf16.msra.mxu0 %v3843
    %3914 = vmatprep.subr.bf16.mxu0 %v3840
    %3915 = vmatpush2.bf16.msra.mxu0 %v3839
    %3916 = vmatprep.subr.bf16.mxu0 %v3836
    %3917 = vmatpush2.bf16.msra.mxu0 %v3835
    %3918 = vmatprep.subr.bf16.mxu0 %v3832
    %3919 = vmatpush2.bf16.msra.mxu0 %v3831
    %3920 = vmatprep.subr.bf16.mxu0 %v3828
    %3921 = vmatpush2.bf16.msra.mxu0 %v3827
    %3922 = vmatprep.subr.bf16.mxu0 %v3824
    %3923 = vmatpush2.bf16.msra.mxu0 %v3823
    %3924 = vmatprep.subr.bf16.mxu0 %v3820
    %3925 = vmatpush2.bf16.msra.mxu0 %v3819
    %3926 = vmatprep.subr.bf16.mxu0 %v3816
    %3927 = vmatpush2.bf16.msra.mxu0 %v3815
    %3928 = vmatprep.mubr.bf16.mxu0 %v3852
    %3929 = vmatmul.mubr.bf16.gmra.mxu0 %v3851
    %v3930 = vpop.f32.mrf.mxu0
    %v3931 = vadd.f32 0.0, %v3930
    %v3932 = vpop.f32.mrf.mxu0
    %v3933 = vadd.f32 0.0, %v3932
    %v3934 = vpop.f32.mrf.mxu0
    %v3935 = vpop.f32.mrf.mxu0
    %3936 = vdwg.mxu0
    %v3937 = vadd.f32 %v3744, %v3890
    %v3938 = vadd.f32 %v3745, %v3892
    %v3939 = vadd.f32 %v3746, %v3931
    %v3940 = vadd.f32 %v3747, %v3933
    %s3941 = scalar_lea.vmem [#allocation2], 2816
    %v3942 = vld [vmem:[%s3941] sm:$0xff]
    %v3943 = vld [vmem:[%s3941 + $0x8] sm:$0xff]
    %v3944 = vld [vmem:[%s3941 + $0x10] sm:$0xff]
    %v3945 = vld [vmem:[%s3941 + $0x18] sm:$0xff]
    %v3946 = vld [vmem:[%s3941 + $0x20] sm:$0xff]
    %v3947 = vld [vmem:[%s3941 + $0x28] sm:$0xff]
    %v3948 = vld [vmem:[%s3941 + $0x30] sm:$0xff]
    %v3949 = vld [vmem:[%s3941 + $0x38] sm:$0xff]
    %v3950 = vld [vmem:[%s3941 + $0x40] sm:$0xff]
    %v3951 = vld [vmem:[%s3941 + $0x48] sm:$0xff]
    %v3952 = vld [vmem:[%s3941 + $0x50] sm:$0xff]
    %v3953 = vld [vmem:[%s3941 + $0x58] sm:$0xff]
    %v3954 = vld [vmem:[%s3941 + $0x60] sm:$0xff]
    %v3955 = vld [vmem:[%s3941 + $0x68] sm:$0xff]
    %v3956 = vld [vmem:[%s3941 + $0x70] sm:$0xff]
    %v3957 = vld [vmem:[%s3941 + $0x78] sm:$0xff]
    %v3958 = vld [vmem:[%s3941 + $0x80] sm:$0xff]
    %v3959 = vld [vmem:[%s3941 + $0x88] sm:$0xff]
    %v3960 = vld [vmem:[%s3941 + $0x90] sm:$0xff]
    %v3961 = vld [vmem:[%s3941 + $0x98] sm:$0xff]
    %v3962 = vld [vmem:[%s3941 + $0xa0] sm:$0xff]
    %v3963 = vld [vmem:[%s3941 + $0xa8] sm:$0xff]
    %v3964 = vld [vmem:[%s3941 + $0xb0] sm:$0xff]
    %v3965 = vld [vmem:[%s3941 + $0xb8] sm:$0xff]
    %v3966 = vld [vmem:[%s3941 + $0xc0] sm:$0xff]
    %v3967 = vld [vmem:[%s3941 + $0xc8] sm:$0xff]
    %v3968 = vld [vmem:[%s3941 + $0xd0] sm:$0xff]
    %v3969 = vld [vmem:[%s3941 + $0xd8] sm:$0xff]
    %v3970 = vld [vmem:[%s3941 + $0xe0] sm:$0xff]
    %v3971 = vld [vmem:[%s3941 + $0xe8] sm:$0xff]
    %v3972 = vld [vmem:[%s3941 + $0xf0] sm:$0xff]
    %v3973 = vld [vmem:[%s3941 + $0xf8] sm:$0xff]
    %v3974 = vunpack.c.l.s8.bf16 %v3942
    %v3975 = vunpack.c.l.s8.bf16 %v3943
    %v3976 = vunpack.c.l.s8.bf16 %v3944
    %v3977 = vunpack.c.l.s8.bf16 %v3945
    %v3978 = vunpack.c.h.s8.bf16 %v3942
    %v3979 = vunpack.c.h.s8.bf16 %v3943
    %v3980 = vunpack.c.h.s8.bf16 %v3944
    %v3981 = vunpack.c.h.s8.bf16 %v3945
    %v3982 = vunpack.c.l.s8.bf16 %v3946
    %v3983 = vunpack.c.l.s8.bf16 %v3947
    %v3984 = vunpack.c.l.s8.bf16 %v3948
    %v3985 = vunpack.c.l.s8.bf16 %v3949
    %v3986 = vunpack.c.h.s8.bf16 %v3946
    %v3987 = vunpack.c.h.s8.bf16 %v3947
    %v3988 = vunpack.c.h.s8.bf16 %v3948
    %v3989 = vunpack.c.h.s8.bf16 %v3949
    %v3990 = vunpack.c.l.s8.bf16 %v3950
    %v3991 = vunpack.c.l.s8.bf16 %v3951
    %v3992 = vunpack.c.l.s8.bf16 %v3952
    %v3993 = vunpack.c.l.s8.bf16 %v3953
    %v3994 = vunpack.c.h.s8.bf16 %v3950
    %v3995 = vunpack.c.h.s8.bf16 %v3951
    %v3996 = vunpack.c.h.s8.bf16 %v3952
    %v3997 = vunpack.c.h.s8.bf16 %v3953
    %v3998 = vunpack.c.l.s8.bf16 %v3954
    %v3999 = vunpack.c.l.s8.bf16 %v3955
    %v4000 = vunpack.c.l.s8.bf16 %v3956
    %v4001 = vunpack.c.l.s8.bf16 %v3957
    %v4002 = vunpack.c.h.s8.bf16 %v3954
    %v4003 = vunpack.c.h.s8.bf16 %v3955
    %v4004 = vunpack.c.h.s8.bf16 %v3956
    %v4005 = vunpack.c.h.s8.bf16 %v3957
    %v4006 = vunpack.c.l.s8.bf16 %v3958
    %v4007 = vunpack.c.l.s8.bf16 %v3959
    %v4008 = vunpack.c.l.s8.bf16 %v3960
    %v4009 = vunpack.c.l.s8.bf16 %v3961
    %v4010 = vunpack.c.h.s8.bf16 %v3958
    %v4011 = vunpack.c.h.s8.bf16 %v3959
    %v4012 = vunpack.c.h.s8.bf16 %v3960
    %v4013 = vunpack.c.h.s8.bf16 %v3961
    %v4014 = vunpack.c.l.s8.bf16 %v3962
    %v4015 = vunpack.c.l.s8.bf16 %v3963
    %v4016 = vunpack.c.l.s8.bf16 %v3964
    %v4017 = vunpack.c.l.s8.bf16 %v3965
    %v4018 = vunpack.c.h.s8.bf16 %v3962
    %v4019 = vunpack.c.h.s8.bf16 %v3963
    %v4020 = vunpack.c.h.s8.bf16 %v3964
    %v4021 = vunpack.c.h.s8.bf16 %v3965
    %v4022 = vunpack.c.l.s8.bf16 %v3966
    %v4023 = vunpack.c.l.s8.bf16 %v3967
    %v4024 = vunpack.c.l.s8.bf16 %v3968
    %v4025 = vunpack.c.l.s8.bf16 %v3969
    %v4026 = vunpack.c.h.s8.bf16 %v3966
    %v4027 = vunpack.c.h.s8.bf16 %v3967
    %v4028 = vunpack.c.h.s8.bf16 %v3968
    %v4029 = vunpack.c.h.s8.bf16 %v3969
    %v4030 = vunpack.c.l.s8.bf16 %v3970
    %v4031 = vunpack.c.l.s8.bf16 %v3971
    %v4032 = vunpack.c.l.s8.bf16 %v3972
    %v4033 = vunpack.c.l.s8.bf16 %v3973
    %v4034 = vunpack.c.h.s8.bf16 %v3970
    %v4035 = vunpack.c.h.s8.bf16 %v3971
    %v4036 = vunpack.c.h.s8.bf16 %v3972
    %v4037 = vunpack.c.h.s8.bf16 %v3973
    %v4038 = vrot.slane %v3458, 3
    %v4039 = vrot.slane %v3460, 2
    %v4040 = vsel %vm2013, %v4039, %v4038
    %v4041 = vrot.slane %v3459, 3
    %v4042 = vrot.slane %v3461, 2
    %v4043 = vsel %vm2013, %v4042, %v4041
    %v4044 = vpack.c.b16 %v4040, %v4040
    %v4045 = vpack.c.b16 %v4043, %v4043
    %4048 = vmatprep.subr.bf16.mxu0 %v4003
    %4049 = vmatpush1.bf16.msra.mxu0 %v4002
    %4050 = vmatprep.subr.bf16.mxu0 %v3999
    %4051 = vmatpush1.bf16.msra.mxu0 %v3998
    %4052 = vmatprep.subr.bf16.mxu0 %v3995
    %4053 = vmatpush1.bf16.msra.mxu0 %v3994
    %4054 = vmatprep.subr.bf16.mxu0 %v3991
    %4055 = vmatpush1.bf16.msra.mxu0 %v3990
    %4056 = vmatprep.subr.bf16.mxu0 %v3987
    %4057 = vmatpush1.bf16.msra.mxu0 %v3986
    %4058 = vmatprep.subr.bf16.mxu0 %v3983
    %4059 = vmatpush1.bf16.msra.mxu0 %v3982
    %4060 = vmatprep.subr.bf16.mxu0 %v3979
    %4061 = vmatpush1.bf16.msra.mxu0 %v3978
    %4062 = vmatprep.subr.bf16.mxu0 %v3975
    %4063 = vmatpush1.bf16.msra.mxu0 %v3974
    %4064 = vmatprep.subr.bf16.mxu0 %v4035
    %4065 = vmatpush2.bf16.msra.mxu0 %v4034
    %4066 = vmatprep.subr.bf16.mxu0 %v4031
    %4067 = vmatpush2.bf16.msra.mxu0 %v4030
    %4068 = vmatprep.subr.bf16.mxu0 %v4027
    %4069 = vmatpush2.bf16.msra.mxu0 %v4026
    %4070 = vmatprep.subr.bf16.mxu0 %v4023
    %4071 = vmatpush2.bf16.msra.mxu0 %v4022
    %4072 = vmatprep.subr.bf16.mxu0 %v4019
    %4073 = vmatpush2.bf16.msra.mxu0 %v4018
    %4074 = vmatprep.subr.bf16.mxu0 %v4015
    %4075 = vmatpush2.bf16.msra.mxu0 %v4014
    %4076 = vmatprep.subr.bf16.mxu0 %v4011
    %4077 = vmatpush2.bf16.msra.mxu0 %v4010
    %4078 = vmatprep.subr.bf16.mxu0 %v4007
    %4079 = vmatpush2.bf16.msra.mxu0 %v4006
    %4080 = vmatprep.mubr.bf16.mxu0 %v4045
    %4081 = vmatmul.mubr.bf16.gmra.mxu0 %v4044
    %v4082 = vpop.f32.mrf.mxu0
    %v4083 = vadd.f32 0.0, %v4082
    %v4084 = vpop.f32.mrf.mxu0
    %v4085 = vadd.f32 0.0, %v4084
    %v4086 = vpop.f32.mrf.mxu0
    %v4087 = vpop.f32.mrf.mxu0
    %4088 = vdwg.mxu0
    %4089 = vmatprep.subr.bf16.mxu0 %v4005
    %4090 = vmatpush1.bf16.msra.mxu0 %v4004
    %4091 = vmatprep.subr.bf16.mxu0 %v4001
    %4092 = vmatpush1.bf16.msra.mxu0 %v4000
    %4093 = vmatprep.subr.bf16.mxu0 %v3997
    %4094 = vmatpush1.bf16.msra.mxu0 %v3996
    %4095 = vmatprep.subr.bf16.mxu0 %v3993
    %4096 = vmatpush1.bf16.msra.mxu0 %v3992
    %4097 = vmatprep.subr.bf16.mxu0 %v3989
    %4098 = vmatpush1.bf16.msra.mxu0 %v3988
    %4099 = vmatprep.subr.bf16.mxu0 %v3985
    %4100 = vmatpush1.bf16.msra.mxu0 %v3984
    %4101 = vmatprep.subr.bf16.mxu0 %v3981
    %4102 = vmatpush1.bf16.msra.mxu0 %v3980
    %4103 = vmatprep.subr.bf16.mxu0 %v3977
    %4104 = vmatpush1.bf16.msra.mxu0 %v3976
    %4105 = vmatprep.subr.bf16.mxu0 %v4037
    %4106 = vmatpush2.bf16.msra.mxu0 %v4036
    %4107 = vmatprep.subr.bf16.mxu0 %v4033
    %4108 = vmatpush2.bf16.msra.mxu0 %v4032
    %4109 = vmatprep.subr.bf16.mxu0 %v4029
    %4110 = vmatpush2.bf16.msra.mxu0 %v4028
    %4111 = vmatprep.subr.bf16.mxu0 %v4025
    %4112 = vmatpush2.bf16.msra.mxu0 %v4024
    %4113 = vmatprep.subr.bf16.mxu0 %v4021
    %4114 = vmatpush2.bf16.msra.mxu0 %v4020
    %4115 = vmatprep.subr.bf16.mxu0 %v4017
    %4116 = vmatpush2.bf16.msra.mxu0 %v4016
    %4117 = vmatprep.subr.bf16.mxu0 %v4013
    %4118 = vmatpush2.bf16.msra.mxu0 %v4012
    %4119 = vmatprep.subr.bf16.mxu0 %v4009
    %4120 = vmatpush2.bf16.msra.mxu0 %v4008
    %4121 = vmatprep.mubr.bf16.mxu0 %v4045
    %4122 = vmatmul.mubr.bf16.gmra.mxu0 %v4044
    %v4123 = vpop.f32.mrf.mxu0
    %v4124 = vadd.f32 0.0, %v4123
    %v4125 = vpop.f32.mrf.mxu0
    %v4126 = vadd.f32 0.0, %v4125
    %v4127 = vpop.f32.mrf.mxu0
    %v4128 = vpop.f32.mrf.mxu0
    %4129 = vdwg.mxu0
    %v4130 = vadd.f32 %v3937, %v4083
    %v4131 = vadd.f32 %v3938, %v4085
    %v4132 = vadd.f32 %v3939, %v4124
    %v4133 = vadd.f32 %v3940, %v4126
    %v4134 = vld [vmem:[#allocation19] sm:$0xf]
    %v4136 = vlaneseq
    %v4137 = vshrl.u32 %v4136, 7
    %v4138 = vsub.s32 0, %v4137
    %v4139 = vrot.slane %v4134, %v4138
    %v4140 = vlaneseq
    %v4141 = vshrl.u32 %v4140, 7
    %v4142 = vsub.s32 1, %v4141
    %v4143 = vrot.slane %v4134, %v4142
    %v4144 = vlaneseq
    %v4145 = vshrl.u32 %v4144, 7
    %v4146 = vsub.s32 2, %v4145
    %v4147 = vrot.slane %v4134, %v4146
    %v4148 = vlaneseq
    %v4149 = vshrl.u32 %v4148, 7
    %v4150 = vsub.s32 3, %v4149
    %v4151 = vrot.slane %v4134, %v4150
    %v4156 = vmul.f32 %v4130, %v4139
    %v4157 = vmul.f32 %v4131, %v4143
    %v4158 = vmul.f32 %v4132, %v4147
    %v4159 = vmul.f32 %v4133, %v4151
    %v4160 = vld [vmem:[#allocation20] sm:$0xf]
    %v4162 = vlaneseq
    %v4163 = vshrl.u32 %v4162, 7
    %v4164 = vsub.s32 0, %v4163
    %v4165 = vrot.slane %v4160, %v4164
    %v4166 = vlaneseq
    %v4167 = vshrl.u32 %v4166, 7
    %v4168 = vsub.s32 1, %v4167
    %v4169 = vrot.slane %v4160, %v4168
    %v4170 = vlaneseq
    %v4171 = vshrl.u32 %v4170, 7
    %v4172 = vsub.s32 2, %v4171
    %v4173 = vrot.slane %v4160, %v4172
    %v4174 = vlaneseq
    %v4175 = vshrl.u32 %v4174, 7
    %v4176 = vsub.s32 3, %v4175
    %v4177 = vrot.slane %v4160, %v4176
    %v4182 = vadd.f32 %v4156, %v4165
    %v4183 = vadd.f32 %v4157, %v4169
    %v4184 = vadd.f32 %v4158, %v4173
    %v4185 = vadd.f32 %v4159, %v4177
    %v4186 = vmax.f32 %v4182, 0.0
    %v4187 = vmax.f32 %v4183, 0.0
    %v4188 = vmax.f32 %v4184, 0.0
    %v4189 = vmax.f32 %v4185, 0.0
    %v4190 = vpack.c.bf16 %v4186, %v4186
    %v4191 = vpack.c.bf16 %v4187, %v4187
    %v4192 = vpack.c.bf16 %v4188, %v4188
    %v4193 = vpack.c.bf16 %v4189, %v4189
    %v4194 = vld [vmem:[#allocation22] sm:$0xf]
    %v4195 = vld [vmem:[#allocation22 + $0x4] sm:$0xf]
    %v4196 = vld [vmem:[#allocation22 + $0x8] sm:$0xf]
    %v4197 = vld [vmem:[#allocation22 + $0xc] sm:$0xf]
    %v4198 = vld [vmem:[#allocation22 + $0x10] sm:$0xf]
    %v4199 = vld [vmem:[#allocation22 + $0x14] sm:$0xf]
    %v4200 = vld [vmem:[#allocation22 + $0x18] sm:$0xf]
    %v4201 = vld [vmem:[#allocation22 + $0x1c] sm:$0xf]
    %v4202 = vld [vmem:[#allocation22 + $0x20] sm:$0xf]
    %v4203 = vld [vmem:[#allocation22 + $0x24] sm:$0xf]
    %v4204 = vld [vmem:[#allocation22 + $0x28] sm:$0xf]
    %v4205 = vld [vmem:[#allocation22 + $0x2c] sm:$0xf]
    %v4206 = vld [vmem:[#allocation22 + $0x30] sm:$0xf]
    %v4207 = vld [vmem:[#allocation22 + $0x34] sm:$0xf]
    %v4208 = vld [vmem:[#allocation22 + $0x38] sm:$0xf]
    %v4209 = vld [vmem:[#allocation22 + $0x3c] sm:$0xf]
    %v4210 = vld [vmem:[#allocation22 + $0x40] sm:$0xf]
    %v4211 = vld [vmem:[#allocation22 + $0x44] sm:$0xf]
    %v4212 = vld [vmem:[#allocation22 + $0x48] sm:$0xf]
    %v4213 = vld [vmem:[#allocation22 + $0x4c] sm:$0xf]
    %v4214 = vld [vmem:[#allocation22 + $0x50] sm:$0xf]
    %v4215 = vld [vmem:[#allocation22 + $0x54] sm:$0xf]
    %v4216 = vld [vmem:[#allocation22 + $0x58] sm:$0xf]
    %v4217 = vld [vmem:[#allocation22 + $0x5c] sm:$0xf]
    %v4218 = vld [vmem:[#allocation22 + $0x60] sm:$0xf]
    %v4219 = vld [vmem:[#allocation22 + $0x64] sm:$0xf]
    %v4220 = vld [vmem:[#allocation22 + $0x68] sm:$0xf]
    %v4221 = vld [vmem:[#allocation22 + $0x6c] sm:$0xf]
    %v4222 = vld [vmem:[#allocation22 + $0x70] sm:$0xf]
    %v4223 = vld [vmem:[#allocation22 + $0x74] sm:$0xf]
    %v4224 = vld [vmem:[#allocation22 + $0x78] sm:$0xf]
    %v4225 = vld [vmem:[#allocation22 + $0x7c] sm:$0xf]
    %v4226 = vld [vmem:[#allocation22 + $0x80] sm:$0xf]
    %v4227 = vld [vmem:[#allocation22 + $0x84] sm:$0xf]
    %v4228 = vld [vmem:[#allocation22 + $0x88] sm:$0xf]
    %v4229 = vld [vmem:[#allocation22 + $0x8c] sm:$0xf]
    %v4230 = vld [vmem:[#allocation22 + $0x90] sm:$0xf]
    %v4231 = vld [vmem:[#allocation22 + $0x94] sm:$0xf]
    %v4232 = vld [vmem:[#allocation22 + $0x98] sm:$0xf]
    %v4233 = vld [vmem:[#allocation22 + $0x9c] sm:$0xf]
    %v4234 = vld [vmem:[#allocation22 + $0xa0] sm:$0xf]
    %v4235 = vld [vmem:[#allocation22 + $0xa4] sm:$0xf]
    %v4236 = vld [vmem:[#allocation22 + $0xa8] sm:$0xf]
    %v4237 = vld [vmem:[#allocation22 + $0xac] sm:$0xf]
    %v4238 = vld [vmem:[#allocation22 + $0xb0] sm:$0xf]
    %v4239 = vld [vmem:[#allocation22 + $0xb4] sm:$0xf]
    %v4240 = vld [vmem:[#allocation22 + $0xb8] sm:$0xf]
    %v4241 = vld [vmem:[#allocation22 + $0xbc] sm:$0xf]
    %v4242 = vld [vmem:[#allocation22 + $0xc0] sm:$0xf]
    %v4243 = vld [vmem:[#allocation22 + $0xc4] sm:$0xf]
    %v4244 = vld [vmem:[#allocation22 + $0xc8] sm:$0xf]
    %v4245 = vld [vmem:[#allocation22 + $0xcc] sm:$0xf]
    %v4246 = vld [vmem:[#allocation22 + $0xd0] sm:$0xf]
    %v4247 = vld [vmem:[#allocation22 + $0xd4] sm:$0xf]
    %v4248 = vld [vmem:[#allocation22 + $0xd8] sm:$0xf]
    %v4249 = vld [vmem:[#allocation22 + $0xdc] sm:$0xf]
    %v4250 = vld [vmem:[#allocation22 + $0xe0] sm:$0xf]
    %v4251 = vld [vmem:[#allocation22 + $0xe4] sm:$0xf]
    %v4252 = vld [vmem:[#allocation22 + $0xe8] sm:$0xf]
    %v4253 = vld [vmem:[#allocation22 + $0xec] sm:$0xf]
    %v4254 = vld [vmem:[#allocation22 + $0xf0] sm:$0xf]
    %v4255 = vld [vmem:[#allocation22 + $0xf4] sm:$0xf]
    %v4256 = vld [vmem:[#allocation22 + $0xf8] sm:$0xf]
    %v4257 = vld [vmem:[#allocation22 + $0xfc] sm:$0xf]
    %v4258 = vld [vmem:[#allocation23] sm:$0x1]
    %v4260 = vlaneseq
    %v4261 = vshrl.u32 %v4260, 7
    %v4262 = vsub.s32 0, %v4261
    %v4263 = vrot.slane %v4258, %v4262
    %v4329 = vunpack.c.l.b16 %v4194
    %v4330 = vunpack.c.l.b16 %v4195
    %v4331 = vunpack.c.l.b16 %v4196
    %v4332 = vunpack.c.l.b16 %v4197
    %v4333 = vunpack.c.l.b16 %v4198
    %v4334 = vunpack.c.l.b16 %v4199
    %v4335 = vunpack.c.l.b16 %v4200
    %v4336 = vunpack.c.l.b16 %v4201
    %v4337 = vunpack.c.l.b16 %v4202
    %v4338 = vunpack.c.l.b16 %v4203
    %v4339 = vunpack.c.l.b16 %v4204
    %v4340 = vunpack.c.l.b16 %v4205
    %v4341 = vunpack.c.l.b16 %v4206
    %v4342 = vunpack.c.l.b16 %v4207
    %v4343 = vunpack.c.l.b16 %v4208
    %v4344 = vunpack.c.l.b16 %v4209
    %v4345 = vunpack.c.l.b16 %v4210
    %v4346 = vunpack.c.l.b16 %v4211
    %v4347 = vunpack.c.l.b16 %v4212
    %v4348 = vunpack.c.l.b16 %v4213
    %v4349 = vunpack.c.l.b16 %v4214
    %v4350 = vunpack.c.l.b16 %v4215
    %v4351 = vunpack.c.l.b16 %v4216
    %v4352 = vunpack.c.l.b16 %v4217
    %v4353 = vunpack.c.l.b16 %v4218
    %v4354 = vunpack.c.l.b16 %v4219
    %v4355 = vunpack.c.l.b16 %v4220
    %v4356 = vunpack.c.l.b16 %v4221
    %v4357 = vunpack.c.l.b16 %v4222
    %v4358 = vunpack.c.l.b16 %v4223
    %v4359 = vunpack.c.l.b16 %v4224
    %v4360 = vunpack.c.l.b16 %v4225
    %v4361 = vunpack.c.l.b16 %v4226
    %v4362 = vunpack.c.l.b16 %v4227
    %v4363 = vunpack.c.l.b16 %v4228
    %v4364 = vunpack.c.l.b16 %v4229
    %v4365 = vunpack.c.l.b16 %v4230
    %v4366 = vunpack.c.l.b16 %v4231
    %v4367 = vunpack.c.l.b16 %v4232
    %v4368 = vunpack.c.l.b16 %v4233
    %v4369 = vunpack.c.l.b16 %v4234
    %v4370 = vunpack.c.l.b16 %v4235
    %v4371 = vunpack.c.l.b16 %v4236
    %v4372 = vunpack.c.l.b16 %v4237
    %v4373 = vunpack.c.l.b16 %v4238
    %v4374 = vunpack.c.l.b16 %v4239
    %v4375 = vunpack.c.l.b16 %v4240
    %v4376 = vunpack.c.l.b16 %v4241
    %v4377 = vunpack.c.l.b16 %v4242
    %v4378 = vunpack.c.l.b16 %v4243
    %v4379 = vunpack.c.l.b16 %v4244
    %v4380 = vunpack.c.l.b16 %v4245
    %v4381 = vunpack.c.l.b16 %v4246
    %v4382 = vunpack.c.l.b16 %v4247
    %v4383 = vunpack.c.l.b16 %v4248
    %v4384 = vunpack.c.l.b16 %v4249
    %v4385 = vunpack.c.l.b16 %v4250
    %v4386 = vunpack.c.l.b16 %v4251
    %v4387 = vunpack.c.l.b16 %v4252
    %v4388 = vunpack.c.l.b16 %v4253
    %v4389 = vunpack.c.l.b16 %v4254
    %v4390 = vunpack.c.l.b16 %v4255
    %v4391 = vunpack.c.l.b16 %v4256
    %v4392 = vunpack.c.l.b16 %v4257
    %v4393 = vpack.c.b16 %v4330, %v4329
    %v4394 = vpack.c.b16 %v4332, %v4331
    %v4395 = vpack.c.b16 %v4334, %v4333
    %v4396 = vpack.c.b16 %v4336, %v4335
    %v4397 = vpack.c.b16 %v4338, %v4337
    %v4398 = vpack.c.b16 %v4340, %v4339
    %v4399 = vpack.c.b16 %v4342, %v4341
    %v4400 = vpack.c.b16 %v4344, %v4343
    %v4401 = vpack.c.b16 %v4346, %v4345
    %v4402 = vpack.c.b16 %v4348, %v4347
    %v4403 = vpack.c.b16 %v4350, %v4349
    %v4404 = vpack.c.b16 %v4352, %v4351
    %v4405 = vpack.c.b16 %v4354, %v4353
    %v4406 = vpack.c.b16 %v4356, %v4355
    %v4407 = vpack.c.b16 %v4358, %v4357
    %v4408 = vpack.c.b16 %v4360, %v4359
    %v4409 = vpack.c.b16 %v4362, %v4361
    %v4410 = vpack.c.b16 %v4364, %v4363
    %v4411 = vpack.c.b16 %v4366, %v4365
    %v4412 = vpack.c.b16 %v4368, %v4367
    %v4413 = vpack.c.b16 %v4370, %v4369
    %v4414 = vpack.c.b16 %v4372, %v4371
    %v4415 = vpack.c.b16 %v4374, %v4373
    %v4416 = vpack.c.b16 %v4376, %v4375
    %v4417 = vpack.c.b16 %v4378, %v4377
    %v4418 = vpack.c.b16 %v4380, %v4379
    %v4419 = vpack.c.b16 %v4382, %v4381
    %v4420 = vpack.c.b16 %v4384, %v4383
    %v4421 = vpack.c.b16 %v4386, %v4385
    %v4422 = vpack.c.b16 %v4388, %v4387
    %v4423 = vpack.c.b16 %v4390, %v4389
    %v4424 = vpack.c.b16 %v4392, %v4391
    %4457 = vmatprep.subr.bf16.mxu0 0
    %4458 = vmatpush1.bf16.msra.mxu0 %v4400
    %4459 = vmatprep.subr.bf16.mxu0 0
    %4460 = vmatpush1.bf16.msra.mxu0 %v4399
    %4461 = vmatprep.subr.bf16.mxu0 0
    %4462 = vmatpush1.bf16.msra.mxu0 %v4398
    %4463 = vmatprep.subr.bf16.mxu0 0
    %4464 = vmatpush1.bf16.msra.mxu0 %v4397
    %4465 = vmatprep.subr.bf16.mxu0 0
    %4466 = vmatpush1.bf16.msra.mxu0 %v4396
    %4467 = vmatprep.subr.bf16.mxu0 0
    %4468 = vmatpush1.bf16.msra.mxu0 %v4395
    %4469 = vmatprep.subr.bf16.mxu0 0
    %4470 = vmatpush1.bf16.msra.mxu0 %v4394
    %4471 = vmatprep.subr.bf16.mxu0 0
    %4472 = vmatpush1.bf16.msra.mxu0 %v4393
    %4473 = vmatprep.subr.bf16.mxu0 0
    %4474 = vmatpush2.bf16.msra.mxu0 %v4408
    %4475 = vmatprep.subr.bf16.mxu0 0
    %4476 = vmatpush2.bf16.msra.mxu0 %v4407
    %4477 = vmatprep.subr.bf16.mxu0 0
    %4478 = vmatpush2.bf16.msra.mxu0 %v4406
    %4479 = vmatprep.subr.bf16.mxu0 0
    %4480 = vmatpush2.bf16.msra.mxu0 %v4405
    %4481 = vmatprep.subr.bf16.mxu0 0
    %4482 = vmatpush2.bf16.msra.mxu0 %v4404
    %4483 = vmatprep.subr.bf16.mxu0 0
    %4484 = vmatpush2.bf16.msra.mxu0 %v4403
    %4485 = vmatprep.subr.bf16.mxu0 0
    %4486 = vmatpush2.bf16.msra.mxu0 %v4402
    %4487 = vmatprep.subr.bf16.mxu0 0
    %4488 = vmatpush2.bf16.msra.mxu0 %v4401
    %4489 = vmatprep.mubr.bf16.mxu0 %v4191
    %4490 = vmatmul.mubr.bf16.gmra.mxu0 %v4190
    %v4491 = vpop.f32.mrf.mxu0
    %v4492 = vadd.f32 %v4263, %v4491
    %v4493 = vpop.f32.mrf.mxu0
    %v4494 = vpop.f32.mrf.mxu0
    %v4495 = vpop.f32.mrf.mxu0
    %4496 = vdwg.mxu0
    %4497 = vmatprep.subr.bf16.mxu0 0
    %4498 = vmatpush1.bf16.msra.mxu0 %v4416
    %4499 = vmatprep.subr.bf16.mxu0 0
    %4500 = vmatpush1.bf16.msra.mxu0 %v4415
    %4501 = vmatprep.subr.bf16.mxu0 0
    %4502 = vmatpush1.bf16.msra.mxu0 %v4414
    %4503 = vmatprep.subr.bf16.mxu0 0
    %4504 = vmatpush1.bf16.msra.mxu0 %v4413
    %4505 = vmatprep.subr.bf16.mxu0 0
    %4506 = vmatpush1.bf16.msra.mxu0 %v4412
    %4507 = vmatprep.subr.bf16.mxu0 0
    %4508 = vmatpush1.bf16.msra.mxu0 %v4411
    %4509 = vmatprep.subr.bf16.mxu0 0
    %4510 = vmatpush1.bf16.msra.mxu0 %v4410
    %4511 = vmatprep.subr.bf16.mxu0 0
    %4512 = vmatpush1.bf16.msra.mxu0 %v4409
    %4513 = vmatprep.subr.bf16.mxu0 0
    %4514 = vmatpush2.bf16.msra.mxu0 %v4424
    %4515 = vmatprep.subr.bf16.mxu0 0
    %4516 = vmatpush2.bf16.msra.mxu0 %v4423
    %4517 = vmatprep.subr.bf16.mxu0 0
    %4518 = vmatpush2.bf16.msra.mxu0 %v4422
    %4519 = vmatprep.subr.bf16.mxu0 0
    %4520 = vmatpush2.bf16.msra.mxu0 %v4421
    %4521 = vmatprep.subr.bf16.mxu0 0
    %4522 = vmatpush2.bf16.msra.mxu0 %v4420
    %4523 = vmatprep.subr.bf16.mxu0 0
    %4524 = vmatpush2.bf16.msra.mxu0 %v4419
    %4525 = vmatprep.subr.bf16.mxu0 0
    %4526 = vmatpush2.bf16.msra.mxu0 %v4418
    %4527 = vmatprep.subr.bf16.mxu0 0
    %4528 = vmatpush2.bf16.msra.mxu0 %v4417
    %4529 = vmatprep.mubr.bf16.mxu0 %v4193
    %4530 = vmatmul.mubr.bf16.gmra.mxu0 %v4192
    %v4531 = vpop.f32.mrf.mxu0
    %v4532 = vadd.f32 %v4492, %v4531
    %v4533 = vpop.f32.mrf.mxu0
    %v4534 = vpop.f32.mrf.mxu0
    %v4535 = vpop.f32.mrf.mxu0
    %4536 = vdwg.mxu0
    %v4537 = vmax.f32 %v4532, 0.0
    %v4538 = vld [vmem:[#allocation25] sm:$0x1]
    %v4540 = vlaneseq
    %v4541 = vshrl.u32 %v4540, 7
    %v4542 = vsub.s32 0, %v4541
    %v4543 = vrot.slane %v4538, %v4542
    %v4545 = vmul.f32 %v4537, %v4543
    %vm4546 = vcmask 1041408
    %v4547 = vsel %vm4546, %v4545, 0.0
    %4548 = vadd.xlane.f32.xlu0 %v4547
    %v4549 = vpop.xlane.xlu0 %4548
    %v4550 = vld [vmem:[#allocation5] sm:$0x1]
    %v4552 = vlaneseq
    %v4553 = vshrl.u32 %v4552, 7
    %v4554 = vsub.s32 0, %v4553
    %v4555 = vrot.slane %v4550, %v4554
    %v4557 = vadd.f32 %v4549, %v4555
    %vm4558 = vcmask 1024
    %4559 = vst.msk [vmem:[%s18] sm:$0x3] %vm4558, %v4557
    // Predicated region
    $region138: #{traffic_cnn_forward.1} parent=1 // pred_check
      _
    $region139: #{traffic_cnn_forward.1} parent=1 // pred_check_branch
      %4561 = sbr.rel (0) target = $region141
    $region140: #{traffic_cnn_forward.1} parent=1 // pred_region
      _
    $region141: #{traffic_cnn_forward.1} parent=1 // pred_fallthru
      _
    // Predicated region
    $region142: #{traffic_cnn_forward.1} parent=1 // pred_check
      _
    $region143: #{traffic_cnn_forward.1} parent=1 // pred_check_branch
      %4563 = sbr.rel (0) target = $region145
    $region144: #{traffic_cnn_forward.1} parent=1 // pred_region
      _
    $region145: #{traffic_cnn_forward.1} parent=1 // pred_fallthru
      _
    %4564 = vsyncpa [#allocation7], 1
    %4565 = vsyncpa [#allocation9], 1
    %4566 = vsyncpa [#allocation12], 1
    %4567 = vsyncpa [#allocation15], 1
    %4568 = vsyncpa [#allocation18], 1
    %4569 = vsyncpa [#allocation21], 1
    %4570 = vsyncpa [#allocation24], 1
  %4571 = vsyncmov [#allocation3]
  %s4572 = vpop.sfrf %4571
  %p4573 = scmp.eq.s32.totalorder %s4572, 0
  %p4574 = pneg %p4573
  %4576 = shalt.err (%p4574)
  %s4577 = scalar_lea.sflag [#allocation3], 1
  %4578 = vsyncmov %s4577
  %s4579 = vpop.sfrf %4578
  %p4580 = scmp.eq.s32.totalorder %s4579, 0
  %p4581 = pneg %p4580
  %4583 = shalt.err (%p4581)
  %s4584 = scalar_lea.sflag [#allocation3], 2
  %4585 = vsyncmov %s4584
  %s4586 = vpop.sfrf %4585
  %p4587 = scmp.eq.s32.totalorder %s4586, 0
  %p4588 = pneg %p4587
  %4590 = shalt.err (%p4588)
  %s4591 = scalar_lea.sflag [#allocation3], 3
  %4592 = vsyncmov %s4591
  %s4593 = vpop.sfrf %4592
  %p4594 = scmp.eq.s32.totalorder %s4593, 0
  %p4595 = pneg %p4594
  %4597 = shalt.err (%p4595)

</llo_original>
